<compile_context>
chip_gen: v7x
topology: tpu7x:2x2x1
jax: 0.10.0
libtpu: 0.0.40
codegen_flags: <defaults>
</compile_context>

<pallas_src>
import functools

import numpy as np
import jax
import jax.numpy as jnp
from jax import lax
from jax.experimental import pallas as pl
from jax.experimental.pallas import tpu as pltpu


PH = 3   # zero-pad rows per side (2 for the two stacked 3x3 convs, +1 so every
         # shifted flat-token window stays inside the padded image)
PW = 2   # zero-pad cols per side


def _vmem_cap_bytes():
    """Generation-aware scoped-VMEM budget (~3/4 of physical, capped)."""
    try:
        phys = pltpu.get_tpu_info().vmem_capacity_bytes
    except Exception:
        phys = 128 * 2**20
    return int(min(phys * 3 // 4, 112 * 2**20))


def _resblock_kernel(x_ref, rowtab_ref, w1_ref, b1_ref, a_ref, w2_ref, b2_ref,
                     o_ref, *, tile_h, wp, img_h, mm_dtype):
    """Fused conv3x3 -> PReLU -> conv3x3 -> (+x) for one (batch, row-tile)."""
    t = pl.program_id(1)

    r2 = tile_h * wp                     # output tokens of this tile
    r1 = (tile_h + 2) * wp + 2           # intermediate (rs1) tokens incl. halo
    rS = (tile_h + 4) * wp + 4           # x superwindow tokens incl. full halo
    s2 = (PH + t * tile_h) * wp          # flat start of the output block
    sS = s2 - 2 * wp - 2                 # flat start of the x superwindow

    # One dynamic-start load of the x superwindow (f32). Everything below is a
    # static sub-slice of this value -- no further unaligned VMEM loads.
    sw = x_ref[0, pl.ds(sS, rS), :]                               # (rS, C)
    sw_mm = sw.astype(mm_dtype)

    # ---- conv1: tap-packed matmul, K = 9*C (one MXU op instead of nine) ----
    lhs1 = jnp.concatenate(
        [sw_mm[dy * wp + dx:dy * wp + dx + r1, :]
         for dy in range(3) for dx in range(3)], axis=-1)         # (r1, 9C)
    acc1 = jnp.dot(lhs1, w1_ref[...], preferred_element_type=jnp.float32)
    acc1 = acc1 + b1_ref[...]
    rs1 = jnp.where(acc1 >= 0.0, acc1, a_ref[...] * acc1)         # per-channel PReLU

    # Zero the pad ring (emulates conv2's zero padding): rowtab holds the row
    # offset of each rs1 token (huge sentinel at pad columns), so validity is
    # just two compares against scalars.
    q = rowtab_ref[...]                                           # (r1, 1) int32
    lo = 2 - t * tile_h
    hi = img_h + 1 - t * tile_h
    rs1 = jnp.where((q >= lo) & (q <= hi), rs1, 0.0)
    rs1_mm = rs1.astype(mm_dtype)

    # ---- conv2: tap-packed matmul + bias + residual ----
    lhs2 = jnp.concatenate(
        [rs1_mm[dy * wp + dx:dy * wp + dx + r2, :]
         for dy in range(3) for dx in range(3)], axis=-1)         # (r2, 9C)
    acc2 = jnp.dot(lhs2, w2_ref[...], preferred_element_type=jnp.float32)
    out = acc2 + b2_ref[...] + sw[2 * wp + 2:2 * wp + 2 + r2, :]  # residual (f32)
    o_ref[0] = out.astype(o_ref.dtype)


def _pick_row_tile(h, wp, c, cap_bytes):
    """Largest row tile whose working set fits comfortably in the VMEM budget."""
    def need(th):
        x_res = 2 * (h + 2 * PH) * wp * c * 4      # double-buffered resident input
        tile = th * wp * c * 4
        return x_res + 26 * tile + (2 << 20)       # out tile + in-kernel temporaries
    if h % 8 != 0 or need(h) <= cap_bytes // 2:
        return h
    for th in range(h - 8, 7, -8):
        if h % th == 0 and (th * wp) % 8 == 0 and need(th) <= cap_bytes // 2:
            return th
    return 8


def resblock_forward(params, x, *, tile_h=None, use_bf16=True):
    """x: (B, C, H, W) float32 NCHW -> (B, C, H, W)."""
    B, C, H, W = x.shape
    Hp, Wp = H + 2 * PH, W + 2 * PW
    cap = _vmem_cap_bytes()
    TH = tile_h if tile_h is not None else _pick_row_tile(H, Wp, C, cap)
    assert H % TH == 0
    nT = H // TH
    assert nT == 1 or (TH * Wp) % 8 == 0

    mm_dtype = jnp.bfloat16 if use_bf16 else jnp.float32

    # ---- layout glue at the model boundary only ----
    xn = jnp.transpose(x, (0, 2, 3, 1)).astype(jnp.float32)        # NHWC
    xp = jnp.pad(xn, ((0, 0), (PH, PH), (PW, PW), (0, 0)))
    xf = xp.reshape(B, Hp * Wp, C)                                 # flat tokens

    # Per-tile row-offset table for rs1 tokens (pad columns -> sentinel); this
    # replaces the old (Hp*Wp, 1) f32 validity-mask input.
    r1 = (TH + 2) * Wp + 2
    i = np.arange(r1)
    q = (i + Wp - 1) // Wp
    col = (i + Wp - 1) % Wp
    col_ok = (col >= PW) & (col < PW + W)
    rowtab = jnp.asarray(np.where(col_ok, q, 10**6).astype(np.int32).reshape(r1, 1))

    # torch conv weight (Cout, Cin, kh, kw) -> tap-packed (9*Cin, Cout)
    w1 = jnp.transpose(params["w1"], (2, 3, 1, 0)).reshape(9 * C, C).astype(mm_dtype)
    w2 = jnp.transpose(params["w2"], (2, 3, 1, 0)).reshape(9 * C, C).astype(mm_dtype)
    b1 = params["b1"].reshape(1, C).astype(jnp.float32)
    b2 = params["b2"].reshape(1, C).astype(jnp.float32)
    alpha = params["alpha"].reshape(1, C).astype(jnp.float32)

    x_bytes = Hp * Wp * C * 4
    o_bytes = TH * Wp * C * 4
    vmem_limit = int(min(cap, max(32 * 2**20,
                                  2 * x_bytes + 26 * o_bytes + (2 << 20))))

    kernel = functools.partial(_resblock_kernel, tile_h=TH, wp=Wp, img_h=H,
                               mm_dtype=mm_dtype)
    out = pl.pallas_call(
        kernel,
        grid=(B, nT),
        in_specs=[
            pl.BlockSpec((1, Hp * Wp, C), lambda b, t: (b, 0, 0)),   # x (resident per batch)
            pl.BlockSpec((r1, 1), lambda b, t: (0, 0)),              # row-offset table
            pl.BlockSpec((9 * C, C), lambda b, t: (0, 0)),           # conv1 taps (packed)
            pl.BlockSpec((1, C), lambda b, t: (0, 0)),               # conv1 bias
            pl.BlockSpec((1, C), lambda b, t: (0, 0)),               # PReLU alpha
            pl.BlockSpec((9 * C, C), lambda b, t: (0, 0)),           # conv2 taps (packed)
            pl.BlockSpec((1, C), lambda b, t: (0, 0)),               # conv2 bias
        ],
        out_specs=pl.BlockSpec((1, TH * Wp, C), lambda b, t: (b, t, 0)),
        out_shape=jax.ShapeDtypeStruct((B, H * Wp, C), jnp.float32),
        compiler_params=pltpu.CompilerParams(
            dimension_semantics=("parallel", "arbitrary"),
            vmem_limit_bytes=vmem_limit),
    )(xf, rowtab, w1, b1, alpha, w2, b2)

    # Drop the padded columns, back to NCHW (done once at the boundary).
    y = out.reshape(B, H, Wp, C)[:, :, PW:PW + W, :]
    return jnp.transpose(y, (0, 3, 1, 2))


def _resblock_reference(params, x):
    """Pure-JAX reference matching the PyTorch module (cross-correlation convs)."""
    dn = ("NCHW", "OIHW", "NCHW")
    y = lax.conv_general_dilated(x, params["w1"], (1, 1), ((1, 1), (1, 1)),
                                 dimension_numbers=dn,
                                 precision=lax.Precision.HIGHEST)
    y = y + params["b1"].reshape(1, -1, 1, 1)
    a = params["alpha"].reshape(1, -1, 1, 1)
    y = jnp.where(y >= 0, y, a * y)                                # PReLU
    z = lax.conv_general_dilated(y, params["w2"], (1, 1), ((1, 1), (1, 1)),
                                 dimension_numbers=dn,
                                 precision=lax.Precision.HIGHEST)
    return z + params["b2"].reshape(1, -1, 1, 1) + x


if __name__ == "__main__":
    B, C, H, W = 2, 16, 16, 16

    key = jax.random.PRNGKey(0)
    kx, kw1, kb1, kw2, kb2 = jax.random.split(key, 5)
    x = jax.random.normal(kx, (B, C, H, W), jnp.float32)
    params = dict(
        w1=jax.random.normal(kw1, (C, C, 3, 3), jnp.float32) / ((C * 9) ** 0.5),
        b1=jax.random.normal(kb1, (C,), jnp.float32) * 0.01,
        w2=jax.random.normal(kw2, (C, C, 3, 3), jnp.float32) / ((C * 9) ** 0.5),
        b2=jax.random.normal(kb2, (C,), jnp.float32) * 0.01,
        alpha=jnp.full((C,), 0.01, jnp.float32),   # nn.PReLU(num_parameters=C, init=0.01)
    )

    ref = _resblock_reference(params, x)

    # bf16-operand (f32-accumulate) fast path.
    out = jax.jit(functools.partial(resblock_forward, use_bf16=True))(params, x)
    out = jax.block_until_ready(out)
    assert out.shape == (B, C, H, W), out.shape
    assert bool(jnp.all(jnp.isfinite(out)))
    err_bf16 = float(jnp.max(jnp.abs(out - ref)))
    assert err_bf16 < 5e-2, f"bf16 path: max abs err vs reference = {err_bf16}"

    # f32-operand path with a tight tolerance (guards tap/halo indexing).
    out32 = jax.jit(functools.partial(resblock_forward, use_bf16=False))(params, x)
    out32 = jax.block_until_ready(out32)
    err_f32 = float(jnp.max(jnp.abs(out32 - ref)))
    assert err_f32 < 2e-3, f"f32 path: max abs err vs reference = {err_f32}"

    print("KERNEL_OK")
</pallas_src>

<mosaic_0001>
module attributes {stable_mosaic.version = 11 : i64} {
  func.func @_resblock_kernel(%arg0: i32, %arg1: i32, %arg2: memref<1x440x16xf32, #tpu.memory_space<vmem>>, %arg3: memref<362x1xi32, #tpu.memory_space<vmem>>, %arg4: memref<144x16xbf16, #tpu.memory_space<vmem>>, %arg5: memref<1x16xf32, #tpu.memory_space<vmem>>, %arg6: memref<1x16xf32, #tpu.memory_space<vmem>>, %arg7: memref<144x16xbf16, #tpu.memory_space<vmem>>, %arg8: memref<1x16xf32, #tpu.memory_space<vmem>>, %arg9: memref<1x320x16xf32, #tpu.memory_space<vmem>>) attributes {dimension_semantics = [#tpu.dimension_semantics<parallel>, #tpu.dimension_semantics<arbitrary>], iteration_bounds = array<i64: 2, 1>, scalar_prefetch = 0 : i64, scratch_operands = 0 : i64, tpu.core_type = #tpu.core_type<tc>, window_params = [{transform_indices = @transform_0, window_bounds = array<i64: 1, 440, 16>}, {pipeline_mode = #tpu.pipeline_mode<synchronous>, transform_indices = @transform_1, window_bounds = array<i64: 362, 1>}, {pipeline_mode = #tpu.pipeline_mode<synchronous>, transform_indices = @transform_2, window_bounds = array<i64: 144, 16>}, {pipeline_mode = #tpu.pipeline_mode<synchronous>, transform_indices = @transform_3, window_bounds = array<i64: 1, 16>}, {pipeline_mode = #tpu.pipeline_mode<synchronous>, transform_indices = @transform_4, window_bounds = array<i64: 1, 16>}, {pipeline_mode = #tpu.pipeline_mode<synchronous>, transform_indices = @transform_5, window_bounds = array<i64: 144, 16>}, {pipeline_mode = #tpu.pipeline_mode<synchronous>, transform_indices = @transform_6, window_bounds = array<i64: 1, 16>}, {transform_indices = @transform_7, window_bounds = array<i64: 1, 320, 16>}]} {
    %c16_i32 = arith.constant 16 : i32
    %0 = arith.muli %arg1, %c16_i32 : i32
    %c3_i32 = arith.constant 3 : i32
    %1 = arith.addi %c3_i32, %0 : i32
    %c20_i32 = arith.constant 20 : i32
    %2 = arith.muli %1, %c20_i32 : i32
    %c40_i32 = arith.constant 40 : i32
    %3 = arith.subi %2, %c40_i32 : i32
    %c2_i32 = arith.constant 2 : i32
    %4 = arith.subi %3, %c2_i32 : i32
    %c0 = arith.constant 0 : index
    %5 = arith.index_cast %4 : i32 to index
    %c0_0 = arith.constant 0 : index
    %6 = vector.load %arg2[%c0, %5, %c0_0] : memref<1x440x16xf32, #tpu.memory_space<vmem>>, vector<1x404x16xf32>
    %7 = vector.shape_cast %6 : vector<1x404x16xf32> to vector<404x16xf32>
    %8 = arith.truncf %7 : vector<404x16xf32> to vector<404x16xbf16>
    %9 = vector.extract_strided_slice %8 {offsets = [0, 0], sizes = [362, 16], strides = [1, 1]} : vector<404x16xbf16> to vector<362x16xbf16>
    %10 = vector.extract_strided_slice %8 {offsets = [1, 0], sizes = [362, 16], strides = [1, 1]} : vector<404x16xbf16> to vector<362x16xbf16>
    %11 = vector.extract_strided_slice %8 {offsets = [2, 0], sizes = [362, 16], strides = [1, 1]} : vector<404x16xbf16> to vector<362x16xbf16>
    %12 = vector.extract_strided_slice %8 {offsets = [20, 0], sizes = [362, 16], strides = [1, 1]} : vector<404x16xbf16> to vector<362x16xbf16>
    %13 = vector.extract_strided_slice %8 {offsets = [21, 0], sizes = [362, 16], strides = [1, 1]} : vector<404x16xbf16> to vector<362x16xbf16>
    %14 = vector.extract_strided_slice %8 {offsets = [22, 0], sizes = [362, 16], strides = [1, 1]} : vector<404x16xbf16> to vector<362x16xbf16>
    %15 = vector.extract_strided_slice %8 {offsets = [40, 0], sizes = [362, 16], strides = [1, 1]} : vector<404x16xbf16> to vector<362x16xbf16>
    %16 = vector.extract_strided_slice %8 {offsets = [41, 0], sizes = [362, 16], strides = [1, 1]} : vector<404x16xbf16> to vector<362x16xbf16>
    %17 = vector.extract_strided_slice %8 {offsets = [42, 0], sizes = [362, 16], strides = [1, 1]} : vector<404x16xbf16> to vector<362x16xbf16>
    %18 = tpu.concatenate %9, %10, %11, %12, %13, %14, %15, %16, %17 in 1 : vector<362x16xbf16>, vector<362x16xbf16>, vector<362x16xbf16>, vector<362x16xbf16>, vector<362x16xbf16>, vector<362x16xbf16>, vector<362x16xbf16>, vector<362x16xbf16>, vector<362x16xbf16> -> vector<362x144xbf16>
    %c0_1 = arith.constant 0 : index
    %c0_2 = arith.constant 0 : index
    %19 = vector.load %arg4[%c0_1, %c0_2] : memref<144x16xbf16, #tpu.memory_space<vmem>>, vector<144x16xbf16>
    %cst = arith.constant dense<0.000000e+00> : vector<362x16xf32>
    %20 = tpu.matmul %18, %19, %cst {dimension_numbers = #tpu.dot_dimension_numbers<[1], [0], [0], [1], [0, 0, 1, 1], [], []>} : vector<362x144xbf16>, vector<144x16xbf16>, vector<362x16xf32> -> vector<362x16xf32>
    %c0_3 = arith.constant 0 : index
    %c0_4 = arith.constant 0 : index
    %21 = vector.load %arg5[%c0_3, %c0_4] : memref<1x16xf32, #tpu.memory_space<vmem>>, vector<1x16xf32>
    %22 = vector.broadcast %21 : vector<1x16xf32> to vector<362x16xf32>
    %23 = arith.addf %20, %22 : vector<362x16xf32>
    %cst_5 = arith.constant 0.000000e+00 : f32
    %24 = vector.broadcast %cst_5 : f32 to vector<362x16xf32>
    %25 = arith.cmpf oge, %23, %24 : vector<362x16xf32>
    %c0_6 = arith.constant 0 : index
    %c0_7 = arith.constant 0 : index
    %26 = vector.load %arg6[%c0_6, %c0_7] : memref<1x16xf32, #tpu.memory_space<vmem>>, vector<1x16xf32>
    %27 = vector.broadcast %26 : vector<1x16xf32> to vector<362x16xf32>
    %28 = arith.mulf %27, %23 : vector<362x16xf32>
    %29 = arith.select %25, %23, %28 : vector<362x16xi1>, vector<362x16xf32>
    %c0_8 = arith.constant 0 : index
    %c0_9 = arith.constant 0 : index
    %30 = vector.load %arg3[%c0_8, %c0_9] : memref<362x1xi32, #tpu.memory_space<vmem>>, vector<362x1xi32>
    %c16_i32_10 = arith.constant 16 : i32
    %31 = arith.muli %arg1, %c16_i32_10 : i32
    %c2_i32_11 = arith.constant 2 : i32
    %32 = arith.subi %c2_i32_11, %31 : i32
    %c16_i32_12 = arith.constant 16 : i32
    %33 = arith.muli %arg1, %c16_i32_12 : i32
    %c17_i32 = arith.constant 17 : i32
    %34 = arith.subi %c17_i32, %33 : i32
    %35 = vector.broadcast %32 : i32 to vector<362x1xi32>
    %36 = arith.cmpi sge, %30, %35 : vector<362x1xi32>
    %37 = vector.broadcast %34 : i32 to vector<362x1xi32>
    %38 = arith.cmpi sle, %30, %37 : vector<362x1xi32>
    %39 = arith.andi %36, %38 : vector<362x1xi1>
    %cst_13 = arith.constant 0.000000e+00 : f32
    %40 = vector.shape_cast %39 : vector<362x1xi1> to vector<362x1xi1>
    %41 = vector.broadcast %40 : vector<362x1xi1> to vector<362x16xi1>
    %42 = vector.broadcast %cst_13 : f32 to vector<362x16xf32>
    %43 = arith.select %41, %29, %42 : vector<362x16xi1>, vector<362x16xf32>
    %44 = arith.truncf %43 : vector<362x16xf32> to vector<362x16xbf16>
    %45 = vector.extract_strided_slice %44 {offsets = [0, 0], sizes = [320, 16], strides = [1, 1]} : vector<362x16xbf16> to vector<320x16xbf16>
    %46 = vector.extract_strided_slice %44 {offsets = [1, 0], sizes = [320, 16], strides = [1, 1]} : vector<362x16xbf16> to vector<320x16xbf16>
    %47 = vector.extract_strided_slice %44 {offsets = [2, 0], sizes = [320, 16], strides = [1, 1]} : vector<362x16xbf16> to vector<320x16xbf16>
    %48 = vector.extract_strided_slice %44 {offsets = [20, 0], sizes = [320, 16], strides = [1, 1]} : vector<362x16xbf16> to vector<320x16xbf16>
    %49 = vector.extract_strided_slice %44 {offsets = [21, 0], sizes = [320, 16], strides = [1, 1]} : vector<362x16xbf16> to vector<320x16xbf16>
    %50 = vector.extract_strided_slice %44 {offsets = [22, 0], sizes = [320, 16], strides = [1, 1]} : vector<362x16xbf16> to vector<320x16xbf16>
    %51 = vector.extract_strided_slice %44 {offsets = [40, 0], sizes = [320, 16], strides = [1, 1]} : vector<362x16xbf16> to vector<320x16xbf16>
    %52 = vector.extract_strided_slice %44 {offsets = [41, 0], sizes = [320, 16], strides = [1, 1]} : vector<362x16xbf16> to vector<320x16xbf16>
    %53 = vector.extract_strided_slice %44 {offsets = [42, 0], sizes = [320, 16], strides = [1, 1]} : vector<362x16xbf16> to vector<320x16xbf16>
    %54 = tpu.concatenate %45, %46, %47, %48, %49, %50, %51, %52, %53 in 1 : vector<320x16xbf16>, vector<320x16xbf16>, vector<320x16xbf16>, vector<320x16xbf16>, vector<320x16xbf16>, vector<320x16xbf16>, vector<320x16xbf16>, vector<320x16xbf16>, vector<320x16xbf16> -> vector<320x144xbf16>
    %c0_14 = arith.constant 0 : index
    %c0_15 = arith.constant 0 : index
    %55 = vector.load %arg7[%c0_14, %c0_15] : memref<144x16xbf16, #tpu.memory_space<vmem>>, vector<144x16xbf16>
    %cst_16 = arith.constant dense<0.000000e+00> : vector<320x16xf32>
    %56 = tpu.matmul %54, %55, %cst_16 {dimension_numbers = #tpu.dot_dimension_numbers<[1], [0], [0], [1], [0, 0, 1, 1], [], []>} : vector<320x144xbf16>, vector<144x16xbf16>, vector<320x16xf32> -> vector<320x16xf32>
    %c0_17 = arith.constant 0 : index
    %c0_18 = arith.constant 0 : index
    %57 = vector.load %arg8[%c0_17, %c0_18] : memref<1x16xf32, #tpu.memory_space<vmem>>, vector<1x16xf32>
    %58 = vector.broadcast %57 : vector<1x16xf32> to vector<320x16xf32>
    %59 = arith.addf %56, %58 : vector<320x16xf32>
    %60 = vector.extract_strided_slice %7 {offsets = [42, 0], sizes = [320, 16], strides = [1, 1]} : vector<404x16xf32> to vector<320x16xf32>
    %61 = arith.addf %59, %60 : vector<320x16xf32>
    %c0_19 = arith.constant 0 : index
    %c0_20 = arith.constant 0 : index
    %c0_21 = arith.constant 0 : index
    %62 = vector.load %arg9[%c0_19, %c0_20, %c0_21] : memref<1x320x16xf32, #tpu.memory_space<vmem>>, vector<1x320x16xf32>
    %63 = vector.shape_cast %62 : vector<1x320x16xf32> to vector<320x16xf32>
    %64 = vector.shape_cast %61 : vector<320x16xf32> to vector<1x320x16xf32>
    tpu.vector_store %arg9[%c0_19, %c0_20, %c0_21], %64 {strides = array<i32>} : memref<1x320x16xf32, #tpu.memory_space<vmem>>, vector<1x320x16xf32>,
    return
  }
  func.func @transform_0(%arg0: i32, %arg1: i32) -> (i32, i32, i32) {
    %c0_i32 = arith.constant 0 : i32
    %c0_i32_0 = arith.constant 0 : i32
    %c0_i32_1 = arith.constant 0 : i32
    return %arg0, %c0_i32, %c0_i32_0 : i32, i32, i32
  }
  func.func @transform_1(%arg0: i32, %arg1: i32) -> (i32, i32) {
    %c0_i32 = arith.constant 0 : i32
    %c0_i32_0 = arith.constant 0 : i32
    %c0_i32_1 = arith.constant 0 : i32
    return %c0_i32, %c0_i32_0 : i32, i32
  }
  func.func @transform_2(%arg0: i32, %arg1: i32) -> (i32, i32) {
    %c0_i32 = arith.constant 0 : i32
    %c0_i32_0 = arith.constant 0 : i32
    %c0_i32_1 = arith.constant 0 : i32
    return %c0_i32, %c0_i32_0 : i32, i32
  }
  func.func @transform_3(%arg0: i32, %arg1: i32) -> (i32, i32) {
    %c0_i32 = arith.constant 0 : i32
    %c0_i32_0 = arith.constant 0 : i32
    %c0_i32_1 = arith.constant 0 : i32
    return %c0_i32, %c0_i32_0 : i32, i32
  }
  func.func @transform_4(%arg0: i32, %arg1: i32) -> (i32, i32) {
    %c0_i32 = arith.constant 0 : i32
    %c0_i32_0 = arith.constant 0 : i32
    %c0_i32_1 = arith.constant 0 : i32
    return %c0_i32, %c0_i32_0 : i32, i32
  }
  func.func @transform_5(%arg0: i32, %arg1: i32) -> (i32, i32) {
    %c0_i32 = arith.constant 0 : i32
    %c0_i32_0 = arith.constant 0 : i32
    %c0_i32_1 = arith.constant 0 : i32
    return %c0_i32, %c0_i32_0 : i32, i32
  }
  func.func @transform_6(%arg0: i32, %arg1: i32) -> (i32, i32) {
    %c0_i32 = arith.constant 0 : i32
    %c0_i32_0 = arith.constant 0 : i32
    %c0_i32_1 = arith.constant 0 : i32
    return %c0_i32, %c0_i32_0 : i32, i32
  }
  func.func @transform_7(%arg0: i32, %arg1: i32) -> (i32, i32, i32) {
    %c0_i32 = arith.constant 0 : i32
    %c0_i32_0 = arith.constant 0 : i32
    return %arg0, %arg1, %c0_i32 : i32, i32, i32
  }
}

</mosaic_0001>

<llo_original>
// kernel: resblock_forward.1
$region0: #{resblock_forward.1}
  #allocation0 [shape = 'u32[]', space=smem, size = 0x4, offset = 0x4, fixed_abs, tag = 'smem constant byte address 0x4 - core index']
  #allocation1 [shape = 'u32[144,128]{1,0:T(1,128)}', space=vmem, size = 0x12000, scoped, tag = 'internal scratch']
  %s0 = inlined_call_operand.vmem [shape: f32[2,440,16], index: 0, kind: input, shape index: {}]
  %s1 = inlined_call_operand.vmem [shape: s32[362,1], index: 1, kind: input, shape index: {}]
  %s2 = inlined_call_operand.vmem [shape: bf16[144,16], index: 2, kind: input, shape index: {}]
  %s3 = inlined_call_operand.vmem [shape: f32[1,16], index: 3, kind: input, shape index: {}]
  %s4 = inlined_call_operand.vmem [shape: f32[1,16], index: 4, kind: input, shape index: {}]
  %s5 = inlined_call_operand.vmem [shape: bf16[144,16], index: 5, kind: input, shape index: {}]
  %s6 = inlined_call_operand.vmem [shape: f32[1,16], index: 6, kind: input, shape index: {}]
  %s7 = inlined_call_operand.vmem [shape: f32[2,320,16], index: 7, kind: output, shape index: {}]
  %s8 = sld [smem:[#allocation0]]
  $region61: #{resblock_forward.1} parent=0
    _
  %s10 = ssub.s32 1, %s8
  %s11 = scalar_select 0, %s10, %s8
  loop: start=0, step=1, limit=4
  $region2: #{resblock_forward.1} parent=0 // loop_pre_header
    _
  $region3: #{resblock_forward.1} parent=0 // loop_header
    %s13 = sphi 0, %s17
    %p14 = scmp.ge.s32.totalorder %s13, 4
    %s20 = sphi 0, %s32
    %s21 = sphi 0, %s28
    %s22 = sphi 0, %s20
    %s23 = sphi 0, %s21
    %s24 = sphi 0, %s22
    %s25 = sphi 0, %s23
    %s35 = sphi 0, %s37
    %s38 = sphi 0, %s35
    %s39 = sphi 0, %s38
    %s55 = sphi 0, %s39
    %s59 = sphi 0, %s59
    %s61 = sphi 0, %s59
    %s62 = sphi 0, %s61
    %s76 = sphi 0, %s62
    %s80 = sphi 0, %s80
    %s82 = sphi 0, %s80
    %s83 = sphi 0, %s82
    %s97 = sphi 0, %s83
    %s101 = sphi 0, %s101
    %s103 = sphi 0, %s101
    %s104 = sphi 0, %s103
    %s118 = sphi 0, %s104
    %s122 = sphi 0, %s122
    %s124 = sphi 0, %s122
    %s125 = sphi 0, %s124
    %s139 = sphi 0, %s125
    %s143 = sphi 0, %s143
    %s145 = sphi 0, %s143
    %s146 = sphi 0, %s145
    %s160 = sphi 0, %s146
    %s164 = sphi 0, %s164
    %s166 = sphi 0, %s164
    %s167 = sphi 0, %s166
    %s181 = sphi 0, %s167
    %s189 = sphi 0, %s191
    %s192 = sphi 0, %s189
    %s193 = sphi 0, %s192
    %s209 = sphi 0, %s193
  $region4: #{resblock_forward.1} parent=0 // loop_header_branch
    %16 = sbr.rel (%p14) target = $region8
  $region5: #{resblock_forward.1} parent=0 // loop_body
    %s18 = ssub.s32 %s13, 1
    %s19 = ssub.s32 %s13, 2
    %s26 = sadd.s32 1, %s21
    %p27 = scmp.ge.s32.totalorder %s26, 1
    %s28 = scalar_select %p27, 0, %s26
    %s29 = sadd.s32 1, %s20
    %s30 = scalar_select %p27, %s29, %s20
    %p31 = scmp.ge.s32.totalorder %s30, 2
    %s32 = scalar_select %p31, 0, %s30
    %s33 = ssub.s32 %s20, %s32
    %p34 = scmp.eq.s32.totalorder %s33, 0
    %s36 = sadd.s32 %s35, 1
    %s37 = scalar_select %p34, %s35, %s36
    %p40 = pneg %p34
    %p41 = scmp.eq.s32.totalorder %s13, 1
    %p42 = por %p40, %p41
    %p43 = scmp.ne.s32.totalorder %s35, %s38
    %p44 = scmp.eq.s32.totalorder %s13, 0
    %p45 = por %p43, %p44
    %p46 = scmp.ne.s32.totalorder %s35, %s38
    %p47 = scmp.eq.s32.totalorder %s18, 1
    %p48 = por %p46, %p47
    %p49 = scmp.ne.s32.totalorder %s38, %s39
    %p50 = scmp.eq.s32.totalorder %s18, 0
    %p51 = por %p49, %p50
    %p52 = scmp.ne.s32.totalorder %s38, %s39
    %p53 = scmp.eq.s32.totalorder %s19, 1
    %p54 = por %p52, %p53
    %p56 = scmp.ne.s32.totalorder %s39, %s55
    %p57 = scmp.eq.s32.totalorder %s19, 0
    %p58 = por %p56, %p57
    %s60 = sadd.s32 %s59, 1
    %p63 = scmp.eq.s32.totalorder %s13, 1
    %p64 = scmp.ne.s32.totalorder %s59, %s61
    %p65 = scmp.eq.s32.totalorder %s13, 0
    %p66 = por %p64, %p65
    %p67 = scmp.ne.s32.totalorder %s59, %s61
    %p68 = scmp.eq.s32.totalorder %s18, 1
    %p69 = por %p67, %p68
    %p70 = scmp.ne.s32.totalorder %s61, %s62
    %p71 = scmp.eq.s32.totalorder %s18, 0
    %p72 = por %p70, %p71
    %p73 = scmp.ne.s32.totalorder %s61, %s62
    %p74 = scmp.eq.s32.totalorder %s19, 1
    %p75 = por %p73, %p74
    %p77 = scmp.ne.s32.totalorder %s62, %s76
    %p78 = scmp.eq.s32.totalorder %s19, 0
    %p79 = por %p77, %p78
    %s81 = sadd.s32 %s80, 1
    %p84 = scmp.eq.s32.totalorder %s13, 1
    %p85 = scmp.ne.s32.totalorder %s80, %s82
    %p86 = scmp.eq.s32.totalorder %s13, 0
    %p87 = por %p85, %p86
    %p88 = scmp.ne.s32.totalorder %s80, %s82
    %p89 = scmp.eq.s32.totalorder %s18, 1
    %p90 = por %p88, %p89
    %p91 = scmp.ne.s32.totalorder %s82, %s83
    %p92 = scmp.eq.s32.totalorder %s18, 0
    %p93 = por %p91, %p92
    %p94 = scmp.ne.s32.totalorder %s82, %s83
    %p95 = scmp.eq.s32.totalorder %s19, 1
    %p96 = por %p94, %p95
    %p98 = scmp.ne.s32.totalorder %s83, %s97
    %p99 = scmp.eq.s32.totalorder %s19, 0
    %p100 = por %p98, %p99
    %s102 = sadd.s32 %s101, 1
    %p105 = scmp.eq.s32.totalorder %s13, 1
    %p106 = scmp.ne.s32.totalorder %s101, %s103
    %p107 = scmp.eq.s32.totalorder %s13, 0
    %p108 = por %p106, %p107
    %p109 = scmp.ne.s32.totalorder %s101, %s103
    %p110 = scmp.eq.s32.totalorder %s18, 1
    %p111 = por %p109, %p110
    %p112 = scmp.ne.s32.totalorder %s103, %s104
    %p113 = scmp.eq.s32.totalorder %s18, 0
    %p114 = por %p112, %p113
    %p115 = scmp.ne.s32.totalorder %s103, %s104
    %p116 = scmp.eq.s32.totalorder %s19, 1
    %p117 = por %p115, %p116
    %p119 = scmp.ne.s32.totalorder %s104, %s118
    %p120 = scmp.eq.s32.totalorder %s19, 0
    %p121 = por %p119, %p120
    %s123 = sadd.s32 %s122, 1
    %p126 = scmp.eq.s32.totalorder %s13, 1
    %p127 = scmp.ne.s32.totalorder %s122, %s124
    %p128 = scmp.eq.s32.totalorder %s13, 0
    %p129 = por %p127, %p128
    %p130 = scmp.ne.s32.totalorder %s122, %s124
    %p131 = scmp.eq.s32.totalorder %s18, 1
    %p132 = por %p130, %p131
    %p133 = scmp.ne.s32.totalorder %s124, %s125
    %p134 = scmp.eq.s32.totalorder %s18, 0
    %p135 = por %p133, %p134
    %p136 = scmp.ne.s32.totalorder %s124, %s125
    %p137 = scmp.eq.s32.totalorder %s19, 1
    %p138 = por %p136, %p137
    %p140 = scmp.ne.s32.totalorder %s125, %s139
    %p141 = scmp.eq.s32.totalorder %s19, 0
    %p142 = por %p140, %p141
    %s144 = sadd.s32 %s143, 1
    %p147 = scmp.eq.s32.totalorder %s13, 1
    %p148 = scmp.ne.s32.totalorder %s143, %s145
    %p149 = scmp.eq.s32.totalorder %s13, 0
    %p150 = por %p148, %p149
    %p151 = scmp.ne.s32.totalorder %s143, %s145
    %p152 = scmp.eq.s32.totalorder %s18, 1
    %p153 = por %p151, %p152
    %p154 = scmp.ne.s32.totalorder %s145, %s146
    %p155 = scmp.eq.s32.totalorder %s18, 0
    %p156 = por %p154, %p155
    %p157 = scmp.ne.s32.totalorder %s145, %s146
    %p158 = scmp.eq.s32.totalorder %s19, 1
    %p159 = por %p157, %p158
    %p161 = scmp.ne.s32.totalorder %s146, %s160
    %p162 = scmp.eq.s32.totalorder %s19, 0
    %p163 = por %p161, %p162
    %s165 = sadd.s32 %s164, 1
    %p168 = scmp.eq.s32.totalorder %s13, 1
    %p169 = scmp.ne.s32.totalorder %s164, %s166
    %p170 = scmp.eq.s32.totalorder %s13, 0
    %p171 = por %p169, %p170
    %p172 = scmp.ne.s32.totalorder %s164, %s166
    %p173 = scmp.eq.s32.totalorder %s18, 1
    %p174 = por %p172, %p173
    %p175 = scmp.ne.s32.totalorder %s166, %s167
    %p176 = scmp.eq.s32.totalorder %s18, 0
    %p177 = por %p175, %p176
    %p178 = scmp.ne.s32.totalorder %s166, %s167
    %p179 = scmp.eq.s32.totalorder %s19, 1
    %p180 = por %p178, %p179
    %p182 = scmp.ne.s32.totalorder %s167, %s181
    %p183 = scmp.eq.s32.totalorder %s19, 0
    %p184 = por %p182, %p183
    %s185 = ssub.s32 %s20, %s32
    %s186 = ssub.s32 %s21, %s28
    %s187 = sor.u32 %s185, %s186
    %p188 = scmp.eq.s32.totalorder %s187, 0
    %s190 = sadd.s32 %s189, 1
    %s191 = scalar_select %p188, %s189, %s190
    %p194 = pneg %p188
    %p195 = scmp.eq.s32.totalorder %s13, 1
    %p196 = por %p194, %p195
    %p197 = scmp.ne.s32.totalorder %s189, %s192
    %p198 = scmp.eq.s32.totalorder %s13, 0
    %p199 = por %p197, %p198
    %p200 = scmp.ne.s32.totalorder %s189, %s192
    %p201 = scmp.eq.s32.totalorder %s18, 1
    %p202 = por %p200, %p201
    %p203 = scmp.ne.s32.totalorder %s192, %s193
    %p204 = scmp.eq.s32.totalorder %s18, 0
    %p205 = por %p203, %p204
    %p206 = scmp.ne.s32.totalorder %s192, %s193
    %p207 = scmp.eq.s32.totalorder %s19, 1
    %p208 = por %p206, %p207
    %p210 = scmp.ne.s32.totalorder %s193, %s209
    %p211 = scmp.eq.s32.totalorder %s19, 0
    %p212 = por %p210, %p211
    %p213 = scmp.le.s32.totalorder 1, %s13
    %p214 = scmp.lt.s32.totalorder %s13, 3
    %p215 = pnand %p213, %p214
    %p216 = pneg %p215
    // Predicated region
    $region9: #{resblock_forward.1} parent=5 // pred_check
      _
    $region10: #{resblock_forward.1} parent=5 // pred_check_branch
      %218 = sbr.rel (%p215) target = $region12
    $region11: #{resblock_forward.1} parent=5 // pred_region
      %s219 = ssub.s32 %s13, 1
      // Predicated region
      $region13: #{resblock_forward.1} parent=11 // pred_check
        %p220 = pneg %p72
      $region14: #{resblock_forward.1} parent=11 // pred_check_branch
        %222 = sbr.rel (%p220) target = $region16
      $region15: #{resblock_forward.1} parent=11 // pred_region
        _
      $region16: #{resblock_forward.1} parent=11 // pred_fallthru
        _
      // Predicated region
      $region17: #{resblock_forward.1} parent=11 // pred_check
        %p223 = pneg %p93
      $region18: #{resblock_forward.1} parent=11 // pred_check_branch
        %225 = sbr.rel (%p223) target = $region20
      $region19: #{resblock_forward.1} parent=11 // pred_region
        _
      $region20: #{resblock_forward.1} parent=11 // pred_fallthru
        _
      // Predicated region
      $region21: #{resblock_forward.1} parent=11 // pred_check
        %p226 = pneg %p114
      $region22: #{resblock_forward.1} parent=11 // pred_check_branch
        %228 = sbr.rel (%p226) target = $region24
      $region23: #{resblock_forward.1} parent=11 // pred_region
        _
      $region24: #{resblock_forward.1} parent=11 // pred_fallthru
        _
      // Predicated region
      $region25: #{resblock_forward.1} parent=11 // pred_check
        %p229 = pneg %p135
      $region26: #{resblock_forward.1} parent=11 // pred_check_branch
        %231 = sbr.rel (%p229) target = $region28
      $region27: #{resblock_forward.1} parent=11 // pred_region
        _
      $region28: #{resblock_forward.1} parent=11 // pred_fallthru
        _
      // Predicated region
      $region29: #{resblock_forward.1} parent=11 // pred_check
        %p232 = pneg %p156
      $region30: #{resblock_forward.1} parent=11 // pred_check_branch
        %234 = sbr.rel (%p232) target = $region32
      $region31: #{resblock_forward.1} parent=11 // pred_region
        _
      $region32: #{resblock_forward.1} parent=11 // pred_fallthru
        _
      // Predicated region
      $region33: #{resblock_forward.1} parent=11 // pred_check
        %p235 = pneg %p177
      $region34: #{resblock_forward.1} parent=11 // pred_check_branch
        %237 = sbr.rel (%p235) target = $region36
      $region35: #{resblock_forward.1} parent=11 // pred_region
        _
      $region36: #{resblock_forward.1} parent=11 // pred_fallthru
        _
    $region12: #{resblock_forward.1} parent=5 // pred_fallthru
      _
    %p238 = scmp.lt.s32.totalorder %s13, 2
    // Predicated region
    $region37: #{resblock_forward.1} parent=5 // pred_check
      %p239 = pneg %p238
    $region38: #{resblock_forward.1} parent=5 // pred_check_branch
      %241 = sbr.rel (%p239) target = $region40
    $region39: #{resblock_forward.1} parent=5 // pred_region
      // Predicated region
      $region41: #{resblock_forward.1} parent=39 // pred_check
        %p242 = pneg %p45
      $region42: #{resblock_forward.1} parent=39 // pred_check_branch
        %244 = sbr.rel (%p242) target = $region44
      $region43: #{resblock_forward.1} parent=39 // pred_region
        %p245 = scmp.lt.s32.totalorder %s20, 1
        %s246 = scalar_select %p245, %s20, 1
        %s247 = smul.addr %s246, 55
        %s248 = smul.addr %s247, 8
        %s249 = scalar_lea.vmem %s0, %s248
      $region44: #{resblock_forward.1} parent=39 // pred_fallthru
        _
    $region40: #{resblock_forward.1} parent=5 // pred_fallthru
      _
    %p250 = scmp.le.s32.totalorder 1, %s13
    %p251 = scmp.lt.s32.totalorder %s13, 3
    %p252 = pnand %p250, %p251
    %p253 = pneg %p252
    // Predicated region
    $region45: #{resblock_forward.1} parent=5 // pred_check
      _
    $region46: #{resblock_forward.1} parent=5 // pred_check_branch
      %255 = sbr.rel (%p252) target = $region48
    $region47: #{resblock_forward.1} parent=5 // pred_region
      %s256 = ssub.s32 %s13, 1
      %p257 = scmp.lt.s32.totalorder %s22, 1
      %s258 = scalar_select %p257, %s22, 1
      %s259 = smul.addr %s258, 55
      %s260 = smul.addr %s259, 8
      %s261 = scalar_lea.vmem %s0, %s260
      %p262 = pneg %p51
      %p263 = pneg %p48
      %p264 = pneg %p72
      %p265 = pneg %p69
      %p266 = pneg %p93
      %p267 = pneg %p90
      %p268 = pneg %p114
      %p269 = pneg %p111
      %p270 = pneg %p135
      %p271 = pneg %p132
      %p272 = pneg %p156
      %p273 = pneg %p153
      %p274 = pneg %p177
      %p275 = pneg %p174
      %p276 = pneg %p205
      %p277 = pneg %p202
      %s278 = smul.u32 40, %s23
      %p279 = scmp.lt.s32.totalorder %s22, 1
      %s280 = scalar_select %p279, %s22, 1
      %p281 = scmp.lt.s32.totalorder %s278, 39
      %s282 = scalar_select %p281, %s278, 39
      %s283 = smul.addr %s280, 40
      %s284 = sadd.s32 %s282, %s283
      %s285 = smul.addr %s284, 8
      %s286 = scalar_lea.vmem %s7, %s285
      %p287 = scmp.lt.s32.totalorder %s22, 1
      %s288 = scalar_select %p287, %s22, 1
      %s289 = smul.addr %s288, 55
      %s290 = smul.addr %s289, 8
      %s291 = scalar_lea.vmem %s0, %s290
      %s292 = smul.u32 40, %s23
      %p293 = scmp.lt.s32.totalorder %s22, 1
      %s294 = scalar_select %p293, %s22, 1
      %p295 = scmp.lt.s32.totalorder %s292, 39
      %s296 = scalar_select %p295, %s292, 39
      %s297 = smul.addr %s294, 40
      %s298 = sadd.s32 %s296, %s297
      %s299 = smul.addr %s298, 8
      %s300 = scalar_lea.vmem %s7, %s299
      %s301 = smul.u32 40, %s23
      %s303 = smul.u32 %s23, 16
      %s304 = sadd.s32 %s303, 3
      %s305 = smul.u32 %s304, 20
      %s306 = ssub.s32 %s305, 42
      %s307 = scalar_lea.vmem %s291, %s306
      %v308 = vld [vmem:[%s307] sm:$0xff]
      %v309 = vld [vmem:[%s307 + $0x8] sm:$0xff]
      %v310 = vld [vmem:[%s307 + $0x10] sm:$0xff]
      %v311 = vld [vmem:[%s307 + $0x18] sm:$0xff]
      %v312 = vld [vmem:[%s307 + $0x20] sm:$0xff]
      %v313 = vld [vmem:[%s307 + $0x28] sm:$0xff]
      %v314 = vld [vmem:[%s307 + $0x30] sm:$0xff]
      %v315 = vld [vmem:[%s307 + $0x38] sm:$0xff]
      %v316 = vld [vmem:[%s307 + $0x40] sm:$0xff]
      %v317 = vld [vmem:[%s307 + $0x48] sm:$0xff]
      %v318 = vld [vmem:[%s307 + $0x50] sm:$0xff]
      %v319 = vld [vmem:[%s307 + $0x58] sm:$0xff]
      %v320 = vld [vmem:[%s307 + $0x60] sm:$0xff]
      %v321 = vld [vmem:[%s307 + $0x68] sm:$0xff]
      %v322 = vld [vmem:[%s307 + $0x70] sm:$0xff]
      %v323 = vld [vmem:[%s307 + $0x78] sm:$0xff]
      %v324 = vld [vmem:[%s307 + $0x80] sm:$0xff]
      %v325 = vld [vmem:[%s307 + $0x88] sm:$0xff]
      %v326 = vld [vmem:[%s307 + $0x90] sm:$0xff]
      %v327 = vld [vmem:[%s307 + $0x98] sm:$0xff]
      %v328 = vld [vmem:[%s307 + $0xa0] sm:$0xff]
      %v329 = vld [vmem:[%s307 + $0xa8] sm:$0xff]
      %v330 = vld [vmem:[%s307 + $0xb0] sm:$0xff]
      %v331 = vld [vmem:[%s307 + $0xb8] sm:$0xff]
      %v332 = vld [vmem:[%s307 + $0xc0] sm:$0xff]
      %v333 = vld [vmem:[%s307 + $0xc8] sm:$0xff]
      %v334 = vld [vmem:[%s307 + $0xd0] sm:$0xff]
      %v335 = vld [vmem:[%s307 + $0xd8] sm:$0xff]
      %v336 = vld [vmem:[%s307 + $0xe0] sm:$0xff]
      %v337 = vld [vmem:[%s307 + $0xe8] sm:$0xff]
      %v338 = vld [vmem:[%s307 + $0xf0] sm:$0xff]
      %v339 = vld [vmem:[%s307 + $0xf8] sm:$0xff]
      %v340 = vld [vmem:[%s307 + $0x100] sm:$0xff]
      %v341 = vld [vmem:[%s307 + $0x108] sm:$0xff]
      %v342 = vld [vmem:[%s307 + $0x110] sm:$0xff]
      %v343 = vld [vmem:[%s307 + $0x118] sm:$0xff]
      %v344 = vld [vmem:[%s307 + $0x120] sm:$0xff]
      %v345 = vld [vmem:[%s307 + $0x128] sm:$0xff]
      %v346 = vld [vmem:[%s307 + $0x130] sm:$0xff]
      %v347 = vld [vmem:[%s307 + $0x138] sm:$0xff]
      %v348 = vld [vmem:[%s307 + $0x140] sm:$0xff]
      %v349 = vld [vmem:[%s307 + $0x148] sm:$0xff]
      %v350 = vld [vmem:[%s307 + $0x150] sm:$0xff]
      %v351 = vld [vmem:[%s307 + $0x158] sm:$0xff]
      %v352 = vld [vmem:[%s307 + $0x160] sm:$0xff]
      %v353 = vld [vmem:[%s307 + $0x168] sm:$0xff]
      %v354 = vld [vmem:[%s307 + $0x170] sm:$0xff]
      %v355 = vld [vmem:[%s307 + $0x178] sm:$0xff]
      %v356 = vld [vmem:[%s307 + $0x180] sm:$0xff]
      %v357 = vld [vmem:[%s307 + $0x188] sm:$0xff]
      %v358 = vld [vmem:[%s307 + $0x190] sm:$0xf]
      %v359 = vpack.c.bf16 %v309, %v308
      %v360 = vpack.c.bf16 %v311, %v310
      %v361 = vpack.c.bf16 %v313, %v312
      %v362 = vpack.c.bf16 %v315, %v314
      %v363 = vpack.c.bf16 %v317, %v316
      %v364 = vpack.c.bf16 %v319, %v318
      %v365 = vpack.c.bf16 %v321, %v320
      %v366 = vpack.c.bf16 %v323, %v322
      %v367 = vpack.c.bf16 %v325, %v324
      %v368 = vpack.c.bf16 %v327, %v326
      %v369 = vpack.c.bf16 %v329, %v328
      %v370 = vpack.c.bf16 %v331, %v330
      %v371 = vpack.c.bf16 %v333, %v332
      %v372 = vpack.c.bf16 %v335, %v334
      %v373 = vpack.c.bf16 %v337, %v336
      %v374 = vpack.c.bf16 %v339, %v338
      %v375 = vpack.c.bf16 %v341, %v340
      %v376 = vpack.c.bf16 %v343, %v342
      %v377 = vpack.c.bf16 %v345, %v344
      %v378 = vpack.c.bf16 %v347, %v346
      %v379 = vpack.c.bf16 %v349, %v348
      %v380 = vpack.c.bf16 %v351, %v350
      %v381 = vpack.c.bf16 %v353, %v352
      %v382 = vpack.c.bf16 %v355, %v354
      %v383 = vpack.c.bf16 %v357, %v356
      %v384 = vpack.c.bf16 %v358, %v358
      %vm385 = vsmask.f32 7424
      %v387 = vshrl.u32 %v359, 16
      %v389 = vshll.u32 %v359, 16
      %v391 = vrot.slane %v389, 1
      %v392 = vor.u32 %v387, %v391
      %v394 = vshll.u32 %v360, 16
      %v396 = vrot.slane %v394, 1
      %v397 = vsel %vm385, %v392, %v396
      %v398 = vshrl.u32 %v360, 16
      %v400 = vor.u32 %v398, %v396
      %v402 = vshll.u32 %v361, 16
      %v404 = vrot.slane %v402, 1
      %v405 = vsel %vm385, %v400, %v404
      %v406 = vshrl.u32 %v361, 16
      %v408 = vor.u32 %v406, %v404
      %v410 = vshll.u32 %v362, 16
      %v412 = vrot.slane %v410, 1
      %v413 = vsel %vm385, %v408, %v412
      %v414 = vshrl.u32 %v362, 16
      %v416 = vor.u32 %v414, %v412
      %v418 = vshll.u32 %v363, 16
      %v420 = vrot.slane %v418, 1
      %v421 = vsel %vm385, %v416, %v420
      %v422 = vshrl.u32 %v363, 16
      %v424 = vor.u32 %v422, %v420
      %v426 = vshll.u32 %v364, 16
      %v428 = vrot.slane %v426, 1
      %v429 = vsel %vm385, %v424, %v428
      %v430 = vshrl.u32 %v364, 16
      %v432 = vor.u32 %v430, %v428
      %v434 = vshll.u32 %v365, 16
      %v436 = vrot.slane %v434, 1
      %v437 = vsel %vm385, %v432, %v436
      %v438 = vshrl.u32 %v365, 16
      %v440 = vor.u32 %v438, %v436
      %v442 = vshll.u32 %v366, 16
      %v444 = vrot.slane %v442, 1
      %v445 = vsel %vm385, %v440, %v444
      %v446 = vshrl.u32 %v366, 16
      %v448 = vor.u32 %v446, %v444
      %v450 = vshll.u32 %v367, 16
      %v452 = vrot.slane %v450, 1
      %v453 = vsel %vm385, %v448, %v452
      %v454 = vshrl.u32 %v367, 16
      %v456 = vor.u32 %v454, %v452
      %v458 = vshll.u32 %v368, 16
      %v460 = vrot.slane %v458, 1
      %v461 = vsel %vm385, %v456, %v460
      %v462 = vshrl.u32 %v368, 16
      %v464 = vor.u32 %v462, %v460
      %v466 = vshll.u32 %v369, 16
      %v468 = vrot.slane %v466, 1
      %v469 = vsel %vm385, %v464, %v468
      %v470 = vshrl.u32 %v369, 16
      %v472 = vor.u32 %v470, %v468
      %v474 = vshll.u32 %v370, 16
      %v476 = vrot.slane %v474, 1
      %v477 = vsel %vm385, %v472, %v476
      %v478 = vshrl.u32 %v370, 16
      %v480 = vor.u32 %v478, %v476
      %v482 = vshll.u32 %v371, 16
      %v484 = vrot.slane %v482, 1
      %v485 = vsel %vm385, %v480, %v484
      %v486 = vshrl.u32 %v371, 16
      %v488 = vor.u32 %v486, %v484
      %v490 = vshll.u32 %v372, 16
      %v492 = vrot.slane %v490, 1
      %v493 = vsel %vm385, %v488, %v492
      %v494 = vshrl.u32 %v372, 16
      %v496 = vor.u32 %v494, %v492
      %v498 = vshll.u32 %v373, 16
      %v500 = vrot.slane %v498, 1
      %v501 = vsel %vm385, %v496, %v500
      %v502 = vshrl.u32 %v373, 16
      %v504 = vor.u32 %v502, %v500
      %v506 = vshll.u32 %v374, 16
      %v508 = vrot.slane %v506, 1
      %v509 = vsel %vm385, %v504, %v508
      %v510 = vshrl.u32 %v374, 16
      %v512 = vor.u32 %v510, %v508
      %v514 = vshll.u32 %v375, 16
      %v516 = vrot.slane %v514, 1
      %v517 = vsel %vm385, %v512, %v516
      %v518 = vshrl.u32 %v375, 16
      %v520 = vor.u32 %v518, %v516
      %v522 = vshll.u32 %v376, 16
      %v524 = vrot.slane %v522, 1
      %v525 = vsel %vm385, %v520, %v524
      %v526 = vshrl.u32 %v376, 16
      %v528 = vor.u32 %v526, %v524
      %v530 = vshll.u32 %v377, 16
      %v532 = vrot.slane %v530, 1
      %v533 = vsel %vm385, %v528, %v532
      %v534 = vshrl.u32 %v377, 16
      %v536 = vor.u32 %v534, %v532
      %v538 = vshll.u32 %v378, 16
      %v540 = vrot.slane %v538, 1
      %v541 = vsel %vm385, %v536, %v540
      %v542 = vshrl.u32 %v378, 16
      %v544 = vor.u32 %v542, %v540
      %v546 = vshll.u32 %v379, 16
      %v548 = vrot.slane %v546, 1
      %v549 = vsel %vm385, %v544, %v548
      %v550 = vshrl.u32 %v379, 16
      %v552 = vor.u32 %v550, %v548
      %v554 = vshll.u32 %v380, 16
      %v556 = vrot.slane %v554, 1
      %v557 = vsel %vm385, %v552, %v556
      %v558 = vshrl.u32 %v380, 16
      %v560 = vor.u32 %v558, %v556
      %v562 = vshll.u32 %v381, 16
      %v564 = vrot.slane %v562, 1
      %v565 = vsel %vm385, %v560, %v564
      %v566 = vshrl.u32 %v381, 16
      %v568 = vor.u32 %v566, %v564
      %569 = vrot.lane.b32.xlu0 %v397, 16
      %v570 = vpop.permute.xlu0 %569
      %571 = vrot.lane.b32.xlu0 %v405, 16
      %v572 = vpop.permute.xlu0 %571
      %573 = vrot.lane.b32.xlu0 %v413, 16
      %v574 = vpop.permute.xlu0 %573
      %575 = vrot.lane.b32.xlu0 %v421, 16
      %v576 = vpop.permute.xlu0 %575
      %577 = vrot.lane.b32.xlu0 %v429, 16
      %v578 = vpop.permute.xlu0 %577
      %579 = vrot.lane.b32.xlu0 %v437, 16
      %v580 = vpop.permute.xlu0 %579
      %581 = vrot.lane.b32.xlu0 %v445, 16
      %v582 = vpop.permute.xlu0 %581
      %583 = vrot.lane.b32.xlu0 %v453, 16
      %v584 = vpop.permute.xlu0 %583
      %585 = vrot.lane.b32.xlu0 %v461, 16
      %v586 = vpop.permute.xlu0 %585
      %587 = vrot.lane.b32.xlu0 %v469, 16
      %v588 = vpop.permute.xlu0 %587
      %589 = vrot.lane.b32.xlu0 %v477, 16
      %v590 = vpop.permute.xlu0 %589
      %591 = vrot.lane.b32.xlu0 %v485, 16
      %v592 = vpop.permute.xlu0 %591
      %593 = vrot.lane.b32.xlu0 %v493, 16
      %v594 = vpop.permute.xlu0 %593
      %595 = vrot.lane.b32.xlu0 %v501, 16
      %v596 = vpop.permute.xlu0 %595
      %597 = vrot.lane.b32.xlu0 %v509, 16
      %v598 = vpop.permute.xlu0 %597
      %599 = vrot.lane.b32.xlu0 %v517, 16
      %v600 = vpop.permute.xlu0 %599
      %601 = vrot.lane.b32.xlu0 %v525, 16
      %v602 = vpop.permute.xlu0 %601
      %603 = vrot.lane.b32.xlu0 %v533, 16
      %v604 = vpop.permute.xlu0 %603
      %605 = vrot.lane.b32.xlu0 %v541, 16
      %v606 = vpop.permute.xlu0 %605
      %607 = vrot.lane.b32.xlu0 %v549, 16
      %v608 = vpop.permute.xlu0 %607
      %609 = vrot.lane.b32.xlu0 %v557, 16
      %v610 = vpop.permute.xlu0 %609
      %611 = vrot.lane.b32.xlu0 %v565, 16
      %v612 = vpop.permute.xlu0 %611
      %613 = vrot.lane.b32.xlu0 %v568, 16
      %v614 = vpop.permute.xlu0 %613
      %vm638 = vcmask 1046528
      %v639 = vrot.slane %v359, 1
      %v640 = vrot.slane %v360, 1
      %v641 = vsel %vm638, %v639, %v640
      %v642 = vrot.slane %v361, 1
      %v643 = vsel %vm638, %v640, %v642
      %v644 = vrot.slane %v362, 1
      %v645 = vsel %vm638, %v642, %v644
      %v646 = vrot.slane %v363, 1
      %v647 = vsel %vm638, %v644, %v646
      %v648 = vrot.slane %v364, 1
      %v649 = vsel %vm638, %v646, %v648
      %v650 = vrot.slane %v365, 1
      %v651 = vsel %vm638, %v648, %v650
      %v652 = vrot.slane %v366, 1
      %v653 = vsel %vm638, %v650, %v652
      %v654 = vrot.slane %v367, 1
      %v655 = vsel %vm638, %v652, %v654
      %v656 = vrot.slane %v368, 1
      %v657 = vsel %vm638, %v654, %v656
      %v658 = vrot.slane %v369, 1
      %v659 = vsel %vm638, %v656, %v658
      %v660 = vrot.slane %v370, 1
      %v661 = vsel %vm638, %v658, %v660
      %v662 = vrot.slane %v371, 1
      %v663 = vsel %vm638, %v660, %v662
      %v664 = vrot.slane %v372, 1
      %v665 = vsel %vm638, %v662, %v664
      %v666 = vrot.slane %v373, 1
      %v667 = vsel %vm638, %v664, %v666
      %v668 = vrot.slane %v374, 1
      %v669 = vsel %vm638, %v666, %v668
      %v670 = vrot.slane %v375, 1
      %v671 = vsel %vm638, %v668, %v670
      %v672 = vrot.slane %v376, 1
      %v673 = vsel %vm638, %v670, %v672
      %v674 = vrot.slane %v377, 1
      %v675 = vsel %vm638, %v672, %v674
      %v676 = vrot.slane %v378, 1
      %v677 = vsel %vm638, %v674, %v676
      %v678 = vrot.slane %v379, 1
      %v679 = vsel %vm638, %v676, %v678
      %v680 = vrot.slane %v380, 1
      %v681 = vsel %vm638, %v678, %v680
      %v682 = vrot.slane %v381, 1
      %v683 = vsel %vm638, %v680, %v682
      %684 = vrot.lane.b32.xlu0 %v641, 32
      %v685 = vpop.permute.xlu0 %684
      %686 = vrot.lane.b32.xlu0 %v643, 32
      %v687 = vpop.permute.xlu0 %686
      %688 = vrot.lane.b32.xlu0 %v645, 32
      %v689 = vpop.permute.xlu0 %688
      %690 = vrot.lane.b32.xlu0 %v647, 32
      %v691 = vpop.permute.xlu0 %690
      %692 = vrot.lane.b32.xlu0 %v649, 32
      %v693 = vpop.permute.xlu0 %692
      %694 = vrot.lane.b32.xlu0 %v651, 32
      %v695 = vpop.permute.xlu0 %694
      %696 = vrot.lane.b32.xlu0 %v653, 32
      %v697 = vpop.permute.xlu0 %696
      %698 = vrot.lane.b32.xlu0 %v655, 32
      %v699 = vpop.permute.xlu0 %698
      %700 = vrot.lane.b32.xlu0 %v657, 32
      %v701 = vpop.permute.xlu0 %700
      %702 = vrot.lane.b32.xlu0 %v659, 32
      %v703 = vpop.permute.xlu0 %702
      %704 = vrot.lane.b32.xlu0 %v661, 32
      %v705 = vpop.permute.xlu0 %704
      %706 = vrot.lane.b32.xlu0 %v663, 32
      %v707 = vpop.permute.xlu0 %706
      %708 = vrot.lane.b32.xlu0 %v665, 32
      %v709 = vpop.permute.xlu0 %708
      %710 = vrot.lane.b32.xlu0 %v667, 32
      %v711 = vpop.permute.xlu0 %710
      %712 = vrot.lane.b32.xlu0 %v669, 32
      %v713 = vpop.permute.xlu0 %712
      %714 = vrot.lane.b32.xlu0 %v671, 32
      %v715 = vpop.permute.xlu0 %714
      %716 = vrot.lane.b32.xlu0 %v673, 32
      %v717 = vpop.permute.xlu0 %716
      %718 = vrot.lane.b32.xlu0 %v675, 32
      %v719 = vpop.permute.xlu0 %718
      %720 = vrot.lane.b32.xlu0 %v677, 32
      %v721 = vpop.permute.xlu0 %720
      %722 = vrot.lane.b32.xlu0 %v679, 32
      %v723 = vpop.permute.xlu0 %722
      %724 = vrot.lane.b32.xlu0 %v681, 32
      %v725 = vpop.permute.xlu0 %724
      %726 = vrot.lane.b32.xlu0 %v683, 32
      %v727 = vpop.permute.xlu0 %726
      %728 = vrot.lane.b32.xlu0 %v682, 32
      %v729 = vpop.permute.xlu0 %728
      %vm731 = vcmask 1045504
      %v732 = vrot.slane %v360, 2
      %v733 = vrot.slane %v361, 2
      %v734 = vsel %vm731, %v732, %v733
      %v735 = vrot.slane %v362, 2
      %v736 = vsel %vm731, %v733, %v735
      %v737 = vrot.slane %v363, 2
      %v738 = vsel %vm731, %v735, %v737
      %v739 = vrot.slane %v364, 2
      %v740 = vsel %vm731, %v737, %v739
      %v741 = vrot.slane %v365, 2
      %v742 = vsel %vm731, %v739, %v741
      %v743 = vrot.slane %v366, 2
      %v744 = vsel %vm731, %v741, %v743
      %v745 = vrot.slane %v367, 2
      %v746 = vsel %vm731, %v743, %v745
      %v747 = vrot.slane %v368, 2
      %v748 = vsel %vm731, %v745, %v747
      %v749 = vrot.slane %v369, 2
      %v750 = vsel %vm731, %v747, %v749
      %v751 = vrot.slane %v370, 2
      %v752 = vsel %vm731, %v749, %v751
      %v753 = vrot.slane %v371, 2
      %v754 = vsel %vm731, %v751, %v753
      %v755 = vrot.slane %v372, 2
      %v756 = vsel %vm731, %v753, %v755
      %v757 = vrot.slane %v373, 2
      %v758 = vsel %vm731, %v755, %v757
      %v759 = vrot.slane %v374, 2
      %v760 = vsel %vm731, %v757, %v759
      %v761 = vrot.slane %v375, 2
      %v762 = vsel %vm731, %v759, %v761
      %v763 = vrot.slane %v376, 2
      %v764 = vsel %vm731, %v761, %v763
      %v765 = vrot.slane %v377, 2
      %v766 = vsel %vm731, %v763, %v765
      %v767 = vrot.slane %v378, 2
      %v768 = vsel %vm731, %v765, %v767
      %v769 = vrot.slane %v379, 2
      %v770 = vsel %vm731, %v767, %v769
      %v771 = vrot.slane %v380, 2
      %v772 = vsel %vm731, %v769, %v771
      %v773 = vrot.slane %v381, 2
      %v774 = vsel %vm731, %v771, %v773
      %v775 = vrot.slane %v382, 2
      %v776 = vsel %vm731, %v773, %v775
      %777 = vrot.lane.b32.xlu0 %v734, 48
      %v778 = vpop.permute.xlu0 %777
      %779 = vrot.lane.b32.xlu0 %v736, 48
      %v780 = vpop.permute.xlu0 %779
      %781 = vrot.lane.b32.xlu0 %v738, 48
      %v782 = vpop.permute.xlu0 %781
      %783 = vrot.lane.b32.xlu0 %v740, 48
      %v784 = vpop.permute.xlu0 %783
      %785 = vrot.lane.b32.xlu0 %v742, 48
      %v786 = vpop.permute.xlu0 %785
      %787 = vrot.lane.b32.xlu0 %v744, 48
      %v788 = vpop.permute.xlu0 %787
      %789 = vrot.lane.b32.xlu0 %v746, 48
      %v790 = vpop.permute.xlu0 %789
      %791 = vrot.lane.b32.xlu0 %v748, 48
      %v792 = vpop.permute.xlu0 %791
      %793 = vrot.lane.b32.xlu0 %v750, 48
      %v794 = vpop.permute.xlu0 %793
      %795 = vrot.lane.b32.xlu0 %v752, 48
      %v796 = vpop.permute.xlu0 %795
      %797 = vrot.lane.b32.xlu0 %v754, 48
      %v798 = vpop.permute.xlu0 %797
      %799 = vrot.lane.b32.xlu0 %v756, 48
      %v800 = vpop.permute.xlu0 %799
      %801 = vrot.lane.b32.xlu0 %v758, 48
      %v802 = vpop.permute.xlu0 %801
      %803 = vrot.lane.b32.xlu0 %v760, 48
      %v804 = vpop.permute.xlu0 %803
      %805 = vrot.lane.b32.xlu0 %v762, 48
      %v806 = vpop.permute.xlu0 %805
      %807 = vrot.lane.b32.xlu0 %v764, 48
      %v808 = vpop.permute.xlu0 %807
      %809 = vrot.lane.b32.xlu0 %v766, 48
      %v810 = vpop.permute.xlu0 %809
      %811 = vrot.lane.b32.xlu0 %v768, 48
      %v812 = vpop.permute.xlu0 %811
      %813 = vrot.lane.b32.xlu0 %v770, 48
      %v814 = vpop.permute.xlu0 %813
      %815 = vrot.lane.b32.xlu0 %v772, 48
      %v816 = vpop.permute.xlu0 %815
      %817 = vrot.lane.b32.xlu0 %v774, 48
      %v818 = vpop.permute.xlu0 %817
      %819 = vrot.lane.b32.xlu0 %v776, 48
      %v820 = vpop.permute.xlu0 %819
      %821 = vrot.lane.b32.xlu0 %v775, 48
      %v822 = vpop.permute.xlu0 %821
      %vm823 = vsmask.f32 5376
      %v824 = vrot.slane %v398, 2
      %v825 = vrot.slane %v394, 3
      %v826 = vor.u32 %v824, %v825
      %v827 = vrot.slane %v406, 2
      %v828 = vrot.slane %v402, 3
      %v829 = vor.u32 %v827, %v828
      %v830 = vsel %vm823, %v826, %v829
      %v831 = vrot.slane %v414, 2
      %v832 = vrot.slane %v410, 3
      %v833 = vor.u32 %v831, %v832
      %v834 = vsel %vm823, %v829, %v833
      %v835 = vrot.slane %v422, 2
      %v836 = vrot.slane %v418, 3
      %v837 = vor.u32 %v835, %v836
      %v838 = vsel %vm823, %v833, %v837
      %v839 = vrot.slane %v430, 2
      %v840 = vrot.slane %v426, 3
      %v841 = vor.u32 %v839, %v840
      %v842 = vsel %vm823, %v837, %v841
      %v843 = vrot.slane %v438, 2
      %v844 = vrot.slane %v434, 3
      %v845 = vor.u32 %v843, %v844
      %v846 = vsel %vm823, %v841, %v845
      %v847 = vrot.slane %v446, 2
      %v848 = vrot.slane %v442, 3
      %v849 = vor.u32 %v847, %v848
      %v850 = vsel %vm823, %v845, %v849
      %v851 = vrot.slane %v454, 2
      %v852 = vrot.slane %v450, 3
      %v853 = vor.u32 %v851, %v852
      %v854 = vsel %vm823, %v849, %v853
      %v855 = vrot.slane %v462, 2
      %v856 = vrot.slane %v458, 3
      %v857 = vor.u32 %v855, %v856
      %v858 = vsel %vm823, %v853, %v857
      %v859 = vrot.slane %v470, 2
      %v860 = vrot.slane %v466, 3
      %v861 = vor.u32 %v859, %v860
      %v862 = vsel %vm823, %v857, %v861
      %v863 = vrot.slane %v478, 2
      %v864 = vrot.slane %v474, 3
      %v865 = vor.u32 %v863, %v864
      %v866 = vsel %vm823, %v861, %v865
      %v867 = vrot.slane %v486, 2
      %v868 = vrot.slane %v482, 3
      %v869 = vor.u32 %v867, %v868
      %v870 = vsel %vm823, %v865, %v869
      %v871 = vrot.slane %v494, 2
      %v872 = vrot.slane %v490, 3
      %v873 = vor.u32 %v871, %v872
      %v874 = vsel %vm823, %v869, %v873
      %v875 = vrot.slane %v502, 2
      %v876 = vrot.slane %v498, 3
      %v877 = vor.u32 %v875, %v876
      %v878 = vsel %vm823, %v873, %v877
      %v879 = vrot.slane %v510, 2
      %v880 = vrot.slane %v506, 3
      %v881 = vor.u32 %v879, %v880
      %v882 = vsel %vm823, %v877, %v881
      %v883 = vrot.slane %v518, 2
      %v884 = vrot.slane %v514, 3
      %v885 = vor.u32 %v883, %v884
      %v886 = vsel %vm823, %v881, %v885
      %v887 = vrot.slane %v526, 2
      %v888 = vrot.slane %v522, 3
      %v889 = vor.u32 %v887, %v888
      %v890 = vsel %vm823, %v885, %v889
      %v891 = vrot.slane %v534, 2
      %v892 = vrot.slane %v530, 3
      %v893 = vor.u32 %v891, %v892
      %v894 = vsel %vm823, %v889, %v893
      %v895 = vrot.slane %v542, 2
      %v896 = vrot.slane %v538, 3
      %v897 = vor.u32 %v895, %v896
      %v898 = vsel %vm823, %v893, %v897
      %v899 = vrot.slane %v550, 2
      %v900 = vrot.slane %v546, 3
      %v901 = vor.u32 %v899, %v900
      %v902 = vsel %vm823, %v897, %v901
      %v903 = vrot.slane %v558, 2
      %v904 = vrot.slane %v554, 3
      %v905 = vor.u32 %v903, %v904
      %v906 = vsel %vm823, %v901, %v905
      %v907 = vrot.slane %v566, 2
      %v908 = vrot.slane %v562, 3
      %v909 = vor.u32 %v907, %v908
      %v910 = vsel %vm823, %v905, %v909
      %v912 = vshrl.u32 %v382, 16
      %v914 = vrot.slane %v912, 2
      %v915 = vshll.u32 %v382, 16
      %v917 = vrot.slane %v915, 3
      %v918 = vor.u32 %v914, %v917
      %v919 = vsel %vm823, %v909, %v918
      %920 = vrot.lane.b32.xlu0 %v830, 64
      %v921 = vpop.permute.xlu0 %920
      %922 = vrot.lane.b32.xlu0 %v834, 64
      %v923 = vpop.permute.xlu0 %922
      %924 = vrot.lane.b32.xlu0 %v838, 64
      %v925 = vpop.permute.xlu0 %924
      %926 = vrot.lane.b32.xlu0 %v842, 64
      %v927 = vpop.permute.xlu0 %926
      %928 = vrot.lane.b32.xlu0 %v846, 64
      %v929 = vpop.permute.xlu0 %928
      %930 = vrot.lane.b32.xlu0 %v850, 64
      %v931 = vpop.permute.xlu0 %930
      %932 = vrot.lane.b32.xlu0 %v854, 64
      %v933 = vpop.permute.xlu0 %932
      %934 = vrot.lane.b32.xlu0 %v858, 64
      %v935 = vpop.permute.xlu0 %934
      %936 = vrot.lane.b32.xlu0 %v862, 64
      %v937 = vpop.permute.xlu0 %936
      %938 = vrot.lane.b32.xlu0 %v866, 64
      %v939 = vpop.permute.xlu0 %938
      %940 = vrot.lane.b32.xlu0 %v870, 64
      %v941 = vpop.permute.xlu0 %940
      %942 = vrot.lane.b32.xlu0 %v874, 64
      %v943 = vpop.permute.xlu0 %942
      %944 = vrot.lane.b32.xlu0 %v878, 64
      %v945 = vpop.permute.xlu0 %944
      %946 = vrot.lane.b32.xlu0 %v882, 64
      %v947 = vpop.permute.xlu0 %946
      %948 = vrot.lane.b32.xlu0 %v886, 64
      %v949 = vpop.permute.xlu0 %948
      %950 = vrot.lane.b32.xlu0 %v890, 64
      %v951 = vpop.permute.xlu0 %950
      %952 = vrot.lane.b32.xlu0 %v894, 64
      %v953 = vpop.permute.xlu0 %952
      %954 = vrot.lane.b32.xlu0 %v898, 64
      %v955 = vpop.permute.xlu0 %954
      %956 = vrot.lane.b32.xlu0 %v902, 64
      %v957 = vpop.permute.xlu0 %956
      %958 = vrot.lane.b32.xlu0 %v906, 64
      %v959 = vpop.permute.xlu0 %958
      %960 = vrot.lane.b32.xlu0 %v910, 64
      %v961 = vpop.permute.xlu0 %960
      %962 = vrot.lane.b32.xlu0 %v919, 64
      %v963 = vpop.permute.xlu0 %962
      %964 = vrot.lane.b32.xlu0 %v918, 64
      %v965 = vpop.permute.xlu0 %964
      %vm966 = vcmask 1044480
      %v967 = vrot.slane %v360, 3
      %v968 = vrot.slane %v361, 3
      %v969 = vsel %vm966, %v967, %v968
      %v970 = vrot.slane %v362, 3
      %v971 = vsel %vm966, %v968, %v970
      %v972 = vrot.slane %v363, 3
      %v973 = vsel %vm966, %v970, %v972
      %v974 = vrot.slane %v364, 3
      %v975 = vsel %vm966, %v972, %v974
      %v976 = vrot.slane %v365, 3
      %v977 = vsel %vm966, %v974, %v976
      %v978 = vrot.slane %v366, 3
      %v979 = vsel %vm966, %v976, %v978
      %v980 = vrot.slane %v367, 3
      %v981 = vsel %vm966, %v978, %v980
      %v982 = vrot.slane %v368, 3
      %v983 = vsel %vm966, %v980, %v982
      %v984 = vrot.slane %v369, 3
      %v985 = vsel %vm966, %v982, %v984
      %v986 = vrot.slane %v370, 3
      %v987 = vsel %vm966, %v984, %v986
      %v988 = vrot.slane %v371, 3
      %v989 = vsel %vm966, %v986, %v988
      %v990 = vrot.slane %v372, 3
      %v991 = vsel %vm966, %v988, %v990
      %v992 = vrot.slane %v373, 3
      %v993 = vsel %vm966, %v990, %v992
      %v994 = vrot.slane %v374, 3
      %v995 = vsel %vm966, %v992, %v994
      %v996 = vrot.slane %v375, 3
      %v997 = vsel %vm966, %v994, %v996
      %v998 = vrot.slane %v376, 3
      %v999 = vsel %vm966, %v996, %v998
      %v1000 = vrot.slane %v377, 3
      %v1001 = vsel %vm966, %v998, %v1000
      %v1002 = vrot.slane %v378, 3
      %v1003 = vsel %vm966, %v1000, %v1002
      %v1004 = vrot.slane %v379, 3
      %v1005 = vsel %vm966, %v1002, %v1004
      %v1006 = vrot.slane %v380, 3
      %v1007 = vsel %vm966, %v1004, %v1006
      %v1008 = vrot.slane %v381, 3
      %v1009 = vsel %vm966, %v1006, %v1008
      %v1010 = vrot.slane %v382, 3
      %v1011 = vsel %vm966, %v1008, %v1010
      %1012 = vrot.lane.b32.xlu0 %v969, 80
      %v1013 = vpop.permute.xlu0 %1012
      %1014 = vrot.lane.b32.xlu0 %v971, 80
      %v1015 = vpop.permute.xlu0 %1014
      %1016 = vrot.lane.b32.xlu0 %v973, 80
      %v1017 = vpop.permute.xlu0 %1016
      %1018 = vrot.lane.b32.xlu0 %v975, 80
      %v1019 = vpop.permute.xlu0 %1018
      %1020 = vrot.lane.b32.xlu0 %v977, 80
      %v1021 = vpop.permute.xlu0 %1020
      %1022 = vrot.lane.b32.xlu0 %v979, 80
      %v1023 = vpop.permute.xlu0 %1022
      %1024 = vrot.lane.b32.xlu0 %v981, 80
      %v1025 = vpop.permute.xlu0 %1024
      %1026 = vrot.lane.b32.xlu0 %v983, 80
      %v1027 = vpop.permute.xlu0 %1026
      %1028 = vrot.lane.b32.xlu0 %v985, 80
      %v1029 = vpop.permute.xlu0 %1028
      %1030 = vrot.lane.b32.xlu0 %v987, 80
      %v1031 = vpop.permute.xlu0 %1030
      %1032 = vrot.lane.b32.xlu0 %v989, 80
      %v1033 = vpop.permute.xlu0 %1032
      %1034 = vrot.lane.b32.xlu0 %v991, 80
      %v1035 = vpop.permute.xlu0 %1034
      %1036 = vrot.lane.b32.xlu0 %v993, 80
      %v1037 = vpop.permute.xlu0 %1036
      %1038 = vrot.lane.b32.xlu0 %v995, 80
      %v1039 = vpop.permute.xlu0 %1038
      %1040 = vrot.lane.b32.xlu0 %v997, 80
      %v1041 = vpop.permute.xlu0 %1040
      %1042 = vrot.lane.b32.xlu0 %v999, 80
      %v1043 = vpop.permute.xlu0 %1042
      %1044 = vrot.lane.b32.xlu0 %v1001, 80
      %v1045 = vpop.permute.xlu0 %1044
      %1046 = vrot.lane.b32.xlu0 %v1003, 80
      %v1047 = vpop.permute.xlu0 %1046
      %1048 = vrot.lane.b32.xlu0 %v1005, 80
      %v1049 = vpop.permute.xlu0 %1048
      %1050 = vrot.lane.b32.xlu0 %v1007, 80
      %v1051 = vpop.permute.xlu0 %1050
      %1052 = vrot.lane.b32.xlu0 %v1009, 80
      %v1053 = vpop.permute.xlu0 %1052
      %1054 = vrot.lane.b32.xlu0 %v1011, 80
      %v1055 = vpop.permute.xlu0 %1054
      %1056 = vrot.lane.b32.xlu0 %v1010, 80
      %v1057 = vpop.permute.xlu0 %1056
      %vm1060 = vcmask 1043456
      %v1061 = vrot.slane %v361, 4
      %v1062 = vrot.slane %v362, 4
      %v1063 = vsel %vm1060, %v1061, %v1062
      %v1064 = vrot.slane %v363, 4
      %v1065 = vsel %vm1060, %v1062, %v1064
      %v1066 = vrot.slane %v364, 4
      %v1067 = vsel %vm1060, %v1064, %v1066
      %v1068 = vrot.slane %v365, 4
      %v1069 = vsel %vm1060, %v1066, %v1068
      %v1070 = vrot.slane %v366, 4
      %v1071 = vsel %vm1060, %v1068, %v1070
      %v1072 = vrot.slane %v367, 4
      %v1073 = vsel %vm1060, %v1070, %v1072
      %v1074 = vrot.slane %v368, 4
      %v1075 = vsel %vm1060, %v1072, %v1074
      %v1076 = vrot.slane %v369, 4
      %v1077 = vsel %vm1060, %v1074, %v1076
      %v1078 = vrot.slane %v370, 4
      %v1079 = vsel %vm1060, %v1076, %v1078
      %v1080 = vrot.slane %v371, 4
      %v1081 = vsel %vm1060, %v1078, %v1080
      %v1082 = vrot.slane %v372, 4
      %v1083 = vsel %vm1060, %v1080, %v1082
      %v1084 = vrot.slane %v373, 4
      %v1085 = vsel %vm1060, %v1082, %v1084
      %v1086 = vrot.slane %v374, 4
      %v1087 = vsel %vm1060, %v1084, %v1086
      %v1088 = vrot.slane %v375, 4
      %v1089 = vsel %vm1060, %v1086, %v1088
      %v1090 = vrot.slane %v376, 4
      %v1091 = vsel %vm1060, %v1088, %v1090
      %v1092 = vrot.slane %v377, 4
      %v1093 = vsel %vm1060, %v1090, %v1092
      %v1094 = vrot.slane %v378, 4
      %v1095 = vsel %vm1060, %v1092, %v1094
      %v1096 = vrot.slane %v379, 4
      %v1097 = vsel %vm1060, %v1094, %v1096
      %v1098 = vrot.slane %v380, 4
      %v1099 = vsel %vm1060, %v1096, %v1098
      %v1100 = vrot.slane %v381, 4
      %v1101 = vsel %vm1060, %v1098, %v1100
      %v1102 = vrot.slane %v382, 4
      %v1103 = vsel %vm1060, %v1100, %v1102
      %v1104 = vrot.slane %v383, 4
      %v1105 = vsel %vm1060, %v1102, %v1104
      %v1106 = vrot.slane %v384, 4
      %v1107 = vsel %vm1060, %v1104, %v1106
      %1108 = vrot.lane.b32.xlu0 %v1063, 96
      %v1109 = vpop.permute.xlu0 %1108
      %1110 = vrot.lane.b32.xlu0 %v1065, 96
      %v1111 = vpop.permute.xlu0 %1110
      %1112 = vrot.lane.b32.xlu0 %v1067, 96
      %v1113 = vpop.permute.xlu0 %1112
      %1114 = vrot.lane.b32.xlu0 %v1069, 96
      %v1115 = vpop.permute.xlu0 %1114
      %1116 = vrot.lane.b32.xlu0 %v1071, 96
      %v1117 = vpop.permute.xlu0 %1116
      %1118 = vrot.lane.b32.xlu0 %v1073, 96
      %v1119 = vpop.permute.xlu0 %1118
      %1120 = vrot.lane.b32.xlu0 %v1075, 96
      %v1121 = vpop.permute.xlu0 %1120
      %1122 = vrot.lane.b32.xlu0 %v1077, 96
      %v1123 = vpop.permute.xlu0 %1122
      %1124 = vrot.lane.b32.xlu0 %v1079, 96
      %v1125 = vpop.permute.xlu0 %1124
      %1126 = vrot.lane.b32.xlu0 %v1081, 96
      %v1127 = vpop.permute.xlu0 %1126
      %1128 = vrot.lane.b32.xlu0 %v1083, 96
      %v1129 = vpop.permute.xlu0 %1128
      %1130 = vrot.lane.b32.xlu0 %v1085, 96
      %v1131 = vpop.permute.xlu0 %1130
      %1132 = vrot.lane.b32.xlu0 %v1087, 96
      %v1133 = vpop.permute.xlu0 %1132
      %1134 = vrot.lane.b32.xlu0 %v1089, 96
      %v1135 = vpop.permute.xlu0 %1134
      %1136 = vrot.lane.b32.xlu0 %v1091, 96
      %v1137 = vpop.permute.xlu0 %1136
      %1138 = vrot.lane.b32.xlu0 %v1093, 96
      %v1139 = vpop.permute.xlu0 %1138
      %1140 = vrot.lane.b32.xlu0 %v1095, 96
      %v1141 = vpop.permute.xlu0 %1140
      %1142 = vrot.lane.b32.xlu0 %v1097, 96
      %v1143 = vpop.permute.xlu0 %1142
      %1144 = vrot.lane.b32.xlu0 %v1099, 96
      %v1145 = vpop.permute.xlu0 %1144
      %1146 = vrot.lane.b32.xlu0 %v1101, 96
      %v1147 = vpop.permute.xlu0 %1146
      %1148 = vrot.lane.b32.xlu0 %v1103, 96
      %v1149 = vpop.permute.xlu0 %1148
      %1150 = vrot.lane.b32.xlu0 %v1105, 96
      %v1151 = vpop.permute.xlu0 %1150
      %1152 = vrot.lane.b32.xlu0 %v1107, 96
      %v1153 = vpop.permute.xlu0 %1152
      %vm1154 = vsmask.f32 3328
      %v1155 = vrot.slane %v406, 4
      %v1156 = vrot.slane %v402, 5
      %v1157 = vor.u32 %v1155, %v1156
      %v1158 = vrot.slane %v414, 4
      %v1159 = vrot.slane %v410, 5
      %v1160 = vor.u32 %v1158, %v1159
      %v1161 = vsel %vm1154, %v1157, %v1160
      %v1162 = vrot.slane %v422, 4
      %v1163 = vrot.slane %v418, 5
      %v1164 = vor.u32 %v1162, %v1163
      %v1165 = vsel %vm1154, %v1160, %v1164
      %v1166 = vrot.slane %v430, 4
      %v1167 = vrot.slane %v426, 5
      %v1168 = vor.u32 %v1166, %v1167
      %v1169 = vsel %vm1154, %v1164, %v1168
      %v1170 = vrot.slane %v438, 4
      %v1171 = vrot.slane %v434, 5
      %v1172 = vor.u32 %v1170, %v1171
      %v1173 = vsel %vm1154, %v1168, %v1172
      %v1174 = vrot.slane %v446, 4
      %v1175 = vrot.slane %v442, 5
      %v1176 = vor.u32 %v1174, %v1175
      %v1177 = vsel %vm1154, %v1172, %v1176
      %v1178 = vrot.slane %v454, 4
      %v1179 = vrot.slane %v450, 5
      %v1180 = vor.u32 %v1178, %v1179
      %v1181 = vsel %vm1154, %v1176, %v1180
      %v1182 = vrot.slane %v462, 4
      %v1183 = vrot.slane %v458, 5
      %v1184 = vor.u32 %v1182, %v1183
      %v1185 = vsel %vm1154, %v1180, %v1184
      %v1186 = vrot.slane %v470, 4
      %v1187 = vrot.slane %v466, 5
      %v1188 = vor.u32 %v1186, %v1187
      %v1189 = vsel %vm1154, %v1184, %v1188
      %v1190 = vrot.slane %v478, 4
      %v1191 = vrot.slane %v474, 5
      %v1192 = vor.u32 %v1190, %v1191
      %v1193 = vsel %vm1154, %v1188, %v1192
      %v1194 = vrot.slane %v486, 4
      %v1195 = vrot.slane %v482, 5
      %v1196 = vor.u32 %v1194, %v1195
      %v1197 = vsel %vm1154, %v1192, %v1196
      %v1198 = vrot.slane %v494, 4
      %v1199 = vrot.slane %v490, 5
      %v1200 = vor.u32 %v1198, %v1199
      %v1201 = vsel %vm1154, %v1196, %v1200
      %v1202 = vrot.slane %v502, 4
      %v1203 = vrot.slane %v498, 5
      %v1204 = vor.u32 %v1202, %v1203
      %v1205 = vsel %vm1154, %v1200, %v1204
      %v1206 = vrot.slane %v510, 4
      %v1207 = vrot.slane %v506, 5
      %v1208 = vor.u32 %v1206, %v1207
      %v1209 = vsel %vm1154, %v1204, %v1208
      %v1210 = vrot.slane %v518, 4
      %v1211 = vrot.slane %v514, 5
      %v1212 = vor.u32 %v1210, %v1211
      %v1213 = vsel %vm1154, %v1208, %v1212
      %v1214 = vrot.slane %v526, 4
      %v1215 = vrot.slane %v522, 5
      %v1216 = vor.u32 %v1214, %v1215
      %v1217 = vsel %vm1154, %v1212, %v1216
      %v1218 = vrot.slane %v534, 4
      %v1219 = vrot.slane %v530, 5
      %v1220 = vor.u32 %v1218, %v1219
      %v1221 = vsel %vm1154, %v1216, %v1220
      %v1222 = vrot.slane %v542, 4
      %v1223 = vrot.slane %v538, 5
      %v1224 = vor.u32 %v1222, %v1223
      %v1225 = vsel %vm1154, %v1220, %v1224
      %v1226 = vrot.slane %v550, 4
      %v1227 = vrot.slane %v546, 5
      %v1228 = vor.u32 %v1226, %v1227
      %v1229 = vsel %vm1154, %v1224, %v1228
      %v1230 = vrot.slane %v558, 4
      %v1231 = vrot.slane %v554, 5
      %v1232 = vor.u32 %v1230, %v1231
      %v1233 = vsel %vm1154, %v1228, %v1232
      %v1234 = vrot.slane %v566, 4
      %v1235 = vrot.slane %v562, 5
      %v1236 = vor.u32 %v1234, %v1235
      %v1237 = vsel %vm1154, %v1232, %v1236
      %v1238 = vrot.slane %v912, 4
      %v1239 = vrot.slane %v915, 5
      %v1240 = vor.u32 %v1238, %v1239
      %v1241 = vsel %vm1154, %v1236, %v1240
      %v1243 = vshrl.u32 %v383, 16
      %v1245 = vrot.slane %v1243, 4
      %v1246 = vshll.u32 %v383, 16
      %v1248 = vrot.slane %v1246, 5
      %v1249 = vor.u32 %v1245, %v1248
      %v1250 = vsel %vm1154, %v1240, %v1249
      %v1252 = vshrl.u32 %v384, 16
      %v1254 = vrot.slane %v1252, 4
      %v1255 = vshll.u32 %v384, 16
      %v1257 = vrot.slane %v1255, 5
      %v1258 = vor.u32 %v1254, %v1257
      %v1259 = vsel %vm1154, %v1249, %v1258
      %1260 = vrot.lane.b32.xlu0 %v1161, 112
      %v1261 = vpop.permute.xlu0 %1260
      %1262 = vrot.lane.b32.xlu0 %v1165, 112
      %v1263 = vpop.permute.xlu0 %1262
      %1264 = vrot.lane.b32.xlu0 %v1169, 112
      %v1265 = vpop.permute.xlu0 %1264
      %1266 = vrot.lane.b32.xlu0 %v1173, 112
      %v1267 = vpop.permute.xlu0 %1266
      %1268 = vrot.lane.b32.xlu0 %v1177, 112
      %v1269 = vpop.permute.xlu0 %1268
      %1270 = vrot.lane.b32.xlu0 %v1181, 112
      %v1271 = vpop.permute.xlu0 %1270
      %1272 = vrot.lane.b32.xlu0 %v1185, 112
      %v1273 = vpop.permute.xlu0 %1272
      %1274 = vrot.lane.b32.xlu0 %v1189, 112
      %v1275 = vpop.permute.xlu0 %1274
      %1276 = vrot.lane.b32.xlu0 %v1193, 112
      %v1277 = vpop.permute.xlu0 %1276
      %1278 = vrot.lane.b32.xlu0 %v1197, 112
      %v1279 = vpop.permute.xlu0 %1278
      %1280 = vrot.lane.b32.xlu0 %v1201, 112
      %v1281 = vpop.permute.xlu0 %1280
      %1282 = vrot.lane.b32.xlu0 %v1205, 112
      %v1283 = vpop.permute.xlu0 %1282
      %1284 = vrot.lane.b32.xlu0 %v1209, 112
      %v1285 = vpop.permute.xlu0 %1284
      %1286 = vrot.lane.b32.xlu0 %v1213, 112
      %v1287 = vpop.permute.xlu0 %1286
      %1288 = vrot.lane.b32.xlu0 %v1217, 112
      %v1289 = vpop.permute.xlu0 %1288
      %1290 = vrot.lane.b32.xlu0 %v1221, 112
      %v1291 = vpop.permute.xlu0 %1290
      %1292 = vrot.lane.b32.xlu0 %v1225, 112
      %v1293 = vpop.permute.xlu0 %1292
      %1294 = vrot.lane.b32.xlu0 %v1229, 112
      %v1295 = vpop.permute.xlu0 %1294
      %1296 = vrot.lane.b32.xlu0 %v1233, 112
      %v1297 = vpop.permute.xlu0 %1296
      %1298 = vrot.lane.b32.xlu0 %v1237, 112
      %v1299 = vpop.permute.xlu0 %1298
      %1300 = vrot.lane.b32.xlu0 %v1241, 112
      %v1301 = vpop.permute.xlu0 %1300
      %1302 = vrot.lane.b32.xlu0 %v1250, 112
      %v1303 = vpop.permute.xlu0 %1302
      %1304 = vrot.lane.b32.xlu0 %v1259, 112
      %v1305 = vpop.permute.xlu0 %1304
      %vm1306 = vcmask 1042432
      %v1307 = vrot.slane %v361, 5
      %v1308 = vrot.slane %v362, 5
      %v1309 = vsel %vm1306, %v1307, %v1308
      %v1310 = vrot.slane %v363, 5
      %v1311 = vsel %vm1306, %v1308, %v1310
      %v1312 = vrot.slane %v364, 5
      %v1313 = vsel %vm1306, %v1310, %v1312
      %v1314 = vrot.slane %v365, 5
      %v1315 = vsel %vm1306, %v1312, %v1314
      %v1316 = vrot.slane %v366, 5
      %v1317 = vsel %vm1306, %v1314, %v1316
      %v1318 = vrot.slane %v367, 5
      %v1319 = vsel %vm1306, %v1316, %v1318
      %v1320 = vrot.slane %v368, 5
      %v1321 = vsel %vm1306, %v1318, %v1320
      %v1322 = vrot.slane %v369, 5
      %v1323 = vsel %vm1306, %v1320, %v1322
      %v1324 = vrot.slane %v370, 5
      %v1325 = vsel %vm1306, %v1322, %v1324
      %v1326 = vrot.slane %v371, 5
      %v1327 = vsel %vm1306, %v1324, %v1326
      %v1328 = vrot.slane %v372, 5
      %v1329 = vsel %vm1306, %v1326, %v1328
      %v1330 = vrot.slane %v373, 5
      %v1331 = vsel %vm1306, %v1328, %v1330
      %v1332 = vrot.slane %v374, 5
      %v1333 = vsel %vm1306, %v1330, %v1332
      %v1334 = vrot.slane %v375, 5
      %v1335 = vsel %vm1306, %v1332, %v1334
      %v1336 = vrot.slane %v376, 5
      %v1337 = vsel %vm1306, %v1334, %v1336
      %v1338 = vrot.slane %v377, 5
      %v1339 = vsel %vm1306, %v1336, %v1338
      %v1340 = vrot.slane %v378, 5
      %v1341 = vsel %vm1306, %v1338, %v1340
      %v1342 = vrot.slane %v379, 5
      %v1343 = vsel %vm1306, %v1340, %v1342
      %v1344 = vrot.slane %v380, 5
      %v1345 = vsel %vm1306, %v1342, %v1344
      %v1346 = vrot.slane %v381, 5
      %v1347 = vsel %vm1306, %v1344, %v1346
      %v1348 = vrot.slane %v382, 5
      %v1349 = vsel %vm1306, %v1346, %v1348
      %v1350 = vrot.slane %v383, 5
      %v1351 = vsel %vm1306, %v1348, %v1350
      %v1352 = vrot.slane %v384, 5
      %v1353 = vsel %vm1306, %v1350, %v1352
      %vm1354 = vcmask 130048
      %v1356 = vsel %vm1354, %v359, %v570
      %v1358 = vsel %vm1354, %v360, %v572
      %v1360 = vsel %vm1354, %v361, %v574
      %v1362 = vsel %vm1354, %v362, %v576
      %v1364 = vsel %vm1354, %v363, %v578
      %v1366 = vsel %vm1354, %v364, %v580
      %v1368 = vsel %vm1354, %v365, %v582
      %v1370 = vsel %vm1354, %v366, %v584
      %v1372 = vsel %vm1354, %v367, %v586
      %v1374 = vsel %vm1354, %v368, %v588
      %v1376 = vsel %vm1354, %v369, %v590
      %v1378 = vsel %vm1354, %v370, %v592
      %v1380 = vsel %vm1354, %v371, %v594
      %v1382 = vsel %vm1354, %v372, %v596
      %v1384 = vsel %vm1354, %v373, %v598
      %v1386 = vsel %vm1354, %v374, %v600
      %v1388 = vsel %vm1354, %v375, %v602
      %v1390 = vsel %vm1354, %v376, %v604
      %v1392 = vsel %vm1354, %v377, %v606
      %v1394 = vsel %vm1354, %v378, %v608
      %v1396 = vsel %vm1354, %v379, %v610
      %v1398 = vsel %vm1354, %v380, %v612
      %v1400 = vsel %vm1354, %v381, %v614
      %vm1401 = vcmask 261120
      %v1403 = vsel %vm1401, %v1356, %v685
      %v1405 = vsel %vm1401, %v1358, %v687
      %v1407 = vsel %vm1401, %v1360, %v689
      %v1409 = vsel %vm1401, %v1362, %v691
      %v1411 = vsel %vm1401, %v1364, %v693
      %v1413 = vsel %vm1401, %v1366, %v695
      %v1415 = vsel %vm1401, %v1368, %v697
      %v1417 = vsel %vm1401, %v1370, %v699
      %v1419 = vsel %vm1401, %v1372, %v701
      %v1421 = vsel %vm1401, %v1374, %v703
      %v1423 = vsel %vm1401, %v1376, %v705
      %v1425 = vsel %vm1401, %v1378, %v707
      %v1427 = vsel %vm1401, %v1380, %v709
      %v1429 = vsel %vm1401, %v1382, %v711
      %v1431 = vsel %vm1401, %v1384, %v713
      %v1433 = vsel %vm1401, %v1386, %v715
      %v1435 = vsel %vm1401, %v1388, %v717
      %v1437 = vsel %vm1401, %v1390, %v719
      %v1439 = vsel %vm1401, %v1392, %v721
      %v1441 = vsel %vm1401, %v1394, %v723
      %v1443 = vsel %vm1401, %v1396, %v725
      %v1445 = vsel %vm1401, %v1398, %v727
      %v1447 = vsel %vm1401, %v1400, %v729
      %vm1448 = vcmask 392192
      %v1450 = vsel %vm1448, %v1403, %v778
      %v1452 = vsel %vm1448, %v1405, %v780
      %v1454 = vsel %vm1448, %v1407, %v782
      %v1456 = vsel %vm1448, %v1409, %v784
      %v1458 = vsel %vm1448, %v1411, %v786
      %v1460 = vsel %vm1448, %v1413, %v788
      %v1462 = vsel %vm1448, %v1415, %v790
      %v1464 = vsel %vm1448, %v1417, %v792
      %v1466 = vsel %vm1448, %v1419, %v794
      %v1468 = vsel %vm1448, %v1421, %v796
      %v1470 = vsel %vm1448, %v1423, %v798
      %v1472 = vsel %vm1448, %v1425, %v800
      %v1474 = vsel %vm1448, %v1427, %v802
      %v1476 = vsel %vm1448, %v1429, %v804
      %v1478 = vsel %vm1448, %v1431, %v806
      %v1480 = vsel %vm1448, %v1433, %v808
      %v1482 = vsel %vm1448, %v1435, %v810
      %v1484 = vsel %vm1448, %v1437, %v812
      %v1486 = vsel %vm1448, %v1439, %v814
      %v1488 = vsel %vm1448, %v1441, %v816
      %v1490 = vsel %vm1448, %v1443, %v818
      %v1492 = vsel %vm1448, %v1445, %v820
      %v1494 = vsel %vm1448, %v1447, %v822
      %vm1495 = vcmask 523264
      %v1497 = vsel %vm1495, %v1450, %v921
      %v1499 = vsel %vm1495, %v1452, %v923
      %v1501 = vsel %vm1495, %v1454, %v925
      %v1503 = vsel %vm1495, %v1456, %v927
      %v1505 = vsel %vm1495, %v1458, %v929
      %v1507 = vsel %vm1495, %v1460, %v931
      %v1509 = vsel %vm1495, %v1462, %v933
      %v1511 = vsel %vm1495, %v1464, %v935
      %v1513 = vsel %vm1495, %v1466, %v937
      %v1515 = vsel %vm1495, %v1468, %v939
      %v1517 = vsel %vm1495, %v1470, %v941
      %v1519 = vsel %vm1495, %v1472, %v943
      %v1521 = vsel %vm1495, %v1474, %v945
      %v1523 = vsel %vm1495, %v1476, %v947
      %v1525 = vsel %vm1495, %v1478, %v949
      %v1527 = vsel %vm1495, %v1480, %v951
      %v1529 = vsel %vm1495, %v1482, %v953
      %v1531 = vsel %vm1495, %v1484, %v955
      %v1533 = vsel %vm1495, %v1486, %v957
      %v1535 = vsel %vm1495, %v1488, %v959
      %v1537 = vsel %vm1495, %v1490, %v961
      %v1539 = vsel %vm1495, %v1492, %v963
      %v1541 = vsel %vm1495, %v1494, %v965
      %vm1542 = vcmask 654336
      %v1544 = vsel %vm1542, %v1497, %v1013
      %v1546 = vsel %vm1542, %v1499, %v1015
      %v1548 = vsel %vm1542, %v1501, %v1017
      %v1550 = vsel %vm1542, %v1503, %v1019
      %v1552 = vsel %vm1542, %v1505, %v1021
      %v1554 = vsel %vm1542, %v1507, %v1023
      %v1556 = vsel %vm1542, %v1509, %v1025
      %v1558 = vsel %vm1542, %v1511, %v1027
      %v1560 = vsel %vm1542, %v1513, %v1029
      %v1562 = vsel %vm1542, %v1515, %v1031
      %v1564 = vsel %vm1542, %v1517, %v1033
      %v1566 = vsel %vm1542, %v1519, %v1035
      %v1568 = vsel %vm1542, %v1521, %v1037
      %v1570 = vsel %vm1542, %v1523, %v1039
      %v1572 = vsel %vm1542, %v1525, %v1041
      %v1574 = vsel %vm1542, %v1527, %v1043
      %v1576 = vsel %vm1542, %v1529, %v1045
      %v1578 = vsel %vm1542, %v1531, %v1047
      %v1580 = vsel %vm1542, %v1533, %v1049
      %v1582 = vsel %vm1542, %v1535, %v1051
      %v1584 = vsel %vm1542, %v1537, %v1053
      %v1586 = vsel %vm1542, %v1539, %v1055
      %v1588 = vsel %vm1542, %v1541, %v1057
      %vm1589 = vcmask 785408
      %v1591 = vsel %vm1589, %v1544, %v1109
      %v1593 = vsel %vm1589, %v1546, %v1111
      %v1595 = vsel %vm1589, %v1548, %v1113
      %v1597 = vsel %vm1589, %v1550, %v1115
      %v1599 = vsel %vm1589, %v1552, %v1117
      %v1601 = vsel %vm1589, %v1554, %v1119
      %v1603 = vsel %vm1589, %v1556, %v1121
      %v1605 = vsel %vm1589, %v1558, %v1123
      %v1607 = vsel %vm1589, %v1560, %v1125
      %v1609 = vsel %vm1589, %v1562, %v1127
      %v1611 = vsel %vm1589, %v1564, %v1129
      %v1613 = vsel %vm1589, %v1566, %v1131
      %v1615 = vsel %vm1589, %v1568, %v1133
      %v1617 = vsel %vm1589, %v1570, %v1135
      %v1619 = vsel %vm1589, %v1572, %v1137
      %v1621 = vsel %vm1589, %v1574, %v1139
      %v1623 = vsel %vm1589, %v1576, %v1141
      %v1625 = vsel %vm1589, %v1578, %v1143
      %v1627 = vsel %vm1589, %v1580, %v1145
      %v1629 = vsel %vm1589, %v1582, %v1147
      %v1631 = vsel %vm1589, %v1584, %v1149
      %v1633 = vsel %vm1589, %v1586, %v1151
      %v1635 = vsel %vm1589, %v1588, %v1153
      %vm1636 = vcmask 916480
      %v1638 = vsel %vm1636, %v1591, %v1261
      %v1641 = vsel %vm1636, %v1593, %v1263
      %v1644 = vsel %vm1636, %v1595, %v1265
      %v1647 = vsel %vm1636, %v1597, %v1267
      %v1650 = vsel %vm1636, %v1599, %v1269
      %v1653 = vsel %vm1636, %v1601, %v1271
      %v1656 = vsel %vm1636, %v1603, %v1273
      %v1659 = vsel %vm1636, %v1605, %v1275
      %v1662 = vsel %vm1636, %v1607, %v1277
      %v1665 = vsel %vm1636, %v1609, %v1279
      %v1668 = vsel %vm1636, %v1611, %v1281
      %v1671 = vsel %vm1636, %v1613, %v1283
      %v1674 = vsel %vm1636, %v1615, %v1285
      %v1677 = vsel %vm1636, %v1617, %v1287
      %v1680 = vsel %vm1636, %v1619, %v1289
      %v1683 = vsel %vm1636, %v1621, %v1291
      %v1686 = vsel %vm1636, %v1623, %v1293
      %v1689 = vsel %vm1636, %v1625, %v1295
      %v1692 = vsel %vm1636, %v1627, %v1297
      %v1695 = vsel %vm1636, %v1629, %v1299
      %v1698 = vsel %vm1636, %v1631, %v1301
      %v1701 = vsel %vm1636, %v1633, %v1303
      %v1704 = vsel %vm1636, %v1635, %v1305
      %v1706 = vld [vmem:[%s2] sm:$0xf]
      %v1707 = vld [vmem:[%s2 + $0x4] sm:$0xf]
      %v1708 = vld [vmem:[%s2 + $0x8] sm:$0xf]
      %v1709 = vld [vmem:[%s2 + $0xc] sm:$0xf]
      %v1710 = vld [vmem:[%s2 + $0x10] sm:$0xf]
      %v1711 = vld [vmem:[%s2 + $0x14] sm:$0xf]
      %v1712 = vld [vmem:[%s2 + $0x18] sm:$0xf]
      %v1713 = vld [vmem:[%s2 + $0x1c] sm:$0xf]
      %v1714 = vld [vmem:[%s2 + $0x20] sm:$0xf]
      %v1715 = vld [vmem:[%s2 + $0x24] sm:$0xf]
      %v1716 = vld [vmem:[%s2 + $0x28] sm:$0xf]
      %v1717 = vld [vmem:[%s2 + $0x2c] sm:$0xf]
      %v1718 = vld [vmem:[%s2 + $0x30] sm:$0xf]
      %v1719 = vld [vmem:[%s2 + $0x34] sm:$0xf]
      %v1720 = vld [vmem:[%s2 + $0x38] sm:$0xf]
      %v1721 = vld [vmem:[%s2 + $0x3c] sm:$0xf]
      %v1722 = vld [vmem:[%s2 + $0x40] sm:$0xf]
      %v1723 = vld [vmem:[%s2 + $0x44] sm:$0xf]
      %v1724 = vld [vmem:[%s3] sm:$0x1]
      %v1726 = vlaneseq
      %v1727 = vshrl.u32 %v1726, 7
      %v1728 = vsub.s32 0, %v1727
      %v1729 = vrot.slane %v1724, %v1728
      %v1749 = vunpack.c.l.b16 %v1706
      %v1750 = vunpack.c.l.b16 %v1707
      %v1751 = vunpack.c.l.b16 %v1708
      %v1752 = vunpack.c.l.b16 %v1709
      %v1753 = vunpack.c.l.b16 %v1710
      %v1754 = vunpack.c.l.b16 %v1711
      %v1755 = vunpack.c.l.b16 %v1712
      %v1756 = vunpack.c.l.b16 %v1713
      %v1757 = vunpack.c.l.b16 %v1714
      %v1758 = vunpack.c.l.b16 %v1715
      %v1759 = vunpack.c.l.b16 %v1716
      %v1760 = vunpack.c.l.b16 %v1717
      %v1761 = vunpack.c.l.b16 %v1718
      %v1762 = vunpack.c.l.b16 %v1719
      %v1763 = vunpack.c.l.b16 %v1720
      %v1764 = vunpack.c.l.b16 %v1721
      %v1765 = vunpack.c.l.b16 %v1722
      %v1766 = vunpack.c.l.b16 %v1723
      %v1767 = vpack.c.b16 %v1750, %v1749
      %v1768 = vpack.c.b16 %v1752, %v1751
      %v1769 = vpack.c.b16 %v1754, %v1753
      %v1770 = vpack.c.b16 %v1756, %v1755
      %v1771 = vpack.c.b16 %v1758, %v1757
      %v1772 = vpack.c.b16 %v1760, %v1759
      %v1773 = vpack.c.b16 %v1762, %v1761
      %v1774 = vpack.c.b16 %v1764, %v1763
      %v1775 = vpack.c.b16 %v1766, %v1765
      %v1786 = vsel %vm1354, %v1309, 0
      %v1789 = vsel %vm1354, %v1311, 0
      %v1792 = vsel %vm1354, %v1313, 0
      %v1795 = vsel %vm1354, %v1315, 0
      %v1798 = vsel %vm1354, %v1317, 0
      %v1801 = vsel %vm1354, %v1319, 0
      %v1804 = vsel %vm1354, %v1321, 0
      %v1807 = vsel %vm1354, %v1323, 0
      %v1810 = vsel %vm1354, %v1325, 0
      %v1813 = vsel %vm1354, %v1327, 0
      %v1816 = vsel %vm1354, %v1329, 0
      %v1819 = vsel %vm1354, %v1331, 0
      %v1822 = vsel %vm1354, %v1333, 0
      %v1825 = vsel %vm1354, %v1335, 0
      %v1828 = vsel %vm1354, %v1337, 0
      %v1831 = vsel %vm1354, %v1339, 0
      %v1834 = vsel %vm1354, %v1341, 0
      %v1837 = vsel %vm1354, %v1343, 0
      %v1840 = vsel %vm1354, %v1345, 0
      %v1843 = vsel %vm1354, %v1347, 0
      %v1846 = vsel %vm1354, %v1349, 0
      %v1849 = vsel %vm1354, %v1351, 0
      %v1852 = vsel %vm1354, %v1353, 0
      %1854 = vmatprep.subr.bf16.mxu0 0
      %1855 = vmatpush1.bf16.msra.mxu0 %v1767
      %1856 = vmatprep.subr.bf16.mxu0 0
      %1857 = vmatpush1.bf16.msra.mxu0 %v1768
      %1858 = vmatprep.subr.bf16.mxu0 0
      %1859 = vmatpush1.bf16.msra.mxu0 %v1769
      %1860 = vmatprep.subr.bf16.mxu0 0
      %1861 = vmatpush1.bf16.msra.mxu0 %v1770
      %1862 = vmatprep.subr.bf16.mxu0 0
      %1863 = vmatpush1.bf16.msra.mxu0 %v1771
      %1864 = vmatprep.subr.bf16.mxu0 0
      %1865 = vmatpush1.bf16.msra.mxu0 %v1772
      %1866 = vmatprep.subr.bf16.mxu0 0
      %1867 = vmatpush1.bf16.msra.mxu0 %v1773
      %1868 = vmatprep.subr.bf16.mxu0 0
      %1869 = vmatpush1.bf16.msra.mxu0 %v1774
      %1870 = vmatprep.subr.bf16.mxu0 0
      %1871 = vmatpush1.bf16.msra.mxu0 %v1775
      %1872 = vmatprep.subr.bf16.mxu0 0
      %1873 = vmatpush1.bf16.msra.mxu0 0
      %1874 = vmatprep.subr.bf16.mxu0 0
      %1875 = vmatpush1.bf16.msra.mxu0 0
      %1876 = vmatprep.subr.bf16.mxu0 0
      %1877 = vmatpush1.bf16.msra.mxu0 0
      %1878 = vmatprep.subr.bf16.mxu0 0
      %1879 = vmatpush1.bf16.msra.mxu0 0
      %1880 = vmatprep.subr.bf16.mxu0 0
      %1881 = vmatpush1.bf16.msra.mxu0 0
      %1882 = vmatprep.subr.bf16.mxu0 0
      %1883 = vmatpush1.bf16.msra.mxu0 0
      %1884 = vmatprep.subr.bf16.mxu0 0
      %1885 = vmatpush1.bf16.msra.mxu0 0
      %1886 = vmatprep.mubr.bf16.mxu0 %v1786
      %1887 = vmatmul.mubr.bf16.gmra.mrb[0].mxu0 %v1638
      %v1888 = vpop.f32.mrb[0].mxu0
      %v1889 = vadd.f32 %v1729, %v1888
      %v1890 = vpop.f32.mrb[0].mxu0
      %v1891 = vpop.f32.mrb[0].mxu0
      %v1892 = vadd.f32 %v1729, %v1891
      %v1893 = vpop.f32.mrb[0].mxu0
      %1894 = vmatprep.mubr.bf16.mxu0 %v1789
      %1895 = vmatmul.mubr.bf16.gmra.mrb[0].mxu0 %v1641
      %v1896 = vpop.f32.mrb[0].mxu0
      %v1897 = vadd.f32 %v1729, %v1896
      %v1898 = vpop.f32.mrb[0].mxu0
      %v1899 = vpop.f32.mrb[0].mxu0
      %v1900 = vadd.f32 %v1729, %v1899
      %v1901 = vpop.f32.mrb[0].mxu0
      %1902 = vmatprep.mubr.bf16.mxu0 %v1792
      %1903 = vmatmul.mubr.bf16.gmra.mrb[0].mxu0 %v1644
      %v1904 = vpop.f32.mrb[0].mxu0
      %v1905 = vadd.f32 %v1729, %v1904
      %v1906 = vpop.f32.mrb[0].mxu0
      %v1907 = vpop.f32.mrb[0].mxu0
      %v1908 = vadd.f32 %v1729, %v1907
      %v1909 = vpop.f32.mrb[0].mxu0
      %1910 = vmatprep.mubr.bf16.mxu0 %v1795
      %1911 = vmatmul.mubr.bf16.gmra.mrb[0].mxu0 %v1647
      %v1912 = vpop.f32.mrb[0].mxu0
      %v1913 = vadd.f32 %v1729, %v1912
      %v1914 = vpop.f32.mrb[0].mxu0
      %v1915 = vpop.f32.mrb[0].mxu0
      %v1916 = vadd.f32 %v1729, %v1915
      %v1917 = vpop.f32.mrb[0].mxu0
      %1918 = vmatprep.mubr.bf16.mxu0 %v1798
      %1919 = vmatmul.mubr.bf16.gmra.mrb[0].mxu0 %v1650
      %v1920 = vpop.f32.mrb[0].mxu0
      %v1921 = vadd.f32 %v1729, %v1920
      %v1922 = vpop.f32.mrb[0].mxu0
      %v1923 = vpop.f32.mrb[0].mxu0
      %v1924 = vadd.f32 %v1729, %v1923
      %v1925 = vpop.f32.mrb[0].mxu0
      %1926 = vmatprep.mubr.bf16.mxu0 %v1801
      %1927 = vmatmul.mubr.bf16.gmra.mrb[0].mxu0 %v1653
      %v1928 = vpop.f32.mrb[0].mxu0
      %v1929 = vadd.f32 %v1729, %v1928
      %v1930 = vpop.f32.mrb[0].mxu0
      %v1931 = vpop.f32.mrb[0].mxu0
      %v1932 = vadd.f32 %v1729, %v1931
      %v1933 = vpop.f32.mrb[0].mxu0
      %1934 = vmatprep.mubr.bf16.mxu0 %v1804
      %1935 = vmatmul.mubr.bf16.gmra.mrb[0].mxu0 %v1656
      %v1936 = vpop.f32.mrb[0].mxu0
      %v1937 = vadd.f32 %v1729, %v1936
      %v1938 = vpop.f32.mrb[0].mxu0
      %v1939 = vpop.f32.mrb[0].mxu0
      %v1940 = vadd.f32 %v1729, %v1939
      %v1941 = vpop.f32.mrb[0].mxu0
      %1942 = vmatprep.mubr.bf16.mxu0 %v1807
      %1943 = vmatmul.mubr.bf16.gmra.mrb[0].mxu0 %v1659
      %v1944 = vpop.f32.mrb[0].mxu0
      %v1945 = vadd.f32 %v1729, %v1944
      %v1946 = vpop.f32.mrb[0].mxu0
      %v1947 = vpop.f32.mrb[0].mxu0
      %v1948 = vadd.f32 %v1729, %v1947
      %v1949 = vpop.f32.mrb[0].mxu0
      %1950 = vmatprep.mubr.bf16.mxu0 %v1810
      %1951 = vmatmul.mubr.bf16.gmra.mrb[0].mxu0 %v1662
      %v1952 = vpop.f32.mrb[0].mxu0
      %v1953 = vadd.f32 %v1729, %v1952
      %v1954 = vpop.f32.mrb[0].mxu0
      %v1955 = vpop.f32.mrb[0].mxu0
      %v1956 = vadd.f32 %v1729, %v1955
      %v1957 = vpop.f32.mrb[0].mxu0
      %1958 = vmatprep.mubr.bf16.mxu0 %v1813
      %1959 = vmatmul.mubr.bf16.gmra.mrb[0].mxu0 %v1665
      %v1960 = vpop.f32.mrb[0].mxu0
      %v1961 = vadd.f32 %v1729, %v1960
      %v1962 = vpop.f32.mrb[0].mxu0
      %v1963 = vpop.f32.mrb[0].mxu0
      %v1964 = vadd.f32 %v1729, %v1963
      %v1965 = vpop.f32.mrb[0].mxu0
      %1966 = vmatprep.mubr.bf16.mxu0 %v1816
      %1967 = vmatmul.mubr.bf16.gmra.mrb[0].mxu0 %v1668
      %v1968 = vpop.f32.mrb[0].mxu0
      %v1969 = vadd.f32 %v1729, %v1968
      %v1970 = vpop.f32.mrb[0].mxu0
      %v1971 = vpop.f32.mrb[0].mxu0
      %v1972 = vadd.f32 %v1729, %v1971
      %v1973 = vpop.f32.mrb[0].mxu0
      %1974 = vmatprep.mubr.bf16.mxu0 %v1819
      %1975 = vmatmul.mubr.bf16.gmra.mrb[0].mxu0 %v1671
      %v1976 = vpop.f32.mrb[0].mxu0
      %v1977 = vadd.f32 %v1729, %v1976
      %v1978 = vpop.f32.mrb[0].mxu0
      %v1979 = vpop.f32.mrb[0].mxu0
      %v1980 = vadd.f32 %v1729, %v1979
      %v1981 = vpop.f32.mrb[0].mxu0
      %1982 = vmatprep.mubr.bf16.mxu0 %v1822
      %1983 = vmatmul.mubr.bf16.gmra.mrb[0].mxu0 %v1674
      %v1984 = vpop.f32.mrb[0].mxu0
      %v1985 = vadd.f32 %v1729, %v1984
      %v1986 = vpop.f32.mrb[0].mxu0
      %v1987 = vpop.f32.mrb[0].mxu0
      %v1988 = vadd.f32 %v1729, %v1987
      %v1989 = vpop.f32.mrb[0].mxu0
      %1990 = vmatprep.mubr.bf16.mxu0 %v1825
      %1991 = vmatmul.mubr.bf16.gmra.mrb[0].mxu0 %v1677
      %v1992 = vpop.f32.mrb[0].mxu0
      %v1993 = vadd.f32 %v1729, %v1992
      %v1994 = vpop.f32.mrb[0].mxu0
      %v1995 = vpop.f32.mrb[0].mxu0
      %v1996 = vadd.f32 %v1729, %v1995
      %v1997 = vpop.f32.mrb[0].mxu0
      %1998 = vmatprep.mubr.bf16.mxu0 %v1828
      %1999 = vmatmul.mubr.bf16.gmra.mrb[0].mxu0 %v1680
      %v2000 = vpop.f32.mrb[0].mxu0
      %v2001 = vadd.f32 %v1729, %v2000
      %v2002 = vpop.f32.mrb[0].mxu0
      %v2003 = vpop.f32.mrb[0].mxu0
      %v2004 = vadd.f32 %v1729, %v2003
      %v2005 = vpop.f32.mrb[0].mxu0
      %2006 = vmatprep.mubr.bf16.mxu0 %v1831
      %2007 = vmatmul.mubr.bf16.gmra.mrb[0].mxu0 %v1683
      %v2008 = vpop.f32.mrb[0].mxu0
      %v2009 = vadd.f32 %v1729, %v2008
      %v2010 = vpop.f32.mrb[0].mxu0
      %v2011 = vpop.f32.mrb[0].mxu0
      %v2012 = vadd.f32 %v1729, %v2011
      %v2013 = vpop.f32.mrb[0].mxu0
      %2014 = vmatprep.mubr.bf16.mxu0 %v1834
      %2015 = vmatmul.mubr.bf16.gmra.mrb[0].mxu0 %v1686
      %v2016 = vpop.f32.mrb[0].mxu0
      %v2017 = vadd.f32 %v1729, %v2016
      %v2018 = vpop.f32.mrb[0].mxu0
      %v2019 = vpop.f32.mrb[0].mxu0
      %v2020 = vadd.f32 %v1729, %v2019
      %v2021 = vpop.f32.mrb[0].mxu0
      %2022 = vmatprep.mubr.bf16.mxu0 %v1837
      %2023 = vmatmul.mubr.bf16.gmra.mrb[0].mxu0 %v1689
      %v2024 = vpop.f32.mrb[0].mxu0
      %v2025 = vadd.f32 %v1729, %v2024
      %v2026 = vpop.f32.mrb[0].mxu0
      %v2027 = vpop.f32.mrb[0].mxu0
      %v2028 = vadd.f32 %v1729, %v2027
      %v2029 = vpop.f32.mrb[0].mxu0
      %2030 = vmatprep.mubr.bf16.mxu0 %v1840
      %2031 = vmatmul.mubr.bf16.gmra.mrb[0].mxu0 %v1692
      %v2032 = vpop.f32.mrb[0].mxu0
      %v2033 = vadd.f32 %v1729, %v2032
      %v2034 = vpop.f32.mrb[0].mxu0
      %v2035 = vpop.f32.mrb[0].mxu0
      %v2036 = vadd.f32 %v1729, %v2035
      %v2037 = vpop.f32.mrb[0].mxu0
      %2038 = vmatprep.mubr.bf16.mxu0 %v1843
      %2039 = vmatmul.mubr.bf16.gmra.mrb[0].mxu0 %v1695
      %v2040 = vpop.f32.mrb[0].mxu0
      %v2041 = vadd.f32 %v1729, %v2040
      %v2042 = vpop.f32.mrb[0].mxu0
      %v2043 = vpop.f32.mrb[0].mxu0
      %v2044 = vadd.f32 %v1729, %v2043
      %v2045 = vpop.f32.mrb[0].mxu0
      %2046 = vmatprep.mubr.bf16.mxu0 %v1846
      %2047 = vmatmul.mubr.bf16.gmra.mrb[0].mxu0 %v1698
      %v2048 = vpop.f32.mrb[0].mxu0
      %v2049 = vadd.f32 %v1729, %v2048
      %v2050 = vpop.f32.mrb[0].mxu0
      %v2051 = vpop.f32.mrb[0].mxu0
      %v2052 = vadd.f32 %v1729, %v2051
      %v2053 = vpop.f32.mrb[0].mxu0
      %2054 = vmatprep.mubr.bf16.mxu0 %v1849
      %2055 = vmatmul.mubr.bf16.gmra.mrb[0].mxu0 %v1701
      %v2056 = vpop.f32.mrb[0].mxu0
      %v2057 = vadd.f32 %v1729, %v2056
      %v2058 = vpop.f32.mrb[0].mxu0
      %v2059 = vpop.f32.mrb[0].mxu0
      %v2060 = vadd.f32 %v1729, %v2059
      %v2061 = vpop.f32.mrb[0].mxu0
      %2062 = vmatprep.mubr.bf16.mxu0 %v1852
      %2063 = vmatmul.mubr.bf16.gmra.mrb[0].mxu0 %v1704
      %v2064 = vpop.f32.mrb[0].mxu0
      %v2065 = vadd.f32 %v1729, %v2064
      %v2066 = vpop.f32.mrb[0].mxu0
      %v2067 = vpop.f32.mrb[0].mxu0
      %v2068 = vadd.f32 %v1729, %v2067
      %v2069 = vpop.f32.mrb[0].mxu0
      %2070 = vdwg.mxu0
      %vm2071 = vcmp.ge.f32.partialorder %v1889, 0.0
      %vm2072 = vcmp.ge.f32.partialorder %v1892, 0.0
      %vm2073 = vcmp.ge.f32.partialorder %v1897, 0.0
      %vm2074 = vcmp.ge.f32.partialorder %v1900, 0.0
      %vm2075 = vcmp.ge.f32.partialorder %v1905, 0.0
      %vm2076 = vcmp.ge.f32.partialorder %v1908, 0.0
      %vm2077 = vcmp.ge.f32.partialorder %v1913, 0.0
      %vm2078 = vcmp.ge.f32.partialorder %v1916, 0.0
      %vm2079 = vcmp.ge.f32.partialorder %v1921, 0.0
      %vm2080 = vcmp.ge.f32.partialorder %v1924, 0.0
      %vm2081 = vcmp.ge.f32.partialorder %v1929, 0.0
      %vm2082 = vcmp.ge.f32.partialorder %v1932, 0.0
      %vm2083 = vcmp.ge.f32.partialorder %v1937, 0.0
      %vm2084 = vcmp.ge.f32.partialorder %v1940, 0.0
      %vm2085 = vcmp.ge.f32.partialorder %v1945, 0.0
      %vm2086 = vcmp.ge.f32.partialorder %v1948, 0.0
      %vm2087 = vcmp.ge.f32.partialorder %v1953, 0.0
      %vm2088 = vcmp.ge.f32.partialorder %v1956, 0.0
      %vm2089 = vcmp.ge.f32.partialorder %v1961, 0.0
      %vm2090 = vcmp.ge.f32.partialorder %v1964, 0.0
      %vm2091 = vcmp.ge.f32.partialorder %v1969, 0.0
      %vm2092 = vcmp.ge.f32.partialorder %v1972, 0.0
      %vm2093 = vcmp.ge.f32.partialorder %v1977, 0.0
      %vm2094 = vcmp.ge.f32.partialorder %v1980, 0.0
      %vm2095 = vcmp.ge.f32.partialorder %v1985, 0.0
      %vm2096 = vcmp.ge.f32.partialorder %v1988, 0.0
      %vm2097 = vcmp.ge.f32.partialorder %v1993, 0.0
      %vm2098 = vcmp.ge.f32.partialorder %v1996, 0.0
      %vm2099 = vcmp.ge.f32.partialorder %v2001, 0.0
      %vm2100 = vcmp.ge.f32.partialorder %v2004, 0.0
      %vm2101 = vcmp.ge.f32.partialorder %v2009, 0.0
      %vm2102 = vcmp.ge.f32.partialorder %v2012, 0.0
      %vm2103 = vcmp.ge.f32.partialorder %v2017, 0.0
      %vm2104 = vcmp.ge.f32.partialorder %v2020, 0.0
      %vm2105 = vcmp.ge.f32.partialorder %v2025, 0.0
      %vm2106 = vcmp.ge.f32.partialorder %v2028, 0.0
      %vm2107 = vcmp.ge.f32.partialorder %v2033, 0.0
      %vm2108 = vcmp.ge.f32.partialorder %v2036, 0.0
      %vm2109 = vcmp.ge.f32.partialorder %v2041, 0.0
      %vm2110 = vcmp.ge.f32.partialorder %v2044, 0.0
      %vm2111 = vcmp.ge.f32.partialorder %v2049, 0.0
      %vm2112 = vcmp.ge.f32.partialorder %v2052, 0.0
      %vm2113 = vcmp.ge.f32.partialorder %v2057, 0.0
      %vm2114 = vcmp.ge.f32.partialorder %v2060, 0.0
      %vm2115 = vcmp.ge.f32.partialorder %v2065, 0.0
      %vm2116 = vcmp.ge.f32.partialorder %v2068, 0.0
      %v2117 = vld [vmem:[%s4] sm:$0x1]
      %v2119 = vlaneseq
      %v2120 = vshrl.u32 %v2119, 7
      %v2121 = vsub.s32 0, %v2120
      %v2122 = vrot.slane %v2117, %v2121
      %v2124 = vmul.f32 %v2122, %v1889
      %v2125 = vmul.f32 %v2122, %v1892
      %v2126 = vmul.f32 %v2122, %v1897
      %v2127 = vmul.f32 %v2122, %v1900
      %v2128 = vmul.f32 %v2122, %v1905
      %v2129 = vmul.f32 %v2122, %v1908
      %v2130 = vmul.f32 %v2122, %v1913
      %v2131 = vmul.f32 %v2122, %v1916
      %v2132 = vmul.f32 %v2122, %v1921
      %v2133 = vmul.f32 %v2122, %v1924
      %v2134 = vmul.f32 %v2122, %v1929
      %v2135 = vmul.f32 %v2122, %v1932
      %v2136 = vmul.f32 %v2122, %v1937
      %v2137 = vmul.f32 %v2122, %v1940
      %v2138 = vmul.f32 %v2122, %v1945
      %v2139 = vmul.f32 %v2122, %v1948
      %v2140 = vmul.f32 %v2122, %v1953
      %v2141 = vmul.f32 %v2122, %v1956
      %v2142 = vmul.f32 %v2122, %v1961
      %v2143 = vmul.f32 %v2122, %v1964
      %v2144 = vmul.f32 %v2122, %v1969
      %v2145 = vmul.f32 %v2122, %v1972
      %v2146 = vmul.f32 %v2122, %v1977
      %v2147 = vmul.f32 %v2122, %v1980
      %v2148 = vmul.f32 %v2122, %v1985
      %v2149 = vmul.f32 %v2122, %v1988
      %v2150 = vmul.f32 %v2122, %v1993
      %v2151 = vmul.f32 %v2122, %v1996
      %v2152 = vmul.f32 %v2122, %v2001
      %v2153 = vmul.f32 %v2122, %v2004
      %v2154 = vmul.f32 %v2122, %v2009
      %v2155 = vmul.f32 %v2122, %v2012
      %v2156 = vmul.f32 %v2122, %v2017
      %v2157 = vmul.f32 %v2122, %v2020
      %v2158 = vmul.f32 %v2122, %v2025
      %v2159 = vmul.f32 %v2122, %v2028
      %v2160 = vmul.f32 %v2122, %v2033
      %v2161 = vmul.f32 %v2122, %v2036
      %v2162 = vmul.f32 %v2122, %v2041
      %v2163 = vmul.f32 %v2122, %v2044
      %v2164 = vmul.f32 %v2122, %v2049
      %v2165 = vmul.f32 %v2122, %v2052
      %v2166 = vmul.f32 %v2122, %v2057
      %v2167 = vmul.f32 %v2122, %v2060
      %v2168 = vmul.f32 %v2122, %v2065
      %v2169 = vmul.f32 %v2122, %v2068
      %v2170 = vsel %vm2071, %v1889, %v2124
      %v2171 = vsel %vm2072, %v1892, %v2125
      %v2172 = vsel %vm2073, %v1897, %v2126
      %v2173 = vsel %vm2074, %v1900, %v2127
      %v2174 = vsel %vm2075, %v1905, %v2128
      %v2175 = vsel %vm2076, %v1908, %v2129
      %v2176 = vsel %vm2077, %v1913, %v2130
      %v2177 = vsel %vm2078, %v1916, %v2131
      %v2178 = vsel %vm2079, %v1921, %v2132
      %v2179 = vsel %vm2080, %v1924, %v2133
      %v2180 = vsel %vm2081, %v1929, %v2134
      %v2181 = vsel %vm2082, %v1932, %v2135
      %v2182 = vsel %vm2083, %v1937, %v2136
      %v2183 = vsel %vm2084, %v1940, %v2137
      %v2184 = vsel %vm2085, %v1945, %v2138
      %v2185 = vsel %vm2086, %v1948, %v2139
      %v2186 = vsel %vm2087, %v1953, %v2140
      %v2187 = vsel %vm2088, %v1956, %v2141
      %v2188 = vsel %vm2089, %v1961, %v2142
      %v2189 = vsel %vm2090, %v1964, %v2143
      %v2190 = vsel %vm2091, %v1969, %v2144
      %v2191 = vsel %vm2092, %v1972, %v2145
      %v2192 = vsel %vm2093, %v1977, %v2146
      %v2193 = vsel %vm2094, %v1980, %v2147
      %v2194 = vsel %vm2095, %v1985, %v2148
      %v2195 = vsel %vm2096, %v1988, %v2149
      %v2196 = vsel %vm2097, %v1993, %v2150
      %v2197 = vsel %vm2098, %v1996, %v2151
      %v2198 = vsel %vm2099, %v2001, %v2152
      %v2199 = vsel %vm2100, %v2004, %v2153
      %v2200 = vsel %vm2101, %v2009, %v2154
      %v2201 = vsel %vm2102, %v2012, %v2155
      %v2202 = vsel %vm2103, %v2017, %v2156
      %v2203 = vsel %vm2104, %v2020, %v2157
      %v2204 = vsel %vm2105, %v2025, %v2158
      %v2205 = vsel %vm2106, %v2028, %v2159
      %v2206 = vsel %vm2107, %v2033, %v2160
      %v2207 = vsel %vm2108, %v2036, %v2161
      %v2208 = vsel %vm2109, %v2041, %v2162
      %v2209 = vsel %vm2110, %v2044, %v2163
      %v2210 = vsel %vm2111, %v2049, %v2164
      %v2211 = vsel %vm2112, %v2052, %v2165
      %v2212 = vsel %vm2113, %v2057, %v2166
      %v2213 = vsel %vm2114, %v2060, %v2167
      %v2214 = vsel %vm2115, %v2065, %v2168
      %v2215 = vsel %vm2116, %v2068, %v2169
      %v2216 = vld [vmem:[%s1] sm:$0xff]
      %v2217 = vld [vmem:[%s1 + $0x8] sm:$0xff]
      %v2218 = vld [vmem:[%s1 + $0x10] sm:$0xff]
      %v2219 = vld [vmem:[%s1 + $0x18] sm:$0xff]
      %v2220 = vld [vmem:[%s1 + $0x20] sm:$0xff]
      %v2221 = vld [vmem:[%s1 + $0x28] sm:$0xff]
      %v2222 = vld [vmem:[%s1 + $0x30] sm:$0xff]
      %v2223 = vld [vmem:[%s1 + $0x38] sm:$0xff]
      %v2224 = vld [vmem:[%s1 + $0x40] sm:$0xff]
      %v2225 = vld [vmem:[%s1 + $0x48] sm:$0xff]
      %v2226 = vld [vmem:[%s1 + $0x50] sm:$0xff]
      %v2227 = vld [vmem:[%s1 + $0x58] sm:$0xff]
      %v2228 = vld [vmem:[%s1 + $0x60] sm:$0xff]
      %v2229 = vld [vmem:[%s1 + $0x68] sm:$0xff]
      %v2230 = vld [vmem:[%s1 + $0x70] sm:$0xff]
      %v2231 = vld [vmem:[%s1 + $0x78] sm:$0xff]
      %v2232 = vld [vmem:[%s1 + $0x80] sm:$0xff]
      %v2233 = vld [vmem:[%s1 + $0x88] sm:$0xff]
      %v2234 = vld [vmem:[%s1 + $0x90] sm:$0xff]
      %v2235 = vld [vmem:[%s1 + $0x98] sm:$0xff]
      %v2236 = vld [vmem:[%s1 + $0xa0] sm:$0xff]
      %v2237 = vld [vmem:[%s1 + $0xa8] sm:$0xff]
      %v2238 = vld [vmem:[%s1 + $0xb0] sm:$0xff]
      %v2239 = vld [vmem:[%s1 + $0xb8] sm:$0xff]
      %v2240 = vld [vmem:[%s1 + $0xc0] sm:$0xff]
      %v2241 = vld [vmem:[%s1 + $0xc8] sm:$0xff]
      %v2242 = vld [vmem:[%s1 + $0xd0] sm:$0xff]
      %v2243 = vld [vmem:[%s1 + $0xd8] sm:$0xff]
      %v2244 = vld [vmem:[%s1 + $0xe0] sm:$0xff]
      %v2245 = vld [vmem:[%s1 + $0xe8] sm:$0xff]
      %v2246 = vld [vmem:[%s1 + $0xf0] sm:$0xff]
      %v2247 = vld [vmem:[%s1 + $0xf8] sm:$0xff]
      %v2248 = vld [vmem:[%s1 + $0x100] sm:$0xff]
      %v2249 = vld [vmem:[%s1 + $0x108] sm:$0xff]
      %v2250 = vld [vmem:[%s1 + $0x110] sm:$0xff]
      %v2251 = vld [vmem:[%s1 + $0x118] sm:$0xff]
      %v2252 = vld [vmem:[%s1 + $0x120] sm:$0xff]
      %v2253 = vld [vmem:[%s1 + $0x128] sm:$0xff]
      %v2254 = vld [vmem:[%s1 + $0x130] sm:$0xff]
      %v2255 = vld [vmem:[%s1 + $0x138] sm:$0xff]
      %v2256 = vld [vmem:[%s1 + $0x140] sm:$0xff]
      %v2257 = vld [vmem:[%s1 + $0x148] sm:$0xff]
      %v2258 = vld [vmem:[%s1 + $0x150] sm:$0xff]
      %v2259 = vld [vmem:[%s1 + $0x158] sm:$0xff]
      %v2260 = vld [vmem:[%s1 + $0x160] sm:$0xff]
      %v2261 = vld [vmem:[%s1 + $0x168] sm:$0x3]
      %s2262 = ssub.s32 2, %s303
      %s2263 = ssub.s32 17, %s303
      %v2264 = vstv %s2262
      %vm2265 = vcmp.ge.s32.totalorder %v2216, %v2264
      %vm2266 = vcmp.ge.s32.totalorder %v2217, %v2264
      %vm2267 = vcmp.ge.s32.totalorder %v2218, %v2264
      %vm2268 = vcmp.ge.s32.totalorder %v2219, %v2264
      %vm2269 = vcmp.ge.s32.totalorder %v2220, %v2264
      %vm2270 = vcmp.ge.s32.totalorder %v2221, %v2264
      %vm2271 = vcmp.ge.s32.totalorder %v2222, %v2264
      %vm2272 = vcmp.ge.s32.totalorder %v2223, %v2264
      %vm2273 = vcmp.ge.s32.totalorder %v2224, %v2264
      %vm2274 = vcmp.ge.s32.totalorder %v2225, %v2264
      %vm2275 = vcmp.ge.s32.totalorder %v2226, %v2264
      %vm2276 = vcmp.ge.s32.totalorder %v2227, %v2264
      %vm2277 = vcmp.ge.s32.totalorder %v2228, %v2264
      %vm2278 = vcmp.ge.s32.totalorder %v2229, %v2264
      %vm2279 = vcmp.ge.s32.totalorder %v2230, %v2264
      %vm2280 = vcmp.ge.s32.totalorder %v2231, %v2264
      %vm2281 = vcmp.ge.s32.totalorder %v2232, %v2264
      %vm2282 = vcmp.ge.s32.totalorder %v2233, %v2264
      %vm2283 = vcmp.ge.s32.totalorder %v2234, %v2264
      %vm2284 = vcmp.ge.s32.totalorder %v2235, %v2264
      %vm2285 = vcmp.ge.s32.totalorder %v2236, %v2264
      %vm2286 = vcmp.ge.s32.totalorder %v2237, %v2264
      %vm2287 = vcmp.ge.s32.totalorder %v2238, %v2264
      %vm2288 = vcmp.ge.s32.totalorder %v2239, %v2264
      %vm2289 = vcmp.ge.s32.totalorder %v2240, %v2264
      %vm2290 = vcmp.ge.s32.totalorder %v2241, %v2264
      %vm2291 = vcmp.ge.s32.totalorder %v2242, %v2264
      %vm2292 = vcmp.ge.s32.totalorder %v2243, %v2264
      %vm2293 = vcmp.ge.s32.totalorder %v2244, %v2264
      %vm2294 = vcmp.ge.s32.totalorder %v2245, %v2264
      %vm2295 = vcmp.ge.s32.totalorder %v2246, %v2264
      %vm2296 = vcmp.ge.s32.totalorder %v2247, %v2264
      %vm2297 = vcmp.ge.s32.totalorder %v2248, %v2264
      %vm2298 = vcmp.ge.s32.totalorder %v2249, %v2264
      %vm2299 = vcmp.ge.s32.totalorder %v2250, %v2264
      %vm2300 = vcmp.ge.s32.totalorder %v2251, %v2264
      %vm2301 = vcmp.ge.s32.totalorder %v2252, %v2264
      %vm2302 = vcmp.ge.s32.totalorder %v2253, %v2264
      %vm2303 = vcmp.ge.s32.totalorder %v2254, %v2264
      %vm2304 = vcmp.ge.s32.totalorder %v2255, %v2264
      %vm2305 = vcmp.ge.s32.totalorder %v2256, %v2264
      %vm2306 = vcmp.ge.s32.totalorder %v2257, %v2264
      %vm2307 = vcmp.ge.s32.totalorder %v2258, %v2264
      %vm2308 = vcmp.ge.s32.totalorder %v2259, %v2264
      %vm2309 = vcmp.ge.s32.totalorder %v2260, %v2264
      %vm2310 = vcmp.ge.s32.totalorder %v2261, %v2264
      %v2311 = vstv %s2263
      %vm2312 = vcmp.le.s32.totalorder %v2216, %v2311
      %vm2313 = vcmp.le.s32.totalorder %v2217, %v2311
      %vm2314 = vcmp.le.s32.totalorder %v2218, %v2311
      %vm2315 = vcmp.le.s32.totalorder %v2219, %v2311
      %vm2316 = vcmp.le.s32.totalorder %v2220, %v2311
      %vm2317 = vcmp.le.s32.totalorder %v2221, %v2311
      %vm2318 = vcmp.le.s32.totalorder %v2222, %v2311
      %vm2319 = vcmp.le.s32.totalorder %v2223, %v2311
      %vm2320 = vcmp.le.s32.totalorder %v2224, %v2311
      %vm2321 = vcmp.le.s32.totalorder %v2225, %v2311
      %vm2322 = vcmp.le.s32.totalorder %v2226, %v2311
      %vm2323 = vcmp.le.s32.totalorder %v2227, %v2311
      %vm2324 = vcmp.le.s32.totalorder %v2228, %v2311
      %vm2325 = vcmp.le.s32.totalorder %v2229, %v2311
      %vm2326 = vcmp.le.s32.totalorder %v2230, %v2311
      %vm2327 = vcmp.le.s32.totalorder %v2231, %v2311
      %vm2328 = vcmp.le.s32.totalorder %v2232, %v2311
      %vm2329 = vcmp.le.s32.totalorder %v2233, %v2311
      %vm2330 = vcmp.le.s32.totalorder %v2234, %v2311
      %vm2331 = vcmp.le.s32.totalorder %v2235, %v2311
      %vm2332 = vcmp.le.s32.totalorder %v2236, %v2311
      %vm2333 = vcmp.le.s32.totalorder %v2237, %v2311
      %vm2334 = vcmp.le.s32.totalorder %v2238, %v2311
      %vm2335 = vcmp.le.s32.totalorder %v2239, %v2311
      %vm2336 = vcmp.le.s32.totalorder %v2240, %v2311
      %vm2337 = vcmp.le.s32.totalorder %v2241, %v2311
      %vm2338 = vcmp.le.s32.totalorder %v2242, %v2311
      %vm2339 = vcmp.le.s32.totalorder %v2243, %v2311
      %vm2340 = vcmp.le.s32.totalorder %v2244, %v2311
      %vm2341 = vcmp.le.s32.totalorder %v2245, %v2311
      %vm2342 = vcmp.le.s32.totalorder %v2246, %v2311
      %vm2343 = vcmp.le.s32.totalorder %v2247, %v2311
      %vm2344 = vcmp.le.s32.totalorder %v2248, %v2311
      %vm2345 = vcmp.le.s32.totalorder %v2249, %v2311
      %vm2346 = vcmp.le.s32.totalorder %v2250, %v2311
      %vm2347 = vcmp.le.s32.totalorder %v2251, %v2311
      %vm2348 = vcmp.le.s32.totalorder %v2252, %v2311
      %vm2349 = vcmp.le.s32.totalorder %v2253, %v2311
      %vm2350 = vcmp.le.s32.totalorder %v2254, %v2311
      %vm2351 = vcmp.le.s32.totalorder %v2255, %v2311
      %vm2352 = vcmp.le.s32.totalorder %v2256, %v2311
      %vm2353 = vcmp.le.s32.totalorder %v2257, %v2311
      %vm2354 = vcmp.le.s32.totalorder %v2258, %v2311
      %vm2355 = vcmp.le.s32.totalorder %v2259, %v2311
      %vm2356 = vcmp.le.s32.totalorder %v2260, %v2311
      %vm2357 = vcmp.le.s32.totalorder %v2261, %v2311
      %vm2358 = vmand %vm2265, %vm2312
      %vm2359 = vmand %vm2266, %vm2313
      %vm2360 = vmand %vm2267, %vm2314
      %vm2361 = vmand %vm2268, %vm2315
      %vm2362 = vmand %vm2269, %vm2316
      %vm2363 = vmand %vm2270, %vm2317
      %vm2364 = vmand %vm2271, %vm2318
      %vm2365 = vmand %vm2272, %vm2319
      %vm2366 = vmand %vm2273, %vm2320
      %vm2367 = vmand %vm2274, %vm2321
      %vm2368 = vmand %vm2275, %vm2322
      %vm2369 = vmand %vm2276, %vm2323
      %vm2370 = vmand %vm2277, %vm2324
      %vm2371 = vmand %vm2278, %vm2325
      %vm2372 = vmand %vm2279, %vm2326
      %vm2373 = vmand %vm2280, %vm2327
      %vm2374 = vmand %vm2281, %vm2328
      %vm2375 = vmand %vm2282, %vm2329
      %vm2376 = vmand %vm2283, %vm2330
      %vm2377 = vmand %vm2284, %vm2331
      %vm2378 = vmand %vm2285, %vm2332
      %vm2379 = vmand %vm2286, %vm2333
      %vm2380 = vmand %vm2287, %vm2334
      %vm2381 = vmand %vm2288, %vm2335
      %vm2382 = vmand %vm2289, %vm2336
      %vm2383 = vmand %vm2290, %vm2337
      %vm2384 = vmand %vm2291, %vm2338
      %vm2385 = vmand %vm2292, %vm2339
      %vm2386 = vmand %vm2293, %vm2340
      %vm2387 = vmand %vm2294, %vm2341
      %vm2388 = vmand %vm2295, %vm2342
      %vm2389 = vmand %vm2296, %vm2343
      %vm2390 = vmand %vm2297, %vm2344
      %vm2391 = vmand %vm2298, %vm2345
      %vm2392 = vmand %vm2299, %vm2346
      %vm2393 = vmand %vm2300, %vm2347
      %vm2394 = vmand %vm2301, %vm2348
      %vm2395 = vmand %vm2302, %vm2349
      %vm2396 = vmand %vm2303, %vm2350
      %vm2397 = vmand %vm2304, %vm2351
      %vm2398 = vmand %vm2305, %vm2352
      %vm2399 = vmand %vm2306, %vm2353
      %vm2400 = vmand %vm2307, %vm2354
      %vm2401 = vmand %vm2308, %vm2355
      %vm2402 = vmand %vm2309, %vm2356
      %vm2403 = vmand %vm2310, %vm2357
      %v2404 = vsel %vm2358, 1, 0
      %v2405 = vsel %vm2359, 1, 0
      %v2406 = vsel %vm2360, 1, 0
      %v2407 = vsel %vm2361, 1, 0
      %v2408 = vsel %vm2362, 1, 0
      %v2409 = vsel %vm2363, 1, 0
      %v2410 = vsel %vm2364, 1, 0
      %v2411 = vsel %vm2365, 1, 0
      %v2412 = vsel %vm2366, 1, 0
      %v2413 = vsel %vm2367, 1, 0
      %v2414 = vsel %vm2368, 1, 0
      %v2415 = vsel %vm2369, 1, 0
      %v2416 = vsel %vm2370, 1, 0
      %v2417 = vsel %vm2371, 1, 0
      %v2418 = vsel %vm2372, 1, 0
      %v2419 = vsel %vm2373, 1, 0
      %v2420 = vsel %vm2374, 1, 0
      %v2421 = vsel %vm2375, 1, 0
      %v2422 = vsel %vm2376, 1, 0
      %v2423 = vsel %vm2377, 1, 0
      %v2424 = vsel %vm2378, 1, 0
      %v2425 = vsel %vm2379, 1, 0
      %v2426 = vsel %vm2380, 1, 0
      %v2427 = vsel %vm2381, 1, 0
      %v2428 = vsel %vm2382, 1, 0
      %v2429 = vsel %vm2383, 1, 0
      %v2430 = vsel %vm2384, 1, 0
      %v2431 = vsel %vm2385, 1, 0
      %v2432 = vsel %vm2386, 1, 0
      %v2433 = vsel %vm2387, 1, 0
      %v2434 = vsel %vm2388, 1, 0
      %v2435 = vsel %vm2389, 1, 0
      %v2436 = vsel %vm2390, 1, 0
      %v2437 = vsel %vm2391, 1, 0
      %v2438 = vsel %vm2392, 1, 0
      %v2439 = vsel %vm2393, 1, 0
      %v2440 = vsel %vm2394, 1, 0
      %v2441 = vsel %vm2395, 1, 0
      %v2442 = vsel %vm2396, 1, 0
      %v2443 = vsel %vm2397, 1, 0
      %v2444 = vsel %vm2398, 1, 0
      %v2445 = vsel %vm2399, 1, 0
      %v2446 = vsel %vm2400, 1, 0
      %v2447 = vsel %vm2401, 1, 0
      %v2448 = vsel %vm2402, 1, 0
      %v2449 = vsel %vm2403, 1, 0
      %2450 = vset.pattern.permute.xlu0 0
      %2451 = vperm.xlu0 %2450, %v2404
      %v2452 = vpop.permute.xlu0 %2451
      %2453 = vset.pattern.permute.xlu0 0
      %2454 = vperm.xlu0 %2453, %v2405
      %v2455 = vpop.permute.xlu0 %2454
      %2456 = vset.pattern.permute.xlu0 0
      %2457 = vperm.xlu0 %2456, %v2406
      %v2458 = vpop.permute.xlu0 %2457
      %2459 = vset.pattern.permute.xlu0 0
      %2460 = vperm.xlu0 %2459, %v2407
      %v2461 = vpop.permute.xlu0 %2460
      %2462 = vset.pattern.permute.xlu0 0
      %2463 = vperm.xlu0 %2462, %v2408
      %v2464 = vpop.permute.xlu0 %2463
      %2465 = vset.pattern.permute.xlu0 0
      %2466 = vperm.xlu0 %2465, %v2409
      %v2467 = vpop.permute.xlu0 %2466
      %2468 = vset.pattern.permute.xlu0 0
      %2469 = vperm.xlu0 %2468, %v2410
      %v2470 = vpop.permute.xlu0 %2469
      %2471 = vset.pattern.permute.xlu0 0
      %2472 = vperm.xlu0 %2471, %v2411
      %v2473 = vpop.permute.xlu0 %2472
      %2474 = vset.pattern.permute.xlu0 0
      %2475 = vperm.xlu0 %2474, %v2412
      %v2476 = vpop.permute.xlu0 %2475
      %2477 = vset.pattern.permute.xlu0 0
      %2478 = vperm.xlu0 %2477, %v2413
      %v2479 = vpop.permute.xlu0 %2478
      %2480 = vset.pattern.permute.xlu0 0
      %2481 = vperm.xlu0 %2480, %v2414
      %v2482 = vpop.permute.xlu0 %2481
      %2483 = vset.pattern.permute.xlu0 0
      %2484 = vperm.xlu0 %2483, %v2415
      %v2485 = vpop.permute.xlu0 %2484
      %2486 = vset.pattern.permute.xlu0 0
      %2487 = vperm.xlu0 %2486, %v2416
      %v2488 = vpop.permute.xlu0 %2487
      %2489 = vset.pattern.permute.xlu0 0
      %2490 = vperm.xlu0 %2489, %v2417
      %v2491 = vpop.permute.xlu0 %2490
      %2492 = vset.pattern.permute.xlu0 0
      %2493 = vperm.xlu0 %2492, %v2418
      %v2494 = vpop.permute.xlu0 %2493
      %2495 = vset.pattern.permute.xlu0 0
      %2496 = vperm.xlu0 %2495, %v2419
      %v2497 = vpop.permute.xlu0 %2496
      %2498 = vset.pattern.permute.xlu0 0
      %2499 = vperm.xlu0 %2498, %v2420
      %v2500 = vpop.permute.xlu0 %2499
      %2501 = vset.pattern.permute.xlu0 0
      %2502 = vperm.xlu0 %2501, %v2421
      %v2503 = vpop.permute.xlu0 %2502
      %2504 = vset.pattern.permute.xlu0 0
      %2505 = vperm.xlu0 %2504, %v2422
      %v2506 = vpop.permute.xlu0 %2505
      %2507 = vset.pattern.permute.xlu0 0
      %2508 = vperm.xlu0 %2507, %v2423
      %v2509 = vpop.permute.xlu0 %2508
      %2510 = vset.pattern.permute.xlu0 0
      %2511 = vperm.xlu0 %2510, %v2424
      %v2512 = vpop.permute.xlu0 %2511
      %2513 = vset.pattern.permute.xlu0 0
      %2514 = vperm.xlu0 %2513, %v2425
      %v2515 = vpop.permute.xlu0 %2514
      %2516 = vset.pattern.permute.xlu0 0
      %2517 = vperm.xlu0 %2516, %v2426
      %v2518 = vpop.permute.xlu0 %2517
      %2519 = vset.pattern.permute.xlu0 0
      %2520 = vperm.xlu0 %2519, %v2427
      %v2521 = vpop.permute.xlu0 %2520
      %2522 = vset.pattern.permute.xlu0 0
      %2523 = vperm.xlu0 %2522, %v2428
      %v2524 = vpop.permute.xlu0 %2523
      %2525 = vset.pattern.permute.xlu0 0
      %2526 = vperm.xlu0 %2525, %v2429
      %v2527 = vpop.permute.xlu0 %2526
      %2528 = vset.pattern.permute.xlu0 0
      %2529 = vperm.xlu0 %2528, %v2430
      %v2530 = vpop.permute.xlu0 %2529
      %2531 = vset.pattern.permute.xlu0 0
      %2532 = vperm.xlu0 %2531, %v2431
      %v2533 = vpop.permute.xlu0 %2532
      %2534 = vset.pattern.permute.xlu0 0
      %2535 = vperm.xlu0 %2534, %v2432
      %v2536 = vpop.permute.xlu0 %2535
      %2537 = vset.pattern.permute.xlu0 0
      %2538 = vperm.xlu0 %2537, %v2433
      %v2539 = vpop.permute.xlu0 %2538
      %2540 = vset.pattern.permute.xlu0 0
      %2541 = vperm.xlu0 %2540, %v2434
      %v2542 = vpop.permute.xlu0 %2541
      %2543 = vset.pattern.permute.xlu0 0
      %2544 = vperm.xlu0 %2543, %v2435
      %v2545 = vpop.permute.xlu0 %2544
      %2546 = vset.pattern.permute.xlu0 0
      %2547 = vperm.xlu0 %2546, %v2436
      %v2548 = vpop.permute.xlu0 %2547
      %2549 = vset.pattern.permute.xlu0 0
      %2550 = vperm.xlu0 %2549, %v2437
      %v2551 = vpop.permute.xlu0 %2550
      %2552 = vset.pattern.permute.xlu0 0
      %2553 = vperm.xlu0 %2552, %v2438
      %v2554 = vpop.permute.xlu0 %2553
      %2555 = vset.pattern.permute.xlu0 0
      %2556 = vperm.xlu0 %2555, %v2439
      %v2557 = vpop.permute.xlu0 %2556
      %2558 = vset.pattern.permute.xlu0 0
      %2559 = vperm.xlu0 %2558, %v2440
      %v2560 = vpop.permute.xlu0 %2559
      %2561 = vset.pattern.permute.xlu0 0
      %2562 = vperm.xlu0 %2561, %v2441
      %v2563 = vpop.permute.xlu0 %2562
      %2564 = vset.pattern.permute.xlu0 0
      %2565 = vperm.xlu0 %2564, %v2442
      %v2566 = vpop.permute.xlu0 %2565
      %2567 = vset.pattern.permute.xlu0 0
      %2568 = vperm.xlu0 %2567, %v2443
      %v2569 = vpop.permute.xlu0 %2568
      %2570 = vset.pattern.permute.xlu0 0
      %2571 = vperm.xlu0 %2570, %v2444
      %v2572 = vpop.permute.xlu0 %2571
      %2573 = vset.pattern.permute.xlu0 0
      %2574 = vperm.xlu0 %2573, %v2445
      %v2575 = vpop.permute.xlu0 %2574
      %2576 = vset.pattern.permute.xlu0 0
      %2577 = vperm.xlu0 %2576, %v2446
      %v2578 = vpop.permute.xlu0 %2577
      %2579 = vset.pattern.permute.xlu0 0
      %2580 = vperm.xlu0 %2579, %v2447
      %v2581 = vpop.permute.xlu0 %2580
      %2582 = vset.pattern.permute.xlu0 0
      %2583 = vperm.xlu0 %2582, %v2448
      %v2584 = vpop.permute.xlu0 %2583
      %2585 = vset.pattern.permute.xlu0 0
      %2586 = vperm.xlu0 %2585, %v2449
      %v2587 = vpop.permute.xlu0 %2586
      %vm2588 = vcmp.eq.s32.totalorder %v2452, 1
      %vm2589 = vcmp.eq.s32.totalorder %v2455, 1
      %vm2590 = vcmp.eq.s32.totalorder %v2458, 1
      %vm2591 = vcmp.eq.s32.totalorder %v2461, 1
      %vm2592 = vcmp.eq.s32.totalorder %v2464, 1
      %vm2593 = vcmp.eq.s32.totalorder %v2467, 1
      %vm2594 = vcmp.eq.s32.totalorder %v2470, 1
      %vm2595 = vcmp.eq.s32.totalorder %v2473, 1
      %vm2596 = vcmp.eq.s32.totalorder %v2476, 1
      %vm2597 = vcmp.eq.s32.totalorder %v2479, 1
      %vm2598 = vcmp.eq.s32.totalorder %v2482, 1
      %vm2599 = vcmp.eq.s32.totalorder %v2485, 1
      %vm2600 = vcmp.eq.s32.totalorder %v2488, 1
      %vm2601 = vcmp.eq.s32.totalorder %v2491, 1
      %vm2602 = vcmp.eq.s32.totalorder %v2494, 1
      %vm2603 = vcmp.eq.s32.totalorder %v2497, 1
      %vm2604 = vcmp.eq.s32.totalorder %v2500, 1
      %vm2605 = vcmp.eq.s32.totalorder %v2503, 1
      %vm2606 = vcmp.eq.s32.totalorder %v2506, 1
      %vm2607 = vcmp.eq.s32.totalorder %v2509, 1
      %vm2608 = vcmp.eq.s32.totalorder %v2512, 1
      %vm2609 = vcmp.eq.s32.totalorder %v2515, 1
      %vm2610 = vcmp.eq.s32.totalorder %v2518, 1
      %vm2611 = vcmp.eq.s32.totalorder %v2521, 1
      %vm2612 = vcmp.eq.s32.totalorder %v2524, 1
      %vm2613 = vcmp.eq.s32.totalorder %v2527, 1
      %vm2614 = vcmp.eq.s32.totalorder %v2530, 1
      %vm2615 = vcmp.eq.s32.totalorder %v2533, 1
      %vm2616 = vcmp.eq.s32.totalorder %v2536, 1
      %vm2617 = vcmp.eq.s32.totalorder %v2539, 1
      %vm2618 = vcmp.eq.s32.totalorder %v2542, 1
      %vm2619 = vcmp.eq.s32.totalorder %v2545, 1
      %vm2620 = vcmp.eq.s32.totalorder %v2548, 1
      %vm2621 = vcmp.eq.s32.totalorder %v2551, 1
      %vm2622 = vcmp.eq.s32.totalorder %v2554, 1
      %vm2623 = vcmp.eq.s32.totalorder %v2557, 1
      %vm2624 = vcmp.eq.s32.totalorder %v2560, 1
      %vm2625 = vcmp.eq.s32.totalorder %v2563, 1
      %vm2626 = vcmp.eq.s32.totalorder %v2566, 1
      %vm2627 = vcmp.eq.s32.totalorder %v2569, 1
      %vm2628 = vcmp.eq.s32.totalorder %v2572, 1
      %vm2629 = vcmp.eq.s32.totalorder %v2575, 1
      %vm2630 = vcmp.eq.s32.totalorder %v2578, 1
      %vm2631 = vcmp.eq.s32.totalorder %v2581, 1
      %vm2632 = vcmp.eq.s32.totalorder %v2584, 1
      %vm2633 = vcmp.eq.s32.totalorder %v2587, 1
      %v2634 = vsel %vm2588, %v2170, 0.0
      %v2635 = vsel %vm2589, %v2171, 0.0
      %v2636 = vsel %vm2590, %v2172, 0.0
      %v2637 = vsel %vm2591, %v2173, 0.0
      %v2638 = vsel %vm2592, %v2174, 0.0
      %v2639 = vsel %vm2593, %v2175, 0.0
      %v2640 = vsel %vm2594, %v2176, 0.0
      %v2641 = vsel %vm2595, %v2177, 0.0
      %v2642 = vsel %vm2596, %v2178, 0.0
      %v2643 = vsel %vm2597, %v2179, 0.0
      %v2644 = vsel %vm2598, %v2180, 0.0
      %v2645 = vsel %vm2599, %v2181, 0.0
      %v2646 = vsel %vm2600, %v2182, 0.0
      %v2647 = vsel %vm2601, %v2183, 0.0
      %v2648 = vsel %vm2602, %v2184, 0.0
      %v2649 = vsel %vm2603, %v2185, 0.0
      %v2650 = vsel %vm2604, %v2186, 0.0
      %v2651 = vsel %vm2605, %v2187, 0.0
      %v2652 = vsel %vm2606, %v2188, 0.0
      %v2653 = vsel %vm2607, %v2189, 0.0
      %v2654 = vsel %vm2608, %v2190, 0.0
      %v2655 = vsel %vm2609, %v2191, 0.0
      %v2656 = vsel %vm2610, %v2192, 0.0
      %v2657 = vsel %vm2611, %v2193, 0.0
      %v2658 = vsel %vm2612, %v2194, 0.0
      %v2659 = vsel %vm2613, %v2195, 0.0
      %v2660 = vsel %vm2614, %v2196, 0.0
      %v2661 = vsel %vm2615, %v2197, 0.0
      %v2662 = vsel %vm2616, %v2198, 0.0
      %v2663 = vsel %vm2617, %v2199, 0.0
      %v2664 = vsel %vm2618, %v2200, 0.0
      %v2665 = vsel %vm2619, %v2201, 0.0
      %v2666 = vsel %vm2620, %v2202, 0.0
      %v2667 = vsel %vm2621, %v2203, 0.0
      %v2668 = vsel %vm2622, %v2204, 0.0
      %v2669 = vsel %vm2623, %v2205, 0.0
      %v2670 = vsel %vm2624, %v2206, 0.0
      %v2671 = vsel %vm2625, %v2207, 0.0
      %v2672 = vsel %vm2626, %v2208, 0.0
      %v2673 = vsel %vm2627, %v2209, 0.0
      %v2674 = vsel %vm2628, %v2210, 0.0
      %v2675 = vsel %vm2629, %v2211, 0.0
      %v2676 = vsel %vm2630, %v2212, 0.0
      %v2677 = vsel %vm2631, %v2213, 0.0
      %v2678 = vsel %vm2632, %v2214, 0.0
      %v2679 = vsel %vm2633, %v2215, 0.0
      %v2680 = vpack.c.bf16 %v2635, %v2634
      %v2681 = vpack.c.bf16 %v2637, %v2636
      %v2682 = vpack.c.bf16 %v2639, %v2638
      %v2683 = vpack.c.bf16 %v2641, %v2640
      %v2684 = vpack.c.bf16 %v2643, %v2642
      %v2685 = vpack.c.bf16 %v2645, %v2644
      %v2686 = vpack.c.bf16 %v2647, %v2646
      %v2687 = vpack.c.bf16 %v2649, %v2648
      %v2688 = vpack.c.bf16 %v2651, %v2650
      %v2689 = vpack.c.bf16 %v2653, %v2652
      %v2690 = vpack.c.bf16 %v2655, %v2654
      %v2691 = vpack.c.bf16 %v2657, %v2656
      %v2692 = vpack.c.bf16 %v2659, %v2658
      %v2693 = vpack.c.bf16 %v2661, %v2660
      %v2694 = vpack.c.bf16 %v2663, %v2662
      %v2695 = vpack.c.bf16 %v2665, %v2664
      %v2696 = vpack.c.bf16 %v2667, %v2666
      %v2697 = vpack.c.bf16 %v2669, %v2668
      %v2698 = vpack.c.bf16 %v2671, %v2670
      %v2699 = vpack.c.bf16 %v2673, %v2672
      %v2700 = vpack.c.bf16 %v2675, %v2674
      %v2701 = vpack.c.bf16 %v2677, %v2676
      %v2702 = vpack.c.bf16 %v2679, %v2678
      %v2704 = vshrl.u32 %v2680, 16
      %v2706 = vshll.u32 %v2680, 16
      %v2708 = vrot.slane %v2706, 1
      %v2709 = vor.u32 %v2704, %v2708
      %v2711 = vshll.u32 %v2681, 16
      %v2713 = vrot.slane %v2711, 1
      %v2714 = vsel %vm385, %v2709, %v2713
      %v2715 = vshrl.u32 %v2681, 16
      %v2717 = vor.u32 %v2715, %v2713
      %v2719 = vshll.u32 %v2682, 16
      %v2721 = vrot.slane %v2719, 1
      %v2722 = vsel %vm385, %v2717, %v2721
      %v2723 = vshrl.u32 %v2682, 16
      %v2725 = vor.u32 %v2723, %v2721
      %v2727 = vshll.u32 %v2683, 16
      %v2729 = vrot.slane %v2727, 1
      %v2730 = vsel %vm385, %v2725, %v2729
      %v2731 = vshrl.u32 %v2683, 16
      %v2733 = vor.u32 %v2731, %v2729
      %v2735 = vshll.u32 %v2684, 16
      %v2737 = vrot.slane %v2735, 1
      %v2738 = vsel %vm385, %v2733, %v2737
      %v2739 = vshrl.u32 %v2684, 16
      %v2741 = vor.u32 %v2739, %v2737
      %v2743 = vshll.u32 %v2685, 16
      %v2745 = vrot.slane %v2743, 1
      %v2746 = vsel %vm385, %v2741, %v2745
      %v2747 = vshrl.u32 %v2685, 16
      %v2749 = vor.u32 %v2747, %v2745
      %v2751 = vshll.u32 %v2686, 16
      %v2753 = vrot.slane %v2751, 1
      %v2754 = vsel %vm385, %v2749, %v2753
      %v2755 = vshrl.u32 %v2686, 16
      %v2757 = vor.u32 %v2755, %v2753
      %v2759 = vshll.u32 %v2687, 16
      %v2761 = vrot.slane %v2759, 1
      %v2762 = vsel %vm385, %v2757, %v2761
      %v2763 = vshrl.u32 %v2687, 16
      %v2765 = vor.u32 %v2763, %v2761
      %v2767 = vshll.u32 %v2688, 16
      %v2769 = vrot.slane %v2767, 1
      %v2770 = vsel %vm385, %v2765, %v2769
      %v2771 = vshrl.u32 %v2688, 16
      %v2773 = vor.u32 %v2771, %v2769
      %v2775 = vshll.u32 %v2689, 16
      %v2777 = vrot.slane %v2775, 1
      %v2778 = vsel %vm385, %v2773, %v2777
      %v2779 = vshrl.u32 %v2689, 16
      %v2781 = vor.u32 %v2779, %v2777
      %v2783 = vshll.u32 %v2690, 16
      %v2785 = vrot.slane %v2783, 1
      %v2786 = vsel %vm385, %v2781, %v2785
      %v2787 = vshrl.u32 %v2690, 16
      %v2789 = vor.u32 %v2787, %v2785
      %v2791 = vshll.u32 %v2691, 16
      %v2793 = vrot.slane %v2791, 1
      %v2794 = vsel %vm385, %v2789, %v2793
      %v2795 = vshrl.u32 %v2691, 16
      %v2797 = vor.u32 %v2795, %v2793
      %v2799 = vshll.u32 %v2692, 16
      %v2801 = vrot.slane %v2799, 1
      %v2802 = vsel %vm385, %v2797, %v2801
      %v2803 = vshrl.u32 %v2692, 16
      %v2805 = vor.u32 %v2803, %v2801
      %v2807 = vshll.u32 %v2693, 16
      %v2809 = vrot.slane %v2807, 1
      %v2810 = vsel %vm385, %v2805, %v2809
      %v2811 = vshrl.u32 %v2693, 16
      %v2813 = vor.u32 %v2811, %v2809
      %v2815 = vshll.u32 %v2694, 16
      %v2817 = vrot.slane %v2815, 1
      %v2818 = vsel %vm385, %v2813, %v2817
      %v2819 = vshrl.u32 %v2694, 16
      %v2821 = vor.u32 %v2819, %v2817
      %v2823 = vshll.u32 %v2695, 16
      %v2825 = vrot.slane %v2823, 1
      %v2826 = vsel %vm385, %v2821, %v2825
      %v2827 = vshrl.u32 %v2695, 16
      %v2829 = vor.u32 %v2827, %v2825
      %v2831 = vshll.u32 %v2696, 16
      %v2833 = vrot.slane %v2831, 1
      %v2834 = vsel %vm385, %v2829, %v2833
      %v2835 = vshrl.u32 %v2696, 16
      %v2837 = vor.u32 %v2835, %v2833
      %v2839 = vshll.u32 %v2697, 16
      %v2841 = vrot.slane %v2839, 1
      %v2842 = vsel %vm385, %v2837, %v2841
      %v2843 = vshrl.u32 %v2697, 16
      %v2845 = vor.u32 %v2843, %v2841
      %v2847 = vshll.u32 %v2698, 16
      %v2849 = vrot.slane %v2847, 1
      %v2850 = vsel %vm385, %v2845, %v2849
      %v2851 = vshrl.u32 %v2698, 16
      %v2853 = vor.u32 %v2851, %v2849
      %v2855 = vshll.u32 %v2699, 16
      %v2857 = vrot.slane %v2855, 1
      %v2858 = vsel %vm385, %v2853, %v2857
      %v2859 = vshrl.u32 %v2699, 16
      %v2861 = vor.u32 %v2859, %v2857
      %v2863 = vshll.u32 %v2700, 16
      %v2865 = vrot.slane %v2863, 1
      %v2866 = vsel %vm385, %v2861, %v2865
      %2867 = vrot.lane.b32.xlu0 %v2714, 16
      %v2868 = vpop.permute.xlu0 %2867
      %2869 = vrot.lane.b32.xlu0 %v2722, 16
      %v2870 = vpop.permute.xlu0 %2869
      %2871 = vrot.lane.b32.xlu0 %v2730, 16
      %v2872 = vpop.permute.xlu0 %2871
      %2873 = vrot.lane.b32.xlu0 %v2738, 16
      %v2874 = vpop.permute.xlu0 %2873
      %2875 = vrot.lane.b32.xlu0 %v2746, 16
      %v2876 = vpop.permute.xlu0 %2875
      %2877 = vrot.lane.b32.xlu0 %v2754, 16
      %v2878 = vpop.permute.xlu0 %2877
      %2879 = vrot.lane.b32.xlu0 %v2762, 16
      %v2880 = vpop.permute.xlu0 %2879
      %2881 = vrot.lane.b32.xlu0 %v2770, 16
      %v2882 = vpop.permute.xlu0 %2881
      %2883 = vrot.lane.b32.xlu0 %v2778, 16
      %v2884 = vpop.permute.xlu0 %2883
      %2885 = vrot.lane.b32.xlu0 %v2786, 16
      %v2886 = vpop.permute.xlu0 %2885
      %2887 = vrot.lane.b32.xlu0 %v2794, 16
      %v2888 = vpop.permute.xlu0 %2887
      %2889 = vrot.lane.b32.xlu0 %v2802, 16
      %v2890 = vpop.permute.xlu0 %2889
      %2891 = vrot.lane.b32.xlu0 %v2810, 16
      %v2892 = vpop.permute.xlu0 %2891
      %2893 = vrot.lane.b32.xlu0 %v2818, 16
      %v2894 = vpop.permute.xlu0 %2893
      %2895 = vrot.lane.b32.xlu0 %v2826, 16
      %v2896 = vpop.permute.xlu0 %2895
      %2897 = vrot.lane.b32.xlu0 %v2834, 16
      %v2898 = vpop.permute.xlu0 %2897
      %2899 = vrot.lane.b32.xlu0 %v2842, 16
      %v2900 = vpop.permute.xlu0 %2899
      %2901 = vrot.lane.b32.xlu0 %v2850, 16
      %v2902 = vpop.permute.xlu0 %2901
      %2903 = vrot.lane.b32.xlu0 %v2858, 16
      %v2904 = vpop.permute.xlu0 %2903
      %2905 = vrot.lane.b32.xlu0 %v2866, 16
      %v2906 = vpop.permute.xlu0 %2905
      %v2928 = vrot.slane %v2680, 1
      %v2929 = vrot.slane %v2681, 1
      %v2930 = vsel %vm638, %v2928, %v2929
      %v2931 = vrot.slane %v2682, 1
      %v2932 = vsel %vm638, %v2929, %v2931
      %v2933 = vrot.slane %v2683, 1
      %v2934 = vsel %vm638, %v2931, %v2933
      %v2935 = vrot.slane %v2684, 1
      %v2936 = vsel %vm638, %v2933, %v2935
      %v2937 = vrot.slane %v2685, 1
      %v2938 = vsel %vm638, %v2935, %v2937
      %v2939 = vrot.slane %v2686, 1
      %v2940 = vsel %vm638, %v2937, %v2939
      %v2941 = vrot.slane %v2687, 1
      %v2942 = vsel %vm638, %v2939, %v2941
      %v2943 = vrot.slane %v2688, 1
      %v2944 = vsel %vm638, %v2941, %v2943
      %v2945 = vrot.slane %v2689, 1
      %v2946 = vsel %vm638, %v2943, %v2945
      %v2947 = vrot.slane %v2690, 1
      %v2948 = vsel %vm638, %v2945, %v2947
      %v2949 = vrot.slane %v2691, 1
      %v2950 = vsel %vm638, %v2947, %v2949
      %v2951 = vrot.slane %v2692, 1
      %v2952 = vsel %vm638, %v2949, %v2951
      %v2953 = vrot.slane %v2693, 1
      %v2954 = vsel %vm638, %v2951, %v2953
      %v2955 = vrot.slane %v2694, 1
      %v2956 = vsel %vm638, %v2953, %v2955
      %v2957 = vrot.slane %v2695, 1
      %v2958 = vsel %vm638, %v2955, %v2957
      %v2959 = vrot.slane %v2696, 1
      %v2960 = vsel %vm638, %v2957, %v2959
      %v2961 = vrot.slane %v2697, 1
      %v2962 = vsel %vm638, %v2959, %v2961
      %v2963 = vrot.slane %v2698, 1
      %v2964 = vsel %vm638, %v2961, %v2963
      %v2965 = vrot.slane %v2699, 1
      %v2966 = vsel %vm638, %v2963, %v2965
      %v2967 = vrot.slane %v2700, 1
      %v2968 = vsel %vm638, %v2965, %v2967
      %2969 = vrot.lane.b32.xlu0 %v2930, 32
      %v2970 = vpop.permute.xlu0 %2969
      %2971 = vrot.lane.b32.xlu0 %v2932, 32
      %v2972 = vpop.permute.xlu0 %2971
      %2973 = vrot.lane.b32.xlu0 %v2934, 32
      %v2974 = vpop.permute.xlu0 %2973
      %2975 = vrot.lane.b32.xlu0 %v2936, 32
      %v2976 = vpop.permute.xlu0 %2975
      %2977 = vrot.lane.b32.xlu0 %v2938, 32
      %v2978 = vpop.permute.xlu0 %2977
      %2979 = vrot.lane.b32.xlu0 %v2940, 32
      %v2980 = vpop.permute.xlu0 %2979
      %2981 = vrot.lane.b32.xlu0 %v2942, 32
      %v2982 = vpop.permute.xlu0 %2981
      %2983 = vrot.lane.b32.xlu0 %v2944, 32
      %v2984 = vpop.permute.xlu0 %2983
      %2985 = vrot.lane.b32.xlu0 %v2946, 32
      %v2986 = vpop.permute.xlu0 %2985
      %2987 = vrot.lane.b32.xlu0 %v2948, 32
      %v2988 = vpop.permute.xlu0 %2987
      %2989 = vrot.lane.b32.xlu0 %v2950, 32
      %v2990 = vpop.permute.xlu0 %2989
      %2991 = vrot.lane.b32.xlu0 %v2952, 32
      %v2992 = vpop.permute.xlu0 %2991
      %2993 = vrot.lane.b32.xlu0 %v2954, 32
      %v2994 = vpop.permute.xlu0 %2993
      %2995 = vrot.lane.b32.xlu0 %v2956, 32
      %v2996 = vpop.permute.xlu0 %2995
      %2997 = vrot.lane.b32.xlu0 %v2958, 32
      %v2998 = vpop.permute.xlu0 %2997
      %2999 = vrot.lane.b32.xlu0 %v2960, 32
      %v3000 = vpop.permute.xlu0 %2999
      %3001 = vrot.lane.b32.xlu0 %v2962, 32
      %v3002 = vpop.permute.xlu0 %3001
      %3003 = vrot.lane.b32.xlu0 %v2964, 32
      %v3004 = vpop.permute.xlu0 %3003
      %3005 = vrot.lane.b32.xlu0 %v2966, 32
      %v3006 = vpop.permute.xlu0 %3005
      %3007 = vrot.lane.b32.xlu0 %v2968, 32
      %v3008 = vpop.permute.xlu0 %3007
      %v3010 = vrot.slane %v2681, 2
      %v3011 = vrot.slane %v2682, 2
      %v3012 = vsel %vm731, %v3010, %v3011
      %v3013 = vrot.slane %v2683, 2
      %v3014 = vsel %vm731, %v3011, %v3013
      %v3015 = vrot.slane %v2684, 2
      %v3016 = vsel %vm731, %v3013, %v3015
      %v3017 = vrot.slane %v2685, 2
      %v3018 = vsel %vm731, %v3015, %v3017
      %v3019 = vrot.slane %v2686, 2
      %v3020 = vsel %vm731, %v3017, %v3019
      %v3021 = vrot.slane %v2687, 2
      %v3022 = vsel %vm731, %v3019, %v3021
      %v3023 = vrot.slane %v2688, 2
      %v3024 = vsel %vm731, %v3021, %v3023
      %v3025 = vrot.slane %v2689, 2
      %v3026 = vsel %vm731, %v3023, %v3025
      %v3027 = vrot.slane %v2690, 2
      %v3028 = vsel %vm731, %v3025, %v3027
      %v3029 = vrot.slane %v2691, 2
      %v3030 = vsel %vm731, %v3027, %v3029
      %v3031 = vrot.slane %v2692, 2
      %v3032 = vsel %vm731, %v3029, %v3031
      %v3033 = vrot.slane %v2693, 2
      %v3034 = vsel %vm731, %v3031, %v3033
      %v3035 = vrot.slane %v2694, 2
      %v3036 = vsel %vm731, %v3033, %v3035
      %v3037 = vrot.slane %v2695, 2
      %v3038 = vsel %vm731, %v3035, %v3037
      %v3039 = vrot.slane %v2696, 2
      %v3040 = vsel %vm731, %v3037, %v3039
      %v3041 = vrot.slane %v2697, 2
      %v3042 = vsel %vm731, %v3039, %v3041
      %v3043 = vrot.slane %v2698, 2
      %v3044 = vsel %vm731, %v3041, %v3043
      %v3045 = vrot.slane %v2699, 2
      %v3046 = vsel %vm731, %v3043, %v3045
      %v3047 = vrot.slane %v2700, 2
      %v3048 = vsel %vm731, %v3045, %v3047
      %v3049 = vrot.slane %v2701, 2
      %v3050 = vsel %vm731, %v3047, %v3049
      %3051 = vrot.lane.b32.xlu0 %v3012, 48
      %v3052 = vpop.permute.xlu0 %3051
      %3053 = vrot.lane.b32.xlu0 %v3014, 48
      %v3054 = vpop.permute.xlu0 %3053
      %3055 = vrot.lane.b32.xlu0 %v3016, 48
      %v3056 = vpop.permute.xlu0 %3055
      %3057 = vrot.lane.b32.xlu0 %v3018, 48
      %v3058 = vpop.permute.xlu0 %3057
      %3059 = vrot.lane.b32.xlu0 %v3020, 48
      %v3060 = vpop.permute.xlu0 %3059
      %3061 = vrot.lane.b32.xlu0 %v3022, 48
      %v3062 = vpop.permute.xlu0 %3061
      %3063 = vrot.lane.b32.xlu0 %v3024, 48
      %v3064 = vpop.permute.xlu0 %3063
      %3065 = vrot.lane.b32.xlu0 %v3026, 48
      %v3066 = vpop.permute.xlu0 %3065
      %3067 = vrot.lane.b32.xlu0 %v3028, 48
      %v3068 = vpop.permute.xlu0 %3067
      %3069 = vrot.lane.b32.xlu0 %v3030, 48
      %v3070 = vpop.permute.xlu0 %3069
      %3071 = vrot.lane.b32.xlu0 %v3032, 48
      %v3072 = vpop.permute.xlu0 %3071
      %3073 = vrot.lane.b32.xlu0 %v3034, 48
      %v3074 = vpop.permute.xlu0 %3073
      %3075 = vrot.lane.b32.xlu0 %v3036, 48
      %v3076 = vpop.permute.xlu0 %3075
      %3077 = vrot.lane.b32.xlu0 %v3038, 48
      %v3078 = vpop.permute.xlu0 %3077
      %3079 = vrot.lane.b32.xlu0 %v3040, 48
      %v3080 = vpop.permute.xlu0 %3079
      %3081 = vrot.lane.b32.xlu0 %v3042, 48
      %v3082 = vpop.permute.xlu0 %3081
      %3083 = vrot.lane.b32.xlu0 %v3044, 48
      %v3084 = vpop.permute.xlu0 %3083
      %3085 = vrot.lane.b32.xlu0 %v3046, 48
      %v3086 = vpop.permute.xlu0 %3085
      %3087 = vrot.lane.b32.xlu0 %v3048, 48
      %v3088 = vpop.permute.xlu0 %3087
      %3089 = vrot.lane.b32.xlu0 %v3050, 48
      %v3090 = vpop.permute.xlu0 %3089
      %v3091 = vrot.slane %v2715, 2
      %v3092 = vrot.slane %v2711, 3
      %v3093 = vor.u32 %v3091, %v3092
      %v3094 = vrot.slane %v2723, 2
      %v3095 = vrot.slane %v2719, 3
      %v3096 = vor.u32 %v3094, %v3095
      %v3097 = vsel %vm823, %v3093, %v3096
      %v3098 = vrot.slane %v2731, 2
      %v3099 = vrot.slane %v2727, 3
      %v3100 = vor.u32 %v3098, %v3099
      %v3101 = vsel %vm823, %v3096, %v3100
      %v3102 = vrot.slane %v2739, 2
      %v3103 = vrot.slane %v2735, 3
      %v3104 = vor.u32 %v3102, %v3103
      %v3105 = vsel %vm823, %v3100, %v3104
      %v3106 = vrot.slane %v2747, 2
      %v3107 = vrot.slane %v2743, 3
      %v3108 = vor.u32 %v3106, %v3107
      %v3109 = vsel %vm823, %v3104, %v3108
      %v3110 = vrot.slane %v2755, 2
      %v3111 = vrot.slane %v2751, 3
      %v3112 = vor.u32 %v3110, %v3111
      %v3113 = vsel %vm823, %v3108, %v3112
      %v3114 = vrot.slane %v2763, 2
      %v3115 = vrot.slane %v2759, 3
      %v3116 = vor.u32 %v3114, %v3115
      %v3117 = vsel %vm823, %v3112, %v3116
      %v3118 = vrot.slane %v2771, 2
      %v3119 = vrot.slane %v2767, 3
      %v3120 = vor.u32 %v3118, %v3119
      %v3121 = vsel %vm823, %v3116, %v3120
      %v3122 = vrot.slane %v2779, 2
      %v3123 = vrot.slane %v2775, 3
      %v3124 = vor.u32 %v3122, %v3123
      %v3125 = vsel %vm823, %v3120, %v3124
      %v3126 = vrot.slane %v2787, 2
      %v3127 = vrot.slane %v2783, 3
      %v3128 = vor.u32 %v3126, %v3127
      %v3129 = vsel %vm823, %v3124, %v3128
      %v3130 = vrot.slane %v2795, 2
      %v3131 = vrot.slane %v2791, 3
      %v3132 = vor.u32 %v3130, %v3131
      %v3133 = vsel %vm823, %v3128, %v3132
      %v3134 = vrot.slane %v2803, 2
      %v3135 = vrot.slane %v2799, 3
      %v3136 = vor.u32 %v3134, %v3135
      %v3137 = vsel %vm823, %v3132, %v3136
      %v3138 = vrot.slane %v2811, 2
      %v3139 = vrot.slane %v2807, 3
      %v3140 = vor.u32 %v3138, %v3139
      %v3141 = vsel %vm823, %v3136, %v3140
      %v3142 = vrot.slane %v2819, 2
      %v3143 = vrot.slane %v2815, 3
      %v3144 = vor.u32 %v3142, %v3143
      %v3145 = vsel %vm823, %v3140, %v3144
      %v3146 = vrot.slane %v2827, 2
      %v3147 = vrot.slane %v2823, 3
      %v3148 = vor.u32 %v3146, %v3147
      %v3149 = vsel %vm823, %v3144, %v3148
      %v3150 = vrot.slane %v2835, 2
      %v3151 = vrot.slane %v2831, 3
      %v3152 = vor.u32 %v3150, %v3151
      %v3153 = vsel %vm823, %v3148, %v3152
      %v3154 = vrot.slane %v2843, 2
      %v3155 = vrot.slane %v2839, 3
      %v3156 = vor.u32 %v3154, %v3155
      %v3157 = vsel %vm823, %v3152, %v3156
      %v3158 = vrot.slane %v2851, 2
      %v3159 = vrot.slane %v2847, 3
      %v3160 = vor.u32 %v3158, %v3159
      %v3161 = vsel %vm823, %v3156, %v3160
      %v3162 = vrot.slane %v2859, 2
      %v3163 = vrot.slane %v2855, 3
      %v3164 = vor.u32 %v3162, %v3163
      %v3165 = vsel %vm823, %v3160, %v3164
      %v3166 = vshrl.u32 %v2700, 16
      %v3168 = vrot.slane %v3166, 2
      %v3169 = vrot.slane %v2863, 3
      %v3170 = vor.u32 %v3168, %v3169
      %v3171 = vsel %vm823, %v3164, %v3170
      %v3173 = vshrl.u32 %v2701, 16
      %v3175 = vrot.slane %v3173, 2
      %v3176 = vshll.u32 %v2701, 16
      %v3178 = vrot.slane %v3176, 3
      %v3179 = vor.u32 %v3175, %v3178
      %v3180 = vsel %vm823, %v3170, %v3179
      %3181 = vrot.lane.b32.xlu0 %v3097, 64
      %v3182 = vpop.permute.xlu0 %3181
      %3183 = vrot.lane.b32.xlu0 %v3101, 64
      %v3184 = vpop.permute.xlu0 %3183
      %3185 = vrot.lane.b32.xlu0 %v3105, 64
      %v3186 = vpop.permute.xlu0 %3185
      %3187 = vrot.lane.b32.xlu0 %v3109, 64
      %v3188 = vpop.permute.xlu0 %3187
      %3189 = vrot.lane.b32.xlu0 %v3113, 64
      %v3190 = vpop.permute.xlu0 %3189
      %3191 = vrot.lane.b32.xlu0 %v3117, 64
      %v3192 = vpop.permute.xlu0 %3191
      %3193 = vrot.lane.b32.xlu0 %v3121, 64
      %v3194 = vpop.permute.xlu0 %3193
      %3195 = vrot.lane.b32.xlu0 %v3125, 64
      %v3196 = vpop.permute.xlu0 %3195
      %3197 = vrot.lane.b32.xlu0 %v3129, 64
      %v3198 = vpop.permute.xlu0 %3197
      %3199 = vrot.lane.b32.xlu0 %v3133, 64
      %v3200 = vpop.permute.xlu0 %3199
      %3201 = vrot.lane.b32.xlu0 %v3137, 64
      %v3202 = vpop.permute.xlu0 %3201
      %3203 = vrot.lane.b32.xlu0 %v3141, 64
      %v3204 = vpop.permute.xlu0 %3203
      %3205 = vrot.lane.b32.xlu0 %v3145, 64
      %v3206 = vpop.permute.xlu0 %3205
      %3207 = vrot.lane.b32.xlu0 %v3149, 64
      %v3208 = vpop.permute.xlu0 %3207
      %3209 = vrot.lane.b32.xlu0 %v3153, 64
      %v3210 = vpop.permute.xlu0 %3209
      %3211 = vrot.lane.b32.xlu0 %v3157, 64
      %v3212 = vpop.permute.xlu0 %3211
      %3213 = vrot.lane.b32.xlu0 %v3161, 64
      %v3214 = vpop.permute.xlu0 %3213
      %3215 = vrot.lane.b32.xlu0 %v3165, 64
      %v3216 = vpop.permute.xlu0 %3215
      %3217 = vrot.lane.b32.xlu0 %v3171, 64
      %v3218 = vpop.permute.xlu0 %3217
      %3219 = vrot.lane.b32.xlu0 %v3180, 64
      %v3220 = vpop.permute.xlu0 %3219
      %v3221 = vrot.slane %v2681, 3
      %v3222 = vrot.slane %v2682, 3
      %v3223 = vsel %vm966, %v3221, %v3222
      %v3224 = vrot.slane %v2683, 3
      %v3225 = vsel %vm966, %v3222, %v3224
      %v3226 = vrot.slane %v2684, 3
      %v3227 = vsel %vm966, %v3224, %v3226
      %v3228 = vrot.slane %v2685, 3
      %v3229 = vsel %vm966, %v3226, %v3228
      %v3230 = vrot.slane %v2686, 3
      %v3231 = vsel %vm966, %v3228, %v3230
      %v3232 = vrot.slane %v2687, 3
      %v3233 = vsel %vm966, %v3230, %v3232
      %v3234 = vrot.slane %v2688, 3
      %v3235 = vsel %vm966, %v3232, %v3234
      %v3236 = vrot.slane %v2689, 3
      %v3237 = vsel %vm966, %v3234, %v3236
      %v3238 = vrot.slane %v2690, 3
      %v3239 = vsel %vm966, %v3236, %v3238
      %v3240 = vrot.slane %v2691, 3
      %v3241 = vsel %vm966, %v3238, %v3240
      %v3242 = vrot.slane %v2692, 3
      %v3243 = vsel %vm966, %v3240, %v3242
      %v3244 = vrot.slane %v2693, 3
      %v3245 = vsel %vm966, %v3242, %v3244
      %v3246 = vrot.slane %v2694, 3
      %v3247 = vsel %vm966, %v3244, %v3246
      %v3248 = vrot.slane %v2695, 3
      %v3249 = vsel %vm966, %v3246, %v3248
      %v3250 = vrot.slane %v2696, 3
      %v3251 = vsel %vm966, %v3248, %v3250
      %v3252 = vrot.slane %v2697, 3
      %v3253 = vsel %vm966, %v3250, %v3252
      %v3254 = vrot.slane %v2698, 3
      %v3255 = vsel %vm966, %v3252, %v3254
      %v3256 = vrot.slane %v2699, 3
      %v3257 = vsel %vm966, %v3254, %v3256
      %v3258 = vrot.slane %v2700, 3
      %v3259 = vsel %vm966, %v3256, %v3258
      %v3260 = vrot.slane %v2701, 3
      %v3261 = vsel %vm966, %v3258, %v3260
      %3262 = vrot.lane.b32.xlu0 %v3223, 80
      %v3263 = vpop.permute.xlu0 %3262
      %3264 = vrot.lane.b32.xlu0 %v3225, 80
      %v3265 = vpop.permute.xlu0 %3264
      %3266 = vrot.lane.b32.xlu0 %v3227, 80
      %v3267 = vpop.permute.xlu0 %3266
      %3268 = vrot.lane.b32.xlu0 %v3229, 80
      %v3269 = vpop.permute.xlu0 %3268
      %3270 = vrot.lane.b32.xlu0 %v3231, 80
      %v3271 = vpop.permute.xlu0 %3270
      %3272 = vrot.lane.b32.xlu0 %v3233, 80
      %v3273 = vpop.permute.xlu0 %3272
      %3274 = vrot.lane.b32.xlu0 %v3235, 80
      %v3275 = vpop.permute.xlu0 %3274
      %3276 = vrot.lane.b32.xlu0 %v3237, 80
      %v3277 = vpop.permute.xlu0 %3276
      %3278 = vrot.lane.b32.xlu0 %v3239, 80
      %v3279 = vpop.permute.xlu0 %3278
      %3280 = vrot.lane.b32.xlu0 %v3241, 80
      %v3281 = vpop.permute.xlu0 %3280
      %3282 = vrot.lane.b32.xlu0 %v3243, 80
      %v3283 = vpop.permute.xlu0 %3282
      %3284 = vrot.lane.b32.xlu0 %v3245, 80
      %v3285 = vpop.permute.xlu0 %3284
      %3286 = vrot.lane.b32.xlu0 %v3247, 80
      %v3287 = vpop.permute.xlu0 %3286
      %3288 = vrot.lane.b32.xlu0 %v3249, 80
      %v3289 = vpop.permute.xlu0 %3288
      %3290 = vrot.lane.b32.xlu0 %v3251, 80
      %v3291 = vpop.permute.xlu0 %3290
      %3292 = vrot.lane.b32.xlu0 %v3253, 80
      %v3293 = vpop.permute.xlu0 %3292
      %3294 = vrot.lane.b32.xlu0 %v3255, 80
      %v3295 = vpop.permute.xlu0 %3294
      %3296 = vrot.lane.b32.xlu0 %v3257, 80
      %v3297 = vpop.permute.xlu0 %3296
      %3298 = vrot.lane.b32.xlu0 %v3259, 80
      %v3299 = vpop.permute.xlu0 %3298
      %3300 = vrot.lane.b32.xlu0 %v3261, 80
      %v3301 = vpop.permute.xlu0 %3300
      %v3303 = vrot.slane %v2682, 4
      %v3304 = vrot.slane %v2683, 4
      %v3305 = vsel %vm1060, %v3303, %v3304
      %v3306 = vrot.slane %v2684, 4
      %v3307 = vsel %vm1060, %v3304, %v3306
      %v3308 = vrot.slane %v2685, 4
      %v3309 = vsel %vm1060, %v3306, %v3308
      %v3310 = vrot.slane %v2686, 4
      %v3311 = vsel %vm1060, %v3308, %v3310
      %v3312 = vrot.slane %v2687, 4
      %v3313 = vsel %vm1060, %v3310, %v3312
      %v3314 = vrot.slane %v2688, 4
      %v3315 = vsel %vm1060, %v3312, %v3314
      %v3316 = vrot.slane %v2689, 4
      %v3317 = vsel %vm1060, %v3314, %v3316
      %v3318 = vrot.slane %v2690, 4
      %v3319 = vsel %vm1060, %v3316, %v3318
      %v3320 = vrot.slane %v2691, 4
      %v3321 = vsel %vm1060, %v3318, %v3320
      %v3322 = vrot.slane %v2692, 4
      %v3323 = vsel %vm1060, %v3320, %v3322
      %v3324 = vrot.slane %v2693, 4
      %v3325 = vsel %vm1060, %v3322, %v3324
      %v3326 = vrot.slane %v2694, 4
      %v3327 = vsel %vm1060, %v3324, %v3326
      %v3328 = vrot.slane %v2695, 4
      %v3329 = vsel %vm1060, %v3326, %v3328
      %v3330 = vrot.slane %v2696, 4
      %v3331 = vsel %vm1060, %v3328, %v3330
      %v3332 = vrot.slane %v2697, 4
      %v3333 = vsel %vm1060, %v3330, %v3332
      %v3334 = vrot.slane %v2698, 4
      %v3335 = vsel %vm1060, %v3332, %v3334
      %v3336 = vrot.slane %v2699, 4
      %v3337 = vsel %vm1060, %v3334, %v3336
      %v3338 = vrot.slane %v2700, 4
      %v3339 = vsel %vm1060, %v3336, %v3338
      %v3340 = vrot.slane %v2701, 4
      %v3341 = vsel %vm1060, %v3338, %v3340
      %v3342 = vrot.slane %v2702, 4
      %v3343 = vsel %vm1060, %v3340, %v3342
      %3344 = vrot.lane.b32.xlu0 %v3305, 96
      %v3345 = vpop.permute.xlu0 %3344
      %3346 = vrot.lane.b32.xlu0 %v3307, 96
      %v3347 = vpop.permute.xlu0 %3346
      %3348 = vrot.lane.b32.xlu0 %v3309, 96
      %v3349 = vpop.permute.xlu0 %3348
      %3350 = vrot.lane.b32.xlu0 %v3311, 96
      %v3351 = vpop.permute.xlu0 %3350
      %3352 = vrot.lane.b32.xlu0 %v3313, 96
      %v3353 = vpop.permute.xlu0 %3352
      %3354 = vrot.lane.b32.xlu0 %v3315, 96
      %v3355 = vpop.permute.xlu0 %3354
      %3356 = vrot.lane.b32.xlu0 %v3317, 96
      %v3357 = vpop.permute.xlu0 %3356
      %3358 = vrot.lane.b32.xlu0 %v3319, 96
      %v3359 = vpop.permute.xlu0 %3358
      %3360 = vrot.lane.b32.xlu0 %v3321, 96
      %v3361 = vpop.permute.xlu0 %3360
      %3362 = vrot.lane.b32.xlu0 %v3323, 96
      %v3363 = vpop.permute.xlu0 %3362
      %3364 = vrot.lane.b32.xlu0 %v3325, 96
      %v3365 = vpop.permute.xlu0 %3364
      %3366 = vrot.lane.b32.xlu0 %v3327, 96
      %v3367 = vpop.permute.xlu0 %3366
      %3368 = vrot.lane.b32.xlu0 %v3329, 96
      %v3369 = vpop.permute.xlu0 %3368
      %3370 = vrot.lane.b32.xlu0 %v3331, 96
      %v3371 = vpop.permute.xlu0 %3370
      %3372 = vrot.lane.b32.xlu0 %v3333, 96
      %v3373 = vpop.permute.xlu0 %3372
      %3374 = vrot.lane.b32.xlu0 %v3335, 96
      %v3375 = vpop.permute.xlu0 %3374
      %3376 = vrot.lane.b32.xlu0 %v3337, 96
      %v3377 = vpop.permute.xlu0 %3376
      %3378 = vrot.lane.b32.xlu0 %v3339, 96
      %v3379 = vpop.permute.xlu0 %3378
      %3380 = vrot.lane.b32.xlu0 %v3341, 96
      %v3381 = vpop.permute.xlu0 %3380
      %3382 = vrot.lane.b32.xlu0 %v3343, 96
      %v3383 = vpop.permute.xlu0 %3382
      %v3384 = vrot.slane %v2723, 4
      %v3385 = vrot.slane %v2719, 5
      %v3386 = vor.u32 %v3384, %v3385
      %v3387 = vrot.slane %v2731, 4
      %v3388 = vrot.slane %v2727, 5
      %v3389 = vor.u32 %v3387, %v3388
      %v3390 = vsel %vm1154, %v3386, %v3389
      %v3391 = vrot.slane %v2739, 4
      %v3392 = vrot.slane %v2735, 5
      %v3393 = vor.u32 %v3391, %v3392
      %v3394 = vsel %vm1154, %v3389, %v3393
      %v3395 = vrot.slane %v2747, 4
      %v3396 = vrot.slane %v2743, 5
      %v3397 = vor.u32 %v3395, %v3396
      %v3398 = vsel %vm1154, %v3393, %v3397
      %v3399 = vrot.slane %v2755, 4
      %v3400 = vrot.slane %v2751, 5
      %v3401 = vor.u32 %v3399, %v3400
      %v3402 = vsel %vm1154, %v3397, %v3401
      %v3403 = vrot.slane %v2763, 4
      %v3404 = vrot.slane %v2759, 5
      %v3405 = vor.u32 %v3403, %v3404
      %v3406 = vsel %vm1154, %v3401, %v3405
      %v3407 = vrot.slane %v2771, 4
      %v3408 = vrot.slane %v2767, 5
      %v3409 = vor.u32 %v3407, %v3408
      %v3410 = vsel %vm1154, %v3405, %v3409
      %v3411 = vrot.slane %v2779, 4
      %v3412 = vrot.slane %v2775, 5
      %v3413 = vor.u32 %v3411, %v3412
      %v3414 = vsel %vm1154, %v3409, %v3413
      %v3415 = vrot.slane %v2787, 4
      %v3416 = vrot.slane %v2783, 5
      %v3417 = vor.u32 %v3415, %v3416
      %v3418 = vsel %vm1154, %v3413, %v3417
      %v3419 = vrot.slane %v2795, 4
      %v3420 = vrot.slane %v2791, 5
      %v3421 = vor.u32 %v3419, %v3420
      %v3422 = vsel %vm1154, %v3417, %v3421
      %v3423 = vrot.slane %v2803, 4
      %v3424 = vrot.slane %v2799, 5
      %v3425 = vor.u32 %v3423, %v3424
      %v3426 = vsel %vm1154, %v3421, %v3425
      %v3427 = vrot.slane %v2811, 4
      %v3428 = vrot.slane %v2807, 5
      %v3429 = vor.u32 %v3427, %v3428
      %v3430 = vsel %vm1154, %v3425, %v3429
      %v3431 = vrot.slane %v2819, 4
      %v3432 = vrot.slane %v2815, 5
      %v3433 = vor.u32 %v3431, %v3432
      %v3434 = vsel %vm1154, %v3429, %v3433
      %v3435 = vrot.slane %v2827, 4
      %v3436 = vrot.slane %v2823, 5
      %v3437 = vor.u32 %v3435, %v3436
      %v3438 = vsel %vm1154, %v3433, %v3437
      %v3439 = vrot.slane %v2835, 4
      %v3440 = vrot.slane %v2831, 5
      %v3441 = vor.u32 %v3439, %v3440
      %v3442 = vsel %vm1154, %v3437, %v3441
      %v3443 = vrot.slane %v2843, 4
      %v3444 = vrot.slane %v2839, 5
      %v3445 = vor.u32 %v3443, %v3444
      %v3446 = vsel %vm1154, %v3441, %v3445
      %v3447 = vrot.slane %v2851, 4
      %v3448 = vrot.slane %v2847, 5
      %v3449 = vor.u32 %v3447, %v3448
      %v3450 = vsel %vm1154, %v3445, %v3449
      %v3451 = vrot.slane %v2859, 4
      %v3452 = vrot.slane %v2855, 5
      %v3453 = vor.u32 %v3451, %v3452
      %v3454 = vsel %vm1154, %v3449, %v3453
      %v3455 = vrot.slane %v3166, 4
      %v3456 = vrot.slane %v2863, 5
      %v3457 = vor.u32 %v3455, %v3456
      %v3458 = vsel %vm1154, %v3453, %v3457
      %v3459 = vrot.slane %v3173, 4
      %v3460 = vrot.slane %v3176, 5
      %v3461 = vor.u32 %v3459, %v3460
      %v3462 = vsel %vm1154, %v3457, %v3461
      %v3464 = vshrl.u32 %v2702, 16
      %v3466 = vrot.slane %v3464, 4
      %v3467 = vshll.u32 %v2702, 16
      %v3469 = vrot.slane %v3467, 5
      %v3470 = vor.u32 %v3466, %v3469
      %v3471 = vsel %vm1154, %v3461, %v3470
      %3472 = vrot.lane.b32.xlu0 %v3390, 112
      %v3473 = vpop.permute.xlu0 %3472
      %3474 = vrot.lane.b32.xlu0 %v3394, 112
      %v3475 = vpop.permute.xlu0 %3474
      %3476 = vrot.lane.b32.xlu0 %v3398, 112
      %v3477 = vpop.permute.xlu0 %3476
      %3478 = vrot.lane.b32.xlu0 %v3402, 112
      %v3479 = vpop.permute.xlu0 %3478
      %3480 = vrot.lane.b32.xlu0 %v3406, 112
      %v3481 = vpop.permute.xlu0 %3480
      %3482 = vrot.lane.b32.xlu0 %v3410, 112
      %v3483 = vpop.permute.xlu0 %3482
      %3484 = vrot.lane.b32.xlu0 %v3414, 112
      %v3485 = vpop.permute.xlu0 %3484
      %3486 = vrot.lane.b32.xlu0 %v3418, 112
      %v3487 = vpop.permute.xlu0 %3486
      %3488 = vrot.lane.b32.xlu0 %v3422, 112
      %v3489 = vpop.permute.xlu0 %3488
      %3490 = vrot.lane.b32.xlu0 %v3426, 112
      %v3491 = vpop.permute.xlu0 %3490
      %3492 = vrot.lane.b32.xlu0 %v3430, 112
      %v3493 = vpop.permute.xlu0 %3492
      %3494 = vrot.lane.b32.xlu0 %v3434, 112
      %v3495 = vpop.permute.xlu0 %3494
      %3496 = vrot.lane.b32.xlu0 %v3438, 112
      %v3497 = vpop.permute.xlu0 %3496
      %3498 = vrot.lane.b32.xlu0 %v3442, 112
      %v3499 = vpop.permute.xlu0 %3498
      %3500 = vrot.lane.b32.xlu0 %v3446, 112
      %v3501 = vpop.permute.xlu0 %3500
      %3502 = vrot.lane.b32.xlu0 %v3450, 112
      %v3503 = vpop.permute.xlu0 %3502
      %3504 = vrot.lane.b32.xlu0 %v3454, 112
      %v3505 = vpop.permute.xlu0 %3504
      %3506 = vrot.lane.b32.xlu0 %v3458, 112
      %v3507 = vpop.permute.xlu0 %3506
      %3508 = vrot.lane.b32.xlu0 %v3462, 112
      %v3509 = vpop.permute.xlu0 %3508
      %3510 = vrot.lane.b32.xlu0 %v3471, 112
      %v3511 = vpop.permute.xlu0 %3510
      %v3512 = vrot.slane %v2682, 5
      %v3513 = vrot.slane %v2683, 5
      %v3514 = vsel %vm1306, %v3512, %v3513
      %v3515 = vrot.slane %v2684, 5
      %v3516 = vsel %vm1306, %v3513, %v3515
      %v3517 = vrot.slane %v2685, 5
      %v3518 = vsel %vm1306, %v3515, %v3517
      %v3519 = vrot.slane %v2686, 5
      %v3520 = vsel %vm1306, %v3517, %v3519
      %v3521 = vrot.slane %v2687, 5
      %v3522 = vsel %vm1306, %v3519, %v3521
      %v3523 = vrot.slane %v2688, 5
      %v3524 = vsel %vm1306, %v3521, %v3523
      %v3525 = vrot.slane %v2689, 5
      %v3526 = vsel %vm1306, %v3523, %v3525
      %v3527 = vrot.slane %v2690, 5
      %v3528 = vsel %vm1306, %v3525, %v3527
      %v3529 = vrot.slane %v2691, 5
      %v3530 = vsel %vm1306, %v3527, %v3529
      %v3531 = vrot.slane %v2692, 5
      %v3532 = vsel %vm1306, %v3529, %v3531
      %v3533 = vrot.slane %v2693, 5
      %v3534 = vsel %vm1306, %v3531, %v3533
      %v3535 = vrot.slane %v2694, 5
      %v3536 = vsel %vm1306, %v3533, %v3535
      %v3537 = vrot.slane %v2695, 5
      %v3538 = vsel %vm1306, %v3535, %v3537
      %v3539 = vrot.slane %v2696, 5
      %v3540 = vsel %vm1306, %v3537, %v3539
      %v3541 = vrot.slane %v2697, 5
      %v3542 = vsel %vm1306, %v3539, %v3541
      %v3543 = vrot.slane %v2698, 5
      %v3544 = vsel %vm1306, %v3541, %v3543
      %v3545 = vrot.slane %v2699, 5
      %v3546 = vsel %vm1306, %v3543, %v3545
      %v3547 = vrot.slane %v2700, 5
      %v3548 = vsel %vm1306, %v3545, %v3547
      %v3549 = vrot.slane %v2701, 5
      %v3550 = vsel %vm1306, %v3547, %v3549
      %v3551 = vrot.slane %v2702, 5
      %v3552 = vsel %vm1306, %v3549, %v3551
      %v3554 = vsel %vm1354, %v2680, %v2868
      %v3556 = vsel %vm1354, %v2681, %v2870
      %v3558 = vsel %vm1354, %v2682, %v2872
      %v3560 = vsel %vm1354, %v2683, %v2874
      %v3562 = vsel %vm1354, %v2684, %v2876
      %v3564 = vsel %vm1354, %v2685, %v2878
      %v3566 = vsel %vm1354, %v2686, %v2880
      %v3568 = vsel %vm1354, %v2687, %v2882
      %v3570 = vsel %vm1354, %v2688, %v2884
      %v3572 = vsel %vm1354, %v2689, %v2886
      %v3574 = vsel %vm1354, %v2690, %v2888
      %v3576 = vsel %vm1354, %v2691, %v2890
      %v3578 = vsel %vm1354, %v2692, %v2892
      %v3580 = vsel %vm1354, %v2693, %v2894
      %v3582 = vsel %vm1354, %v2694, %v2896
      %v3584 = vsel %vm1354, %v2695, %v2898
      %v3586 = vsel %vm1354, %v2696, %v2900
      %v3588 = vsel %vm1354, %v2697, %v2902
      %v3590 = vsel %vm1354, %v2698, %v2904
      %v3592 = vsel %vm1354, %v2699, %v2906
      %v3594 = vsel %vm1401, %v3554, %v2970
      %v3596 = vsel %vm1401, %v3556, %v2972
      %v3598 = vsel %vm1401, %v3558, %v2974
      %v3600 = vsel %vm1401, %v3560, %v2976
      %v3602 = vsel %vm1401, %v3562, %v2978
      %v3604 = vsel %vm1401, %v3564, %v2980
      %v3606 = vsel %vm1401, %v3566, %v2982
      %v3608 = vsel %vm1401, %v3568, %v2984
      %v3610 = vsel %vm1401, %v3570, %v2986
      %v3612 = vsel %vm1401, %v3572, %v2988
      %v3614 = vsel %vm1401, %v3574, %v2990
      %v3616 = vsel %vm1401, %v3576, %v2992
      %v3618 = vsel %vm1401, %v3578, %v2994
      %v3620 = vsel %vm1401, %v3580, %v2996
      %v3622 = vsel %vm1401, %v3582, %v2998
      %v3624 = vsel %vm1401, %v3584, %v3000
      %v3626 = vsel %vm1401, %v3586, %v3002
      %v3628 = vsel %vm1401, %v3588, %v3004
      %v3630 = vsel %vm1401, %v3590, %v3006
      %v3632 = vsel %vm1401, %v3592, %v3008
      %v3634 = vsel %vm1448, %v3594, %v3052
      %v3636 = vsel %vm1448, %v3596, %v3054
      %v3638 = vsel %vm1448, %v3598, %v3056
      %v3640 = vsel %vm1448, %v3600, %v3058
      %v3642 = vsel %vm1448, %v3602, %v3060
      %v3644 = vsel %vm1448, %v3604, %v3062
      %v3646 = vsel %vm1448, %v3606, %v3064
      %v3648 = vsel %vm1448, %v3608, %v3066
      %v3650 = vsel %vm1448, %v3610, %v3068
      %v3652 = vsel %vm1448, %v3612, %v3070
      %v3654 = vsel %vm1448, %v3614, %v3072
      %v3656 = vsel %vm1448, %v3616, %v3074
      %v3658 = vsel %vm1448, %v3618, %v3076
      %v3660 = vsel %vm1448, %v3620, %v3078
      %v3662 = vsel %vm1448, %v3622, %v3080
      %v3664 = vsel %vm1448, %v3624, %v3082
      %v3666 = vsel %vm1448, %v3626, %v3084
      %v3668 = vsel %vm1448, %v3628, %v3086
      %v3670 = vsel %vm1448, %v3630, %v3088
      %v3672 = vsel %vm1448, %v3632, %v3090
      %v3674 = vsel %vm1495, %v3634, %v3182
      %v3676 = vsel %vm1495, %v3636, %v3184
      %v3678 = vsel %vm1495, %v3638, %v3186
      %v3680 = vsel %vm1495, %v3640, %v3188
      %v3682 = vsel %vm1495, %v3642, %v3190
      %v3684 = vsel %vm1495, %v3644, %v3192
      %v3686 = vsel %vm1495, %v3646, %v3194
      %v3688 = vsel %vm1495, %v3648, %v3196
      %v3690 = vsel %vm1495, %v3650, %v3198
      %v3692 = vsel %vm1495, %v3652, %v3200
      %v3694 = vsel %vm1495, %v3654, %v3202
      %v3696 = vsel %vm1495, %v3656, %v3204
      %v3698 = vsel %vm1495, %v3658, %v3206
      %v3700 = vsel %vm1495, %v3660, %v3208
      %v3702 = vsel %vm1495, %v3662, %v3210
      %v3704 = vsel %vm1495, %v3664, %v3212
      %v3706 = vsel %vm1495, %v3666, %v3214
      %v3708 = vsel %vm1495, %v3668, %v3216
      %v3710 = vsel %vm1495, %v3670, %v3218
      %v3712 = vsel %vm1495, %v3672, %v3220
      %v3714 = vsel %vm1542, %v3674, %v3263
      %v3716 = vsel %vm1542, %v3676, %v3265
      %v3718 = vsel %vm1542, %v3678, %v3267
      %v3720 = vsel %vm1542, %v3680, %v3269
      %v3722 = vsel %vm1542, %v3682, %v3271
      %v3724 = vsel %vm1542, %v3684, %v3273
      %v3726 = vsel %vm1542, %v3686, %v3275
      %v3728 = vsel %vm1542, %v3688, %v3277
      %v3730 = vsel %vm1542, %v3690, %v3279
      %v3732 = vsel %vm1542, %v3692, %v3281
      %v3734 = vsel %vm1542, %v3694, %v3283
      %v3736 = vsel %vm1542, %v3696, %v3285
      %v3738 = vsel %vm1542, %v3698, %v3287
      %v3740 = vsel %vm1542, %v3700, %v3289
      %v3742 = vsel %vm1542, %v3702, %v3291
      %v3744 = vsel %vm1542, %v3704, %v3293
      %v3746 = vsel %vm1542, %v3706, %v3295
      %v3748 = vsel %vm1542, %v3708, %v3297
      %v3750 = vsel %vm1542, %v3710, %v3299
      %v3752 = vsel %vm1542, %v3712, %v3301
      %v3754 = vsel %vm1589, %v3714, %v3345
      %v3756 = vsel %vm1589, %v3716, %v3347
      %v3758 = vsel %vm1589, %v3718, %v3349
      %v3760 = vsel %vm1589, %v3720, %v3351
      %v3762 = vsel %vm1589, %v3722, %v3353
      %v3764 = vsel %vm1589, %v3724, %v3355
      %v3766 = vsel %vm1589, %v3726, %v3357
      %v3768 = vsel %vm1589, %v3728, %v3359
      %v3770 = vsel %vm1589, %v3730, %v3361
      %v3772 = vsel %vm1589, %v3732, %v3363
      %v3774 = vsel %vm1589, %v3734, %v3365
      %v3776 = vsel %vm1589, %v3736, %v3367
      %v3778 = vsel %vm1589, %v3738, %v3369
      %v3780 = vsel %vm1589, %v3740, %v3371
      %v3782 = vsel %vm1589, %v3742, %v3373
      %v3784 = vsel %vm1589, %v3744, %v3375
      %v3786 = vsel %vm1589, %v3746, %v3377
      %v3788 = vsel %vm1589, %v3748, %v3379
      %v3790 = vsel %vm1589, %v3750, %v3381
      %v3792 = vsel %vm1589, %v3752, %v3383
      %v3794 = vsel %vm1636, %v3754, %v3473
      %v3797 = vsel %vm1636, %v3756, %v3475
      %v3800 = vsel %vm1636, %v3758, %v3477
      %v3803 = vsel %vm1636, %v3760, %v3479
      %v3806 = vsel %vm1636, %v3762, %v3481
      %v3809 = vsel %vm1636, %v3764, %v3483
      %v3812 = vsel %vm1636, %v3766, %v3485
      %v3815 = vsel %vm1636, %v3768, %v3487
      %v3818 = vsel %vm1636, %v3770, %v3489
      %v3821 = vsel %vm1636, %v3772, %v3491
      %v3824 = vsel %vm1636, %v3774, %v3493
      %v3827 = vsel %vm1636, %v3776, %v3495
      %v3830 = vsel %vm1636, %v3778, %v3497
      %v3833 = vsel %vm1636, %v3780, %v3499
      %v3836 = vsel %vm1636, %v3782, %v3501
      %v3839 = vsel %vm1636, %v3784, %v3503
      %v3842 = vsel %vm1636, %v3786, %v3505
      %v3845 = vsel %vm1636, %v3788, %v3507
      %v3848 = vsel %vm1636, %v3790, %v3509
      %v3851 = vsel %vm1636, %v3792, %v3511
      %v3853 = vld [vmem:[%s5] sm:$0xf]
      %v3854 = vld [vmem:[%s5 + $0x4] sm:$0xf]
      %v3855 = vld [vmem:[%s5 + $0x8] sm:$0xf]
      %v3856 = vld [vmem:[%s5 + $0xc] sm:$0xf]
      %v3857 = vld [vmem:[%s5 + $0x10] sm:$0xf]
      %v3858 = vld [vmem:[%s5 + $0x14] sm:$0xf]
      %v3859 = vld [vmem:[%s5 + $0x18] sm:$0xf]
      %v3860 = vld [vmem:[%s5 + $0x1c] sm:$0xf]
      %v3861 = vld [vmem:[%s5 + $0x20] sm:$0xf]
      %v3862 = vld [vmem:[%s5 + $0x24] sm:$0xf]
      %v3863 = vld [vmem:[%s5 + $0x28] sm:$0xf]
      %v3864 = vld [vmem:[%s5 + $0x2c] sm:$0xf]
      %v3865 = vld [vmem:[%s5 + $0x30] sm:$0xf]
      %v3866 = vld [vmem:[%s5 + $0x34] sm:$0xf]
      %v3867 = vld [vmem:[%s5 + $0x38] sm:$0xf]
      %v3868 = vld [vmem:[%s5 + $0x3c] sm:$0xf]
      %v3869 = vld [vmem:[%s5 + $0x40] sm:$0xf]
      %v3870 = vld [vmem:[%s5 + $0x44] sm:$0xf]
      %v3871 = vld [vmem:[%s6] sm:$0x1]
      %v3873 = vlaneseq
      %v3874 = vshrl.u32 %v3873, 7
      %v3875 = vsub.s32 0, %v3874
      %v3876 = vrot.slane %v3871, %v3875
      %v3896 = vunpack.c.l.b16 %v3853
      %v3897 = vunpack.c.l.b16 %v3854
      %v3898 = vunpack.c.l.b16 %v3855
      %v3899 = vunpack.c.l.b16 %v3856
      %v3900 = vunpack.c.l.b16 %v3857
      %v3901 = vunpack.c.l.b16 %v3858
      %v3902 = vunpack.c.l.b16 %v3859
      %v3903 = vunpack.c.l.b16 %v3860
      %v3904 = vunpack.c.l.b16 %v3861
      %v3905 = vunpack.c.l.b16 %v3862
      %v3906 = vunpack.c.l.b16 %v3863
      %v3907 = vunpack.c.l.b16 %v3864
      %v3908 = vunpack.c.l.b16 %v3865
      %v3909 = vunpack.c.l.b16 %v3866
      %v3910 = vunpack.c.l.b16 %v3867
      %v3911 = vunpack.c.l.b16 %v3868
      %v3912 = vunpack.c.l.b16 %v3869
      %v3913 = vunpack.c.l.b16 %v3870
      %v3914 = vpack.c.b16 %v3897, %v3896
      %v3915 = vpack.c.b16 %v3899, %v3898
      %v3916 = vpack.c.b16 %v3901, %v3900
      %v3917 = vpack.c.b16 %v3903, %v3902
      %v3918 = vpack.c.b16 %v3905, %v3904
      %v3919 = vpack.c.b16 %v3907, %v3906
      %v3920 = vpack.c.b16 %v3909, %v3908
      %v3921 = vpack.c.b16 %v3911, %v3910
      %v3922 = vpack.c.b16 %v3913, %v3912
      %v3933 = vsel %vm1354, %v3514, 0
      %v3936 = vsel %vm1354, %v3516, 0
      %v3939 = vsel %vm1354, %v3518, 0
      %v3942 = vsel %vm1354, %v3520, 0
      %v3945 = vsel %vm1354, %v3522, 0
      %v3948 = vsel %vm1354, %v3524, 0
      %v3951 = vsel %vm1354, %v3526, 0
      %v3954 = vsel %vm1354, %v3528, 0
      %v3957 = vsel %vm1354, %v3530, 0
      %v3960 = vsel %vm1354, %v3532, 0
      %v3963 = vsel %vm1354, %v3534, 0
      %v3966 = vsel %vm1354, %v3536, 0
      %v3969 = vsel %vm1354, %v3538, 0
      %v3972 = vsel %vm1354, %v3540, 0
      %v3975 = vsel %vm1354, %v3542, 0
      %v3978 = vsel %vm1354, %v3544, 0
      %v3981 = vsel %vm1354, %v3546, 0
      %v3984 = vsel %vm1354, %v3548, 0
      %v3987 = vsel %vm1354, %v3550, 0
      %v3990 = vsel %vm1354, %v3552, 0
      %3992 = vmatprep.subr.bf16.mxu0 0
      %3993 = vmatpush1.bf16.msra.mxu0 %v3914
      %3994 = vmatprep.subr.bf16.mxu0 0
      %3995 = vmatpush1.bf16.msra.mxu0 %v3915
      %3996 = vmatprep.subr.bf16.mxu0 0
      %3997 = vmatpush1.bf16.msra.mxu0 %v3916
      %3998 = vmatprep.subr.bf16.mxu0 0
      %3999 = vmatpush1.bf16.msra.mxu0 %v3917
      %4000 = vmatprep.subr.bf16.mxu0 0
      %4001 = vmatpush1.bf16.msra.mxu0 %v3918
      %4002 = vmatprep.subr.bf16.mxu0 0
      %4003 = vmatpush1.bf16.msra.mxu0 %v3919
      %4004 = vmatprep.subr.bf16.mxu0 0
      %4005 = vmatpush1.bf16.msra.mxu0 %v3920
      %4006 = vmatprep.subr.bf16.mxu0 0
      %4007 = vmatpush1.bf16.msra.mxu0 %v3921
      %4008 = vmatprep.subr.bf16.mxu0 0
      %4009 = vmatpush1.bf16.msra.mxu0 %v3922
      %4010 = vmatprep.subr.bf16.mxu0 0
      %4011 = vmatpush1.bf16.msra.mxu0 0
      %4012 = vmatprep.subr.bf16.mxu0 0
      %4013 = vmatpush1.bf16.msra.mxu0 0
      %4014 = vmatprep.subr.bf16.mxu0 0
      %4015 = vmatpush1.bf16.msra.mxu0 0
      %4016 = vmatprep.subr.bf16.mxu0 0
      %4017 = vmatpush1.bf16.msra.mxu0 0
      %4018 = vmatprep.subr.bf16.mxu0 0
      %4019 = vmatpush1.bf16.msra.mxu0 0
      %4020 = vmatprep.subr.bf16.mxu0 0
      %4021 = vmatpush1.bf16.msra.mxu0 0
      %4022 = vmatprep.subr.bf16.mxu0 0
      %4023 = vmatpush1.bf16.msra.mxu0 0
      %4024 = vmatprep.mubr.bf16.mxu0 %v3933
      %4025 = vmatmul.mubr.bf16.gmra.mrb[0].mxu0 %v3794
      %v4026 = vpop.f32.mrb[0].mxu0
      %v4027 = vadd.f32 %v3876, %v4026
      %v4028 = vpop.f32.mrb[0].mxu0
      %v4029 = vpop.f32.mrb[0].mxu0
      %v4030 = vadd.f32 %v3876, %v4029
      %v4031 = vpop.f32.mrb[0].mxu0
      %4032 = vmatprep.mubr.bf16.mxu0 %v3936
      %4033 = vmatmul.mubr.bf16.gmra.mrb[0].mxu0 %v3797
      %v4034 = vpop.f32.mrb[0].mxu0
      %v4035 = vadd.f32 %v3876, %v4034
      %v4036 = vpop.f32.mrb[0].mxu0
      %v4037 = vpop.f32.mrb[0].mxu0
      %v4038 = vadd.f32 %v3876, %v4037
      %v4039 = vpop.f32.mrb[0].mxu0
      %4040 = vmatprep.mubr.bf16.mxu0 %v3939
      %4041 = vmatmul.mubr.bf16.gmra.mrb[0].mxu0 %v3800
      %v4042 = vpop.f32.mrb[0].mxu0
      %v4043 = vadd.f32 %v3876, %v4042
      %v4044 = vpop.f32.mrb[0].mxu0
      %v4045 = vpop.f32.mrb[0].mxu0
      %v4046 = vadd.f32 %v3876, %v4045
      %v4047 = vpop.f32.mrb[0].mxu0
      %4048 = vmatprep.mubr.bf16.mxu0 %v3942
      %4049 = vmatmul.mubr.bf16.gmra.mrb[0].mxu0 %v3803
      %v4050 = vpop.f32.mrb[0].mxu0
      %v4051 = vadd.f32 %v3876, %v4050
      %v4052 = vpop.f32.mrb[0].mxu0
      %v4053 = vpop.f32.mrb[0].mxu0
      %v4054 = vadd.f32 %v3876, %v4053
      %v4055 = vpop.f32.mrb[0].mxu0
      %4056 = vmatprep.mubr.bf16.mxu0 %v3945
      %4057 = vmatmul.mubr.bf16.gmra.mrb[0].mxu0 %v3806
      %v4058 = vpop.f32.mrb[0].mxu0
      %v4059 = vadd.f32 %v3876, %v4058
      %v4060 = vpop.f32.mrb[0].mxu0
      %v4061 = vpop.f32.mrb[0].mxu0
      %v4062 = vadd.f32 %v3876, %v4061
      %v4063 = vpop.f32.mrb[0].mxu0
      %4064 = vmatprep.mubr.bf16.mxu0 %v3948
      %4065 = vmatmul.mubr.bf16.gmra.mrb[0].mxu0 %v3809
      %v4066 = vpop.f32.mrb[0].mxu0
      %v4067 = vadd.f32 %v3876, %v4066
      %v4068 = vpop.f32.mrb[0].mxu0
      %v4069 = vpop.f32.mrb[0].mxu0
      %v4070 = vadd.f32 %v3876, %v4069
      %v4071 = vpop.f32.mrb[0].mxu0
      %4072 = vmatprep.mubr.bf16.mxu0 %v3951
      %4073 = vmatmul.mubr.bf16.gmra.mrb[0].mxu0 %v3812
      %v4074 = vpop.f32.mrb[0].mxu0
      %v4075 = vadd.f32 %v3876, %v4074
      %v4076 = vpop.f32.mrb[0].mxu0
      %v4077 = vpop.f32.mrb[0].mxu0
      %v4078 = vadd.f32 %v3876, %v4077
      %v4079 = vpop.f32.mrb[0].mxu0
      %4080 = vmatprep.mubr.bf16.mxu0 %v3954
      %4081 = vmatmul.mubr.bf16.gmra.mrb[0].mxu0 %v3815
      %v4082 = vpop.f32.mrb[0].mxu0
      %v4083 = vadd.f32 %v3876, %v4082
      %v4084 = vpop.f32.mrb[0].mxu0
      %v4085 = vpop.f32.mrb[0].mxu0
      %v4086 = vadd.f32 %v3876, %v4085
      %v4087 = vpop.f32.mrb[0].mxu0
      %4088 = vmatprep.mubr.bf16.mxu0 %v3957
      %4089 = vmatmul.mubr.bf16.gmra.mrb[0].mxu0 %v3818
      %v4090 = vpop.f32.mrb[0].mxu0
      %v4091 = vadd.f32 %v3876, %v4090
      %v4092 = vpop.f32.mrb[0].mxu0
      %v4093 = vpop.f32.mrb[0].mxu0
      %v4094 = vadd.f32 %v3876, %v4093
      %v4095 = vpop.f32.mrb[0].mxu0
      %4096 = vmatprep.mubr.bf16.mxu0 %v3960
      %4097 = vmatmul.mubr.bf16.gmra.mrb[0].mxu0 %v3821
      %v4098 = vpop.f32.mrb[0].mxu0
      %v4099 = vadd.f32 %v3876, %v4098
      %v4100 = vpop.f32.mrb[0].mxu0
      %v4101 = vpop.f32.mrb[0].mxu0
      %v4102 = vadd.f32 %v3876, %v4101
      %v4103 = vpop.f32.mrb[0].mxu0
      %4104 = vmatprep.mubr.bf16.mxu0 %v3963
      %4105 = vmatmul.mubr.bf16.gmra.mrb[0].mxu0 %v3824
      %v4106 = vpop.f32.mrb[0].mxu0
      %v4107 = vadd.f32 %v3876, %v4106
      %v4108 = vpop.f32.mrb[0].mxu0
      %v4109 = vpop.f32.mrb[0].mxu0
      %v4110 = vadd.f32 %v3876, %v4109
      %v4111 = vpop.f32.mrb[0].mxu0
      %4112 = vmatprep.mubr.bf16.mxu0 %v3966
      %4113 = vmatmul.mubr.bf16.gmra.mrb[0].mxu0 %v3827
      %v4114 = vpop.f32.mrb[0].mxu0
      %v4115 = vadd.f32 %v3876, %v4114
      %v4116 = vpop.f32.mrb[0].mxu0
      %v4117 = vpop.f32.mrb[0].mxu0
      %v4118 = vadd.f32 %v3876, %v4117
      %v4119 = vpop.f32.mrb[0].mxu0
      %4120 = vmatprep.mubr.bf16.mxu0 %v3969
      %4121 = vmatmul.mubr.bf16.gmra.mrb[0].mxu0 %v3830
      %v4122 = vpop.f32.mrb[0].mxu0
      %v4123 = vadd.f32 %v3876, %v4122
      %v4124 = vpop.f32.mrb[0].mxu0
      %v4125 = vpop.f32.mrb[0].mxu0
      %v4126 = vadd.f32 %v3876, %v4125
      %v4127 = vpop.f32.mrb[0].mxu0
      %4128 = vmatprep.mubr.bf16.mxu0 %v3972
      %4129 = vmatmul.mubr.bf16.gmra.mrb[0].mxu0 %v3833
      %v4130 = vpop.f32.mrb[0].mxu0
      %v4131 = vadd.f32 %v3876, %v4130
      %v4132 = vpop.f32.mrb[0].mxu0
      %v4133 = vpop.f32.mrb[0].mxu0
      %v4134 = vadd.f32 %v3876, %v4133
      %v4135 = vpop.f32.mrb[0].mxu0
      %4136 = vmatprep.mubr.bf16.mxu0 %v3975
      %4137 = vmatmul.mubr.bf16.gmra.mrb[0].mxu0 %v3836
      %v4138 = vpop.f32.mrb[0].mxu0
      %v4139 = vadd.f32 %v3876, %v4138
      %v4140 = vpop.f32.mrb[0].mxu0
      %v4141 = vpop.f32.mrb[0].mxu0
      %v4142 = vadd.f32 %v3876, %v4141
      %v4143 = vpop.f32.mrb[0].mxu0
      %4144 = vmatprep.mubr.bf16.mxu0 %v3978
      %4145 = vmatmul.mubr.bf16.gmra.mrb[0].mxu0 %v3839
      %v4146 = vpop.f32.mrb[0].mxu0
      %v4147 = vadd.f32 %v3876, %v4146
      %v4148 = vpop.f32.mrb[0].mxu0
      %v4149 = vpop.f32.mrb[0].mxu0
      %v4150 = vadd.f32 %v3876, %v4149
      %v4151 = vpop.f32.mrb[0].mxu0
      %4152 = vmatprep.mubr.bf16.mxu0 %v3981
      %4153 = vmatmul.mubr.bf16.gmra.mrb[0].mxu0 %v3842
      %v4154 = vpop.f32.mrb[0].mxu0
      %v4155 = vadd.f32 %v3876, %v4154
      %v4156 = vpop.f32.mrb[0].mxu0
      %v4157 = vpop.f32.mrb[0].mxu0
      %v4158 = vadd.f32 %v3876, %v4157
      %v4159 = vpop.f32.mrb[0].mxu0
      %4160 = vmatprep.mubr.bf16.mxu0 %v3984
      %4161 = vmatmul.mubr.bf16.gmra.mrb[0].mxu0 %v3845
      %v4162 = vpop.f32.mrb[0].mxu0
      %v4163 = vadd.f32 %v3876, %v4162
      %v4164 = vpop.f32.mrb[0].mxu0
      %v4165 = vpop.f32.mrb[0].mxu0
      %v4166 = vadd.f32 %v3876, %v4165
      %v4167 = vpop.f32.mrb[0].mxu0
      %4168 = vmatprep.mubr.bf16.mxu0 %v3987
      %4169 = vmatmul.mubr.bf16.gmra.mrb[0].mxu0 %v3848
      %v4170 = vpop.f32.mrb[0].mxu0
      %v4171 = vadd.f32 %v3876, %v4170
      %v4172 = vpop.f32.mrb[0].mxu0
      %v4173 = vpop.f32.mrb[0].mxu0
      %v4174 = vadd.f32 %v3876, %v4173
      %v4175 = vpop.f32.mrb[0].mxu0
      %4176 = vmatprep.mubr.bf16.mxu0 %v3990
      %4177 = vmatmul.mubr.bf16.gmra.mrb[0].mxu0 %v3851
      %v4178 = vpop.f32.mrb[0].mxu0
      %v4179 = vadd.f32 %v3876, %v4178
      %v4180 = vpop.f32.mrb[0].mxu0
      %v4181 = vpop.f32.mrb[0].mxu0
      %v4182 = vadd.f32 %v3876, %v4181
      %v4183 = vpop.f32.mrb[0].mxu0
      %4184 = vdwg.mxu0
      %vm4226 = vcmask 1045504
      %v4227 = vrot.slane %v313, 2
      %v4228 = vrot.slane %v314, 2
      %v4229 = vsel %vm4226, %v4227, %v4228
      %v4230 = vrot.slane %v315, 2
      %v4231 = vsel %vm4226, %v4228, %v4230
      %v4232 = vrot.slane %v316, 2
      %v4233 = vsel %vm4226, %v4230, %v4232
      %v4234 = vrot.slane %v317, 2
      %v4235 = vsel %vm4226, %v4232, %v4234
      %v4236 = vrot.slane %v318, 2
      %v4237 = vsel %vm4226, %v4234, %v4236
      %v4238 = vrot.slane %v319, 2
      %v4239 = vsel %vm4226, %v4236, %v4238
      %v4240 = vrot.slane %v320, 2
      %v4241 = vsel %vm4226, %v4238, %v4240
      %v4242 = vrot.slane %v321, 2
      %v4243 = vsel %vm4226, %v4240, %v4242
      %v4244 = vrot.slane %v322, 2
      %v4245 = vsel %vm4226, %v4242, %v4244
      %v4246 = vrot.slane %v323, 2
      %v4247 = vsel %vm4226, %v4244, %v4246
      %v4248 = vrot.slane %v324, 2
      %v4249 = vsel %vm4226, %v4246, %v4248
      %v4250 = vrot.slane %v325, 2
      %v4251 = vsel %vm4226, %v4248, %v4250
      %v4252 = vrot.slane %v326, 2
      %v4253 = vsel %vm4226, %v4250, %v4252
      %v4254 = vrot.slane %v327, 2
      %v4255 = vsel %vm4226, %v4252, %v4254
      %v4256 = vrot.slane %v328, 2
      %v4257 = vsel %vm4226, %v4254, %v4256
      %v4258 = vrot.slane %v329, 2
      %v4259 = vsel %vm4226, %v4256, %v4258
      %v4260 = vrot.slane %v330, 2
      %v4261 = vsel %vm4226, %v4258, %v4260
      %v4262 = vrot.slane %v331, 2
      %v4263 = vsel %vm4226, %v4260, %v4262
      %v4264 = vrot.slane %v332, 2
      %v4265 = vsel %vm4226, %v4262, %v4264
      %v4266 = vrot.slane %v333, 2
      %v4267 = vsel %vm4226, %v4264, %v4266
      %v4268 = vrot.slane %v334, 2
      %v4269 = vsel %vm4226, %v4266, %v4268
      %v4270 = vrot.slane %v335, 2
      %v4271 = vsel %vm4226, %v4268, %v4270
      %v4272 = vrot.slane %v336, 2
      %v4273 = vsel %vm4226, %v4270, %v4272
      %v4274 = vrot.slane %v337, 2
      %v4275 = vsel %vm4226, %v4272, %v4274
      %v4276 = vrot.slane %v338, 2
      %v4277 = vsel %vm4226, %v4274, %v4276
      %v4278 = vrot.slane %v339, 2
      %v4279 = vsel %vm4226, %v4276, %v4278
      %v4280 = vrot.slane %v340, 2
      %v4281 = vsel %vm4226, %v4278, %v4280
      %v4282 = vrot.slane %v341, 2
      %v4283 = vsel %vm4226, %v4280, %v4282
      %v4284 = vrot.slane %v342, 2
      %v4285 = vsel %vm4226, %v4282, %v4284
      %v4286 = vrot.slane %v343, 2
      %v4287 = vsel %vm4226, %v4284, %v4286
      %v4288 = vrot.slane %v344, 2
      %v4289 = vsel %vm4226, %v4286, %v4288
      %v4290 = vrot.slane %v345, 2
      %v4291 = vsel %vm4226, %v4288, %v4290
      %v4292 = vrot.slane %v346, 2
      %v4293 = vsel %vm4226, %v4290, %v4292
      %v4294 = vrot.slane %v347, 2
      %v4295 = vsel %vm4226, %v4292, %v4294
      %v4296 = vrot.slane %v348, 2
      %v4297 = vsel %vm4226, %v4294, %v4296
      %v4298 = vrot.slane %v349, 2
      %v4299 = vsel %vm4226, %v4296, %v4298
      %v4300 = vrot.slane %v350, 2
      %v4301 = vsel %vm4226, %v4298, %v4300
      %v4302 = vrot.slane %v351, 2
      %v4303 = vsel %vm4226, %v4300, %v4302
      %v4304 = vrot.slane %v352, 2
      %v4305 = vsel %vm4226, %v4302, %v4304
      %v4306 = vrot.slane %v353, 2
      %v4307 = vsel %vm4226, %v4304, %v4306
      %v4348 = vadd.f32 %v4027, %v4229
      %v4349 = vadd.f32 %v4030, %v4231
      %v4350 = vadd.f32 %v4035, %v4233
      %v4351 = vadd.f32 %v4038, %v4235
      %v4352 = vadd.f32 %v4043, %v4237
      %v4353 = vadd.f32 %v4046, %v4239
      %v4354 = vadd.f32 %v4051, %v4241
      %v4355 = vadd.f32 %v4054, %v4243
      %v4356 = vadd.f32 %v4059, %v4245
      %v4357 = vadd.f32 %v4062, %v4247
      %v4358 = vadd.f32 %v4067, %v4249
      %v4359 = vadd.f32 %v4070, %v4251
      %v4360 = vadd.f32 %v4075, %v4253
      %v4361 = vadd.f32 %v4078, %v4255
      %v4362 = vadd.f32 %v4083, %v4257
      %v4363 = vadd.f32 %v4086, %v4259
      %v4364 = vadd.f32 %v4091, %v4261
      %v4365 = vadd.f32 %v4094, %v4263
      %v4366 = vadd.f32 %v4099, %v4265
      %v4367 = vadd.f32 %v4102, %v4267
      %v4368 = vadd.f32 %v4107, %v4269
      %v4369 = vadd.f32 %v4110, %v4271
      %v4370 = vadd.f32 %v4115, %v4273
      %v4371 = vadd.f32 %v4118, %v4275
      %v4372 = vadd.f32 %v4123, %v4277
      %v4373 = vadd.f32 %v4126, %v4279
      %v4374 = vadd.f32 %v4131, %v4281
      %v4375 = vadd.f32 %v4134, %v4283
      %v4376 = vadd.f32 %v4139, %v4285
      %v4377 = vadd.f32 %v4142, %v4287
      %v4378 = vadd.f32 %v4147, %v4289
      %v4379 = vadd.f32 %v4150, %v4291
      %v4380 = vadd.f32 %v4155, %v4293
      %v4381 = vadd.f32 %v4158, %v4295
      %v4382 = vadd.f32 %v4163, %v4297
      %v4383 = vadd.f32 %v4166, %v4299
      %v4384 = vadd.f32 %v4171, %v4301
      %v4385 = vadd.f32 %v4174, %v4303
      %v4386 = vadd.f32 %v4179, %v4305
      %v4387 = vadd.f32 %v4182, %v4307
      %4388 = vst.msk [vmem:[%s300] sm:$0xff] %vm1354, %v4348
      %4389 = vst.msk [vmem:[%s300 + $0x8] sm:$0xff] %vm1354, %v4349
      %4390 = vst.msk [vmem:[%s300 + $0x10] sm:$0xff] %vm1354, %v4350
      %4391 = vst.msk [vmem:[%s300 + $0x18] sm:$0xff] %vm1354, %v4351
      %4392 = vst.msk [vmem:[%s300 + $0x20] sm:$0xff] %vm1354, %v4352
      %4393 = vst.msk [vmem:[%s300 + $0x28] sm:$0xff] %vm1354, %v4353
      %4394 = vst.msk [vmem:[%s300 + $0x30] sm:$0xff] %vm1354, %v4354
      %4395 = vst.msk [vmem:[%s300 + $0x38] sm:$0xff] %vm1354, %v4355
      %4396 = vst.msk [vmem:[%s300 + $0x40] sm:$0xff] %vm1354, %v4356
      %4397 = vst.msk [vmem:[%s300 + $0x48] sm:$0xff] %vm1354, %v4357
      %4398 = vst.msk [vmem:[%s300 + $0x50] sm:$0xff] %vm1354, %v4358
      %4399 = vst.msk [vmem:[%s300 + $0x58] sm:$0xff] %vm1354, %v4359
      %4400 = vst.msk [vmem:[%s300 + $0x60] sm:$0xff] %vm1354, %v4360
      %4401 = vst.msk [vmem:[%s300 + $0x68] sm:$0xff] %vm1354, %v4361
      %4402 = vst.msk [vmem:[%s300 + $0x70] sm:$0xff] %vm1354, %v4362
      %4403 = vst.msk [vmem:[%s300 + $0x78] sm:$0xff] %vm1354, %v4363
      %4404 = vst.msk [vmem:[%s300 + $0x80] sm:$0xff] %vm1354, %v4364
      %4405 = vst.msk [vmem:[%s300 + $0x88] sm:$0xff] %vm1354, %v4365
      %4406 = vst.msk [vmem:[%s300 + $0x90] sm:$0xff] %vm1354, %v4366
      %4407 = vst.msk [vmem:[%s300 + $0x98] sm:$0xff] %vm1354, %v4367
      %4408 = vst.msk [vmem:[%s300 + $0xa0] sm:$0xff] %vm1354, %v4368
      %4409 = vst.msk [vmem:[%s300 + $0xa8] sm:$0xff] %vm1354, %v4369
      %4410 = vst.msk [vmem:[%s300 + $0xb0] sm:$0xff] %vm1354, %v4370
      %4411 = vst.msk [vmem:[%s300 + $0xb8] sm:$0xff] %vm1354, %v4371
      %4412 = vst.msk [vmem:[%s300 + $0xc0] sm:$0xff] %vm1354, %v4372
      %4413 = vst.msk [vmem:[%s300 + $0xc8] sm:$0xff] %vm1354, %v4373
      %4414 = vst.msk [vmem:[%s300 + $0xd0] sm:$0xff] %vm1354, %v4374
      %4415 = vst.msk [vmem:[%s300 + $0xd8] sm:$0xff] %vm1354, %v4375
      %4416 = vst.msk [vmem:[%s300 + $0xe0] sm:$0xff] %vm1354, %v4376
      %4417 = vst.msk [vmem:[%s300 + $0xe8] sm:$0xff] %vm1354, %v4377
      %4418 = vst.msk [vmem:[%s300 + $0xf0] sm:$0xff] %vm1354, %v4378
      %4419 = vst.msk [vmem:[%s300 + $0xf8] sm:$0xff] %vm1354, %v4379
      %4420 = vst.msk [vmem:[%s300 + $0x100] sm:$0xff] %vm1354, %v4380
      %4421 = vst.msk [vmem:[%s300 + $0x108] sm:$0xff] %vm1354, %v4381
      %4422 = vst.msk [vmem:[%s300 + $0x110] sm:$0xff] %vm1354, %v4382
      %4423 = vst.msk [vmem:[%s300 + $0x118] sm:$0xff] %vm1354, %v4383
      %4424 = vst.msk [vmem:[%s300 + $0x120] sm:$0xff] %vm1354, %v4384
      %4425 = vst.msk [vmem:[%s300 + $0x128] sm:$0xff] %vm1354, %v4385
      %4426 = vst.msk [vmem:[%s300 + $0x130] sm:$0xff] %vm1354, %v4386
      %4427 = vst.msk [vmem:[%s300 + $0x138] sm:$0xff] %vm1354, %v4387
      %s4428 = smul.u32 40, %s23
      %p4429 = scmp.lt.s32.totalorder %s22, 1
      %s4430 = scalar_select %p4429, %s22, 1
      %p4431 = scmp.lt.s32.totalorder %s4428, 39
      %s4432 = scalar_select %p4431, %s4428, 39
      %s4433 = smul.addr %s4430, 40
      %s4434 = sadd.s32 %s4432, %s4433
      %s4435 = smul.addr %s4434, 8
      %s4436 = scalar_lea.vmem %s7, %s4435
      // Predicated region
      $region49: #{resblock_forward.1} parent=47 // pred_check
        %p4437 = pneg %p202
      $region50: #{resblock_forward.1} parent=47 // pred_check_branch
        %4439 = sbr.rel (%p4437) target = $region52
      $region51: #{resblock_forward.1} parent=47 // pred_region
        %s4440 = smul.u32 40, %s23
      $region52: #{resblock_forward.1} parent=47 // pred_fallthru
        _
    $region48: #{resblock_forward.1} parent=5 // pred_fallthru
      _
    %p4441 = scmp.le.s32.totalorder 2, %s13
    // Predicated region
    $region53: #{resblock_forward.1} parent=5 // pred_check
      %p4442 = pneg %p4441
    $region54: #{resblock_forward.1} parent=5 // pred_check_branch
      %4444 = sbr.rel (%p4442) target = $region56
    $region55: #{resblock_forward.1} parent=5 // pred_region
      %s4445 = ssub.s32 %s13, 2
      // Predicated region
      $region57: #{resblock_forward.1} parent=55 // pred_check
        %p4446 = pneg %p208
      $region58: #{resblock_forward.1} parent=55 // pred_check_branch
        %4448 = sbr.rel (%p4446) target = $region60
      $region59: #{resblock_forward.1} parent=55 // pred_region
        %s4449 = smul.u32 40, %s25
        %p4450 = scmp.lt.s32.totalorder %s24, 1
        %s4451 = scalar_select %p4450, %s24, 1
        %p4452 = scmp.lt.s32.totalorder %s4449, 39
        %s4453 = scalar_select %p4452, %s4449, 39
        %s4454 = smul.addr %s4451, 40
        %s4455 = sadd.s32 %s4453, %s4454
        %s4456 = smul.addr %s4455, 8
        %s4457 = scalar_lea.vmem %s7, %s4456
      $region60: #{resblock_forward.1} parent=55 // pred_fallthru
        _
    $region56: #{resblock_forward.1} parent=5 // pred_fallthru
      _
  $region6: #{resblock_forward.1} parent=0 // loop_footer
    %s17 = sadd.s32 1, %s13
  $region7: #{resblock_forward.1} parent=0 // loop_footer_branch
    %12 = sbr.rel target = $region3
  $region8: #{resblock_forward.1} parent=0 // loop_exit
    _

</llo_original>
